<compile_context>
chip_gen: v6e
topology: v6e:2x2x1
jax: 0.10.0
libtpu: 0.0.40
codegen_flags: <defaults>
</compile_context>

<pallas_src>
import functools

import jax
import jax.numpy as jnp
from jax.experimental import pallas as pl
from jax.experimental.pallas import tpu as pltpu


class SmallConfig:
    # Scaled-down version of the original Config (channels=3, ndf=64,
    # img_size=256, text_embed_dim=256, joint hidden=1024). Structure is
    # identical; only the sizes are reduced for the demo.
    channels = 3
    ndf = 8
    img_size = 32          # four stride-2 convs -> final spatial = img_size // 16
    text_embed_dim = 16
    joint_hidden = 64


_LEAKY = 0.2
_BN_EPS = 1e-5


# ----------------------------------------------------------------------------
# tiling / budget helpers
# ----------------------------------------------------------------------------
def _round_up(x, m):
    return ((x + m - 1) // m) * m


def _choose_tm(m):
    """Row tile for matmul kernels (multiple of 16 for bf16 sublane packing)."""
    if m >= 512:
        return 512
    if m >= 256:
        return 256
    return max(16, _round_up(m, 16))


def _choose_tm_stream(m_pad):
    """Row tile for pure streaming kernels (bigger is better, must divide m_pad)."""
    for cand in (512, 256, 128, 64, 32, 16):
        if m_pad % cand == 0:
            return cand
    return m_pad


def _choose_tk(k_pad):
    """Contraction tile (k_pad is a multiple of 128). 512/256 keep the 256-wide
    v6e/v7x MXU fully fed (384 dropped per review)."""
    if k_pad <= 512:
        return k_pad
    for cand in (512, 256, 128):
        if k_pad % cand == 0:
            return cand
    return 128


def _vmem_limit(block_bytes, scratch_bytes=0):
    """Footprint-derived scoped-VMEM request: x2 for double-buffered pipeline
    blocks, x2 headroom for Mosaic internals, capped at 40 MiB so v7x's 64 MiB
    physical VMEM per TensorCore always keeps headroom."""
    need = 2 * block_bytes + scratch_bytes
    return int(min(max(2 * need, 16 << 20), 40 << 20))


def _epilogue(y, act):
    if act == "lrelu":
        return jnp.where(y > 0, y, _LEAKY * y)
    if act == "sigmoid":
        return 1.0 / (1.0 + jnp.exp(-y))
    return y


# ----------------------------------------------------------------------------
# Kernel 1: y = x @ w + b  [+ activation]  [+ per-M-tile BN partial stats]
# ----------------------------------------------------------------------------
def _mm_kernel_1k(x_ref, w_ref, b_ref, *refs, tm, m_real, act, with_stats):
    """n_k == 1 fast path: no accumulator scratch round-trip, no K grid axis."""
    if with_stats:
        y_ref, sum_ref, ssq_ref = refs
    else:
        (y_ref,) = refs
    i = pl.program_id(0)
    y = jnp.dot(x_ref[...], w_ref[...], preferred_element_type=jnp.float32)
    y = y + b_ref[...]
    if with_stats:
        # Mask rows that are M-padding so batch statistics stay exact.
        row = jax.lax.broadcasted_iota(jnp.int32, y.shape, 0) + i * tm
        ym = jnp.where(row < m_real, y, 0.0)
        sum_ref[0] = jnp.sum(ym, axis=0, keepdims=True)
        ssq_ref[0] = jnp.sum(ym * ym, axis=0, keepdims=True)
    y_ref[...] = _epilogue(y, act).astype(y_ref.dtype)


def _mm_kernel_nk(x_ref, w_ref, b_ref, *refs, n_k, tm, m_real, act, with_stats):
    """K-tiled path: f32 VMEM accumulator, init/finalize via pl.when."""
    if with_stats:
        y_ref, sum_ref, ssq_ref, acc_ref = refs
    else:
        y_ref, acc_ref = refs
    i = pl.program_id(0)   # M tile ("parallel")
    k = pl.program_id(1)   # K tile (reduction, last grid axis, "arbitrary")

    @pl.when(k == 0)
    def _():
        acc_ref[...] = jnp.zeros_like(acc_ref)

    acc_ref[...] += jnp.dot(x_ref[...], w_ref[...],
                            preferred_element_type=jnp.float32)

    @pl.when(k == n_k - 1)
    def _():
        y = acc_ref[...] + b_ref[...]
        if with_stats:
            row = jax.lax.broadcasted_iota(jnp.int32, y.shape, 0) + i * tm
            ym = jnp.where(row < m_real, y, 0.0)
            # Each M tile owns its own stats row -> M can stay "parallel".
            sum_ref[0] = jnp.sum(ym, axis=0, keepdims=True)
            ssq_ref[0] = jnp.sum(ym * ym, axis=0, keepdims=True)
        y_ref[...] = _epilogue(y, act).astype(y_ref.dtype)


def matmul_layer(x, w_pad, b_pad, *, act, out_dtype, with_stats):
    """y = x @ w + b.  w_pad (k_pad, n_pad) bf16 and b_pad (1, n_pad) f32 are
    kernel-ready from prepare_params.  Returns (y_pad, psum, pssq) where
    psum/pssq are (n_m, 1, n_pad) per-M-tile partial column stats (or None)."""
    M, K = x.shape
    k_pad, n_pad = w_pad.shape
    tm = _choose_tm(M)
    m_pad = _round_up(M, tm)
    tk = _choose_tk(k_pad)
    n_m, n_k = m_pad // tm, k_pad // tk

    # K is already 128-aligned for every layer (channels padded to x8), so the
    # K pad below is a no-op; M pad is only non-trivial for the tiny layers.
    xp = jnp.pad(x.astype(jnp.bfloat16), ((0, m_pad - M), (0, k_pad - K)))

    out_bytes = jnp.dtype(out_dtype).itemsize
    out_shapes = [jax.ShapeDtypeStruct((m_pad, n_pad), out_dtype)]
    if with_stats:
        out_shapes += [jax.ShapeDtypeStruct((n_m, 1, n_pad), jnp.float32)] * 2

    cost = pl.CostEstimate(
        flops=2 * m_pad * k_pad * n_pad,
        transcendentals=(m_pad * n_pad) if act == "sigmoid" else 0,
        bytes_accessed=2 * (m_pad * k_pad + k_pad * n_pad)
        + m_pad * n_pad * out_bytes)

    block_bytes = (tm * tk * 2 + tk * n_pad * 2 + n_pad * 4
                   + tm * n_pad * out_bytes + (2 * n_pad * 4 if with_stats else 0))

    if n_k == 1:
        kern = functools.partial(_mm_kernel_1k, tm=tm, m_real=M, act=act,
                                 with_stats=with_stats)
        grid = (n_m,)
        in_specs = [pl.BlockSpec((tm, k_pad), lambda i: (i, 0)),
                    pl.BlockSpec((k_pad, n_pad), lambda i: (0, 0)),
                    pl.BlockSpec((1, n_pad), lambda i: (0, 0))]
        out_specs = [pl.BlockSpec((tm, n_pad), lambda i: (i, 0))]
        if with_stats:
            out_specs += [pl.BlockSpec((1, 1, n_pad), lambda i: (i, 0, 0))] * 2
        scratch = []
        scratch_bytes = 0
        semantics = ("parallel",)
    else:
        kern = functools.partial(_mm_kernel_nk, n_k=n_k, tm=tm, m_real=M,
                                 act=act, with_stats=with_stats)
        grid = (n_m, n_k)
        in_specs = [pl.BlockSpec((tm, tk), lambda i, k: (i, k)),
                    pl.BlockSpec((tk, n_pad), lambda i, k: (k, 0)),
                    pl.BlockSpec((1, n_pad), lambda i, k: (0, 0))]
        out_specs = [pl.BlockSpec((tm, n_pad), lambda i, k: (i, 0))]
        if with_stats:
            out_specs += [pl.BlockSpec((1, 1, n_pad), lambda i, k: (i, 0, 0))] * 2
        scratch = [pltpu.VMEM((tm, n_pad), jnp.float32)]
        scratch_bytes = tm * n_pad * 4
        # Per-tile partial stats -> M tiles are independent -> keep "parallel"
        # so both v7x TensorCores stay busy; K is the reduction ("arbitrary").
        semantics = ("parallel", "arbitrary")

    result = pl.pallas_call(
        kern,
        out_shape=tuple(out_shapes),
        grid=grid,
        in_specs=in_specs,
        out_specs=tuple(out_specs),
        scratch_shapes=scratch,
        compiler_params=pltpu.CompilerParams(
            dimension_semantics=semantics,
            vmem_limit_bytes=_vmem_limit(block_bytes, scratch_bytes)),
        cost_estimate=cost,
    )(xp, w_pad, b_pad)

    if with_stats:
        return result[0], result[1], result[2]
    return result[0], None, None


# ----------------------------------------------------------------------------
# Kernel 2: BatchNorm (batch statistics) + LeakyReLU apply, M-tiled "parallel"
# ----------------------------------------------------------------------------
def _bn_lrelu_kernel(y_ref, sum_ref, ssq_ref, g_ref, beta_ref, o_ref, *, m_real):
    inv_m = 1.0 / float(m_real)
    mean = sum_ref[...] * inv_m                              # (1, n_pad) f32
    # TODO(synk): switch to a shifted/Welford accumulation if activations ever
    # grow large enough for E[x^2]-E[x]^2 cancellation to matter.
    var = jnp.maximum(ssq_ref[...] * inv_m - mean * mean, 0.0)
    scale = jax.lax.rsqrt(var + _BN_EPS) * g_ref[...]
    y = (y_ref[...].astype(jnp.float32) - mean) * scale + beta_ref[...]
    o_ref[...] = jnp.where(y > 0, y, _LEAKY * y).astype(o_ref.dtype)


def bn_lrelu_layer(y_pad, psum, pssq, g_pad, beta_pad, *, m_real, out_dtype):
    m_pad, n_pad = y_pad.shape
    # Reduce the tiny per-M-tile partial stats in plain JAX.
    col_sum = jnp.sum(psum, axis=0)          # (1, n_pad)
    col_ssq = jnp.sum(pssq, axis=0)
    tm = _choose_tm_stream(m_pad)
    n_m = m_pad // tm

    out_bytes = jnp.dtype(out_dtype).itemsize
    vec = pl.BlockSpec((1, n_pad), lambda i: (0, 0))
    block_bytes = tm * n_pad * 2 + 4 * n_pad * 4 + tm * n_pad * out_bytes
    cost = pl.CostEstimate(
        flops=8 * m_pad * n_pad,
        transcendentals=n_pad,
        bytes_accessed=m_pad * n_pad * (2 + out_bytes))

    return pl.pallas_call(
        functools.partial(_bn_lrelu_kernel, m_real=m_real),
        out_shape=jax.ShapeDtypeStruct((m_pad, n_pad), out_dtype),
        grid=(n_m,),
        in_specs=[pl.BlockSpec((tm, n_pad), lambda i: (i, 0)),
                  vec, vec, vec, vec],
        out_specs=pl.BlockSpec((tm, n_pad), lambda i: (i, 0)),
        compiler_params=pltpu.CompilerParams(
            dimension_semantics=("parallel",),
            vmem_limit_bytes=_vmem_limit(block_bytes)),
        cost_estimate=cost,
    )(y_pad, col_sum, col_ssq, g_pad, beta_pad)


# ----------------------------------------------------------------------------
# Conv2d(kernel=4, stride=2, pad=1) as NHWC im2col + tiled Pallas matmul
# ----------------------------------------------------------------------------
def _extract_patches_nhwc(x, kh=4, kw=4, stride=2, pad=1):
    # TODO(synk): fold this patch gather into the matmul kernel (tap-decomposed
    # reduction over the 16 (ki,kj) offsets of a once-padded NHWC input, or a
    # manual make_async_copy from an ANY/HBM ref) to avoid materializing the
    # 4x-expanded im2col buffer in HBM at the full-size config.
    B, H, W, C = x.shape
    xp = jnp.pad(x, ((0, 0), (pad, pad), (pad, pad), (0, 0)))
    ho = (H + 2 * pad - kh) // stride + 1
    wo = (W + 2 * pad - kw) // stride + 1
    cols = []
    for i in range(kh):
        for j in range(kw):
            cols.append(xp[:, i:i + stride * ho:stride, j:j + stride * wo:stride, :])
    p = jnp.stack(cols, axis=3)                 # (B, ho, wo, kh*kw, C)
    return p.reshape(B * ho * wo, kh * kw * C), ho, wo


def conv_block(x_nhwc, w_pad, b_pad, g_pad=None, beta_pad=None, *, bn, n_out):
    """PyTorch-equivalent Conv2d(4,2,1) [+ BatchNorm2d (batch stats)] + LeakyReLU."""
    B = x_nhwc.shape[0]
    x_col, ho, wo = _extract_patches_nhwc(x_nhwc)
    m = x_col.shape[0]
    if bn:
        y_pad, psum, pssq = matmul_layer(x_col, w_pad, b_pad, act="none",
                                         out_dtype=jnp.bfloat16, with_stats=True)
        y_pad = bn_lrelu_layer(y_pad, psum, pssq, g_pad, beta_pad,
                               m_real=m, out_dtype=jnp.bfloat16)
    else:
        y_pad, _, _ = matmul_layer(x_col, w_pad, b_pad, act="lrelu",
                                   out_dtype=jnp.bfloat16, with_stats=False)
    return y_pad[:m, :n_out].reshape(B, ho, wo, n_out)     # stays NHWC


# ----------------------------------------------------------------------------
# Kernel 3: fused tail = text Linear+BN+LReLU -> joint Linear+BN+LReLU ->
#           final Linear + Sigmoid (single pallas_call, K-tiled over img feat)
# ----------------------------------------------------------------------------
def _bn_lrelu_batch(z, gamma, beta, b_real):
    """Single-pass batch-stat BatchNorm + LeakyReLU; padded batch rows are
    masked out of the statistics (whole batch is resident in one tile)."""
    row = jax.lax.broadcasted_iota(jnp.int32, z.shape, 0)
    mask = (row < b_real).astype(z.dtype)
    inv_b = 1.0 / float(b_real)
    mean = jnp.sum(z * mask, axis=0, keepdims=True) * inv_b
    d = (z - mean) * mask
    var = jnp.sum(d * d, axis=0, keepdims=True) * inv_b
    zn = (z - mean) * jax.lax.rsqrt(var + _BN_EPS) * gamma + beta
    return jnp.where(zn > 0, zn, _LEAKY * zn)


def _tail_kernel(img_ref, text_ref, tw_ref, taff_ref, j1wi_ref, j1wt_ref,
                 j1aff_ref, j2w_ref, j2b_ref, out_ref, acc_ref, tf_ref,
                 *, n_k, b_real):
    k = pl.program_id(0)

    @pl.when(k == 0)
    def _():
        acc_ref[...] = jnp.zeros_like(acc_ref)
        # text_net: Linear + BatchNorm1d (batch stats) + LeakyReLU
        z = jnp.dot(text_ref[...], tw_ref[...],
                    preferred_element_type=jnp.float32) + taff_ref[0:1, :]
        tf_ref[...] = _bn_lrelu_batch(z, taff_ref[1:2, :], taff_ref[2:3, :],
                                      b_real).astype(tf_ref.dtype)

    # joint_net layer 1, image-feature part of the contraction (K-tiled).
    acc_ref[...] += jnp.dot(img_ref[...], j1wi_ref[...],
                            preferred_element_type=jnp.float32)

    @pl.when(k == n_k - 1)
    def _():
        z = acc_ref[...] + jnp.dot(tf_ref[...], j1wt_ref[...],
                                   preferred_element_type=jnp.float32)
        z = z + j1aff_ref[0:1, :]
        h = _bn_lrelu_batch(z, j1aff_ref[1:2, :], j1aff_ref[2:3, :], b_real)
        logits = jnp.dot(h.astype(jnp.bfloat16), j2w_ref[...],
                         preferred_element_type=jnp.float32) + j2b_ref[...]
        out_ref[...] = 1.0 / (1.0 + jnp.exp(-logits))


def joint_tail(img_feat, text_embed, kp, *, b_real):
    b_pad = _round_up(b_real, 16)
    k_img, jh_pad = kp["j1_wi"].shape
    t_pad, th_pad = kp["t_w"].shape

    imgp = jnp.pad(img_feat.astype(jnp.bfloat16),
                   ((0, b_pad - b_real), (0, k_img - img_feat.shape[1])))
    textp = jnp.pad(text_embed.astype(jnp.bfloat16),
                    ((0, b_pad - b_real), (0, t_pad - text_embed.shape[1])))

    tk = _choose_tk(k_img)
    n_k = k_img // tk

    block_bytes = (b_pad * tk * 2 + b_pad * t_pad * 2 + t_pad * th_pad * 2
                   + 3 * th_pad * 4 + tk * jh_pad * 2 + th_pad * jh_pad * 2
                   + 3 * jh_pad * 4 + jh_pad * 128 * 2 + 128 * 4
                   + b_pad * 128 * 4)
    scratch_bytes = b_pad * jh_pad * 4 + b_pad * th_pad * 2
    cost = pl.CostEstimate(
        flops=2 * b_pad * (k_img * jh_pad + t_pad * th_pad
                           + th_pad * jh_pad + jh_pad * 128),
        transcendentals=b_pad * 128,
        bytes_accessed=2 * (b_pad * k_img + k_img * jh_pad) + b_pad * 128 * 4)

    out = pl.pallas_call(
        functools.partial(_tail_kernel, n_k=n_k, b_real=b_real),
        out_shape=jax.ShapeDtypeStruct((b_pad, 128), jnp.float32),
        grid=(n_k,),
        in_specs=[
            pl.BlockSpec((b_pad, tk), lambda k: (0, k)),        # img_feat (K-tiled)
            pl.BlockSpec((b_pad, t_pad), lambda k: (0, 0)),     # text_embed
            pl.BlockSpec((t_pad, th_pad), lambda k: (0, 0)),    # t_w
            pl.BlockSpec((3, th_pad), lambda k: (0, 0)),        # t bias/gamma/beta
            pl.BlockSpec((tk, jh_pad), lambda k: (k, 0)),       # j1_w image rows
            pl.BlockSpec((th_pad, jh_pad), lambda k: (0, 0)),   # j1_w text rows
            pl.BlockSpec((3, jh_pad), lambda k: (0, 0)),        # j1 bias/gamma/beta
            pl.BlockSpec((jh_pad, 128), lambda k: (0, 0)),      # j2_w
            pl.BlockSpec((1, 128), lambda k: (0, 0)),           # j2_b
        ],
        out_specs=pl.BlockSpec((b_pad, 128), lambda k: (0, 0)),
        scratch_shapes=[pltpu.VMEM((b_pad, jh_pad), jnp.float32),
                        pltpu.VMEM((b_pad, th_pad), jnp.bfloat16)],
        compiler_params=pltpu.CompilerParams(
            dimension_semantics=("arbitrary",),
            vmem_limit_bytes=_vmem_limit(block_bytes, scratch_bytes)),
        cost_estimate=cost,
    )(imgp, textp, kp["t_w"], kp["t_aff"], kp["j1_wi"], kp["j1_wt"],
      kp["j1_aff"], kp["j2_w"], kp["j2_b"])
    return out[:b_real, :1]


# ----------------------------------------------------------------------------
# Parameters (PyTorch-layout synthetic init) + one-time kernel-layout prep
# ----------------------------------------------------------------------------
def init_params(key):
    cfg = SmallConfig
    ndf = cfg.ndf
    keys = jax.random.split(key, 7)

    def w(k, shape, scale=0.05):
        return scale * jax.random.normal(k, shape, dtype=jnp.float32)

    p = {}
    p["c1_w"] = w(keys[0], (ndf, cfg.channels, 4, 4))          # OIHW
    p["c1_b"] = jnp.zeros((ndf,), jnp.float32)

    p["c2_w"] = w(keys[1], (ndf * 2, ndf, 4, 4))
    p["c2_b"] = jnp.zeros((ndf * 2,), jnp.float32)
    p["c2_g"] = jnp.ones((ndf * 2,), jnp.float32)
    p["c2_beta"] = jnp.zeros((ndf * 2,), jnp.float32)

    p["c3_w"] = w(keys[2], (ndf * 4, ndf * 2, 4, 4))
    p["c3_b"] = jnp.zeros((ndf * 4,), jnp.float32)
    p["c3_g"] = jnp.ones((ndf * 4,), jnp.float32)
    p["c3_beta"] = jnp.zeros((ndf * 4,), jnp.float32)

    p["c4_w"] = w(keys[3], (ndf * 8, ndf * 4, 4, 4))
    p["c4_b"] = jnp.zeros((ndf * 8,), jnp.float32)
    p["c4_g"] = jnp.ones((ndf * 8,), jnp.float32)
    p["c4_beta"] = jnp.zeros((ndf * 8,), jnp.float32)

    p["t_w"] = w(keys[4], (cfg.text_embed_dim, ndf * 8))
    p["t_b"] = jnp.zeros((ndf * 8,), jnp.float32)
    p["t_g"] = jnp.ones((ndf * 8,), jnp.float32)
    p["t_beta"] = jnp.zeros((ndf * 8,), jnp.float32)

    feat_sp = cfg.img_size // 16
    joint_in = ndf * 8 * feat_sp * feat_sp + ndf * 8
    p["j1_w"] = w(keys[5], (joint_in, cfg.joint_hidden))        # rows in NCHW-flatten order
    p["j1_b"] = jnp.zeros((cfg.joint_hidden,), jnp.float32)
    p["j1_g"] = jnp.ones((cfg.joint_hidden,), jnp.float32)
    p["j1_beta"] = jnp.zeros((cfg.joint_hidden,), jnp.float32)

    p["j2_w"] = w(keys[6], (cfg.joint_hidden, 1))
    p["j2_b"] = jnp.zeros((1,), jnp.float32)
    return p


def prepare_params(p):
    """One-time (outside jit) conversion of PyTorch-layout params into
    kernel-ready layout: im2col-ordered, channel/lane padded, bf16 weights,
    f32 padded bias / BN-affine rows."""
    cfg = SmallConfig
    ndf = cfg.ndf
    kp = {}

    def pad_row(v, n_pad):
        v = v.astype(jnp.float32).reshape(1, -1)
        return jnp.pad(v, ((0, 0), (0, n_pad - v.shape[1])))

    def conv_w(w_oihw, cin_pad, cout_pad):
        # OIHW -> (KH*KW*Cin_pad, Cout_pad), matching the (ki, kj, c) im2col
        # column order; zero rows for padded input channels.
        o, i, kh, kw = w_oihw.shape
        w_ = jnp.transpose(w_oihw, (2, 3, 1, 0))            # (kh, kw, cin, cout)
        w_ = jnp.pad(w_, ((0, 0), (0, 0), (0, cin_pad - i), (0, cout_pad - o)))
        return w_.reshape(kh * kw * cin_pad, cout_pad).astype(jnp.bfloat16)

    cins = (_round_up(cfg.channels, 8), ndf, ndf * 2, ndf * 4)
    couts = (ndf, ndf * 2, ndf * 4, ndf * 8)
    for idx, name in enumerate(("c1", "c2", "c3", "c4")):
        n_pad = _round_up(couts[idx], 128)
        kp[name + "_w"] = conv_w(p[name + "_w"], cins[idx], n_pad)
        kp[name + "_b"] = pad_row(p[name + "_b"], n_pad)
        if name != "c1":
            kp[name + "_g"] = pad_row(p[name + "_g"], n_pad)
            kp[name + "_beta"] = pad_row(p[name + "_beta"], n_pad)

    # text branch
    th_pad = _round_up(ndf * 8, 128)
    t_pad = _round_up(cfg.text_embed_dim, 128)
    tw = p["t_w"].astype(jnp.bfloat16)
    kp["t_w"] = jnp.pad(tw, ((0, t_pad - tw.shape[0]), (0, th_pad - tw.shape[1])))
    kp["t_aff"] = jnp.concatenate(
        [pad_row(p["t_b"], th_pad), pad_row(p["t_g"], th_pad),
         pad_row(p["t_beta"], th_pad)], axis=0)

    # joint layer 1: permute the image-feature rows from NCHW-flatten (PyTorch)
    # to NHWC-flatten (our layout), split into image / text row blocks, pad.
    fs = cfg.img_size // 16
    c = ndf * 8
    img_len = c * fs * fs
    jh_pad = _round_up(cfg.joint_hidden, 128)
    perm = jnp.arange(img_len).reshape(c, fs, fs).transpose(1, 2, 0).reshape(-1)
    j1_img = p["j1_w"][:img_len][perm]
    j1_txt = p["j1_w"][img_len:]
    kp["j1_wi"] = jnp.pad(
        j1_img.astype(jnp.bfloat16),
        ((0, _round_up(img_len, 128) - img_len), (0, jh_pad - j1_img.shape[1])))
    kp["j1_wt"] = jnp.pad(
        j1_txt.astype(jnp.bfloat16),
        ((0, th_pad - j1_txt.shape[0]), (0, jh_pad - j1_txt.shape[1])))
    kp["j1_aff"] = jnp.concatenate(
        [pad_row(p["j1_b"], jh_pad), pad_row(p["j1_g"], jh_pad),
         pad_row(p["j1_beta"], jh_pad)], axis=0)

    # joint layer 2 (1 real output column, padded to a 128-lane slab)
    kp["j2_w"] = jnp.pad(
        p["j2_w"].astype(jnp.bfloat16),
        ((0, jh_pad - p["j2_w"].shape[0]), (0, 128 - p["j2_w"].shape[1])))
    kp["j2_b"] = pad_row(p["j2_b"], 128)
    return kp


# ----------------------------------------------------------------------------
# Full forward pass (semantics identical to the PyTorch Discriminator)
# ----------------------------------------------------------------------------
def discriminator_forward(kp, img_nchw, text_embed):
    cfg = SmallConfig
    ndf = cfg.ndf
    B = img_nchw.shape[0]
    # Single transpose at the boundary; everything downstream stays NHWC.
    # Channels are padded to a multiple of 8 once so every im2col K is 128-aligned.
    x = jnp.transpose(img_nchw, (0, 2, 3, 1)).astype(jnp.bfloat16)
    x = jnp.pad(x, ((0, 0), (0, 0), (0, 0),
                    (0, _round_up(cfg.channels, 8) - cfg.channels)))

    # img_net
    x = conv_block(x, kp["c1_w"], kp["c1_b"], bn=False, n_out=ndf)
    x = conv_block(x, kp["c2_w"], kp["c2_b"], kp["c2_g"], kp["c2_beta"],
                   bn=True, n_out=ndf * 2)
    x = conv_block(x, kp["c3_w"], kp["c3_b"], kp["c3_g"], kp["c3_beta"],
                   bn=True, n_out=ndf * 4)
    x = conv_block(x, kp["c4_w"], kp["c4_b"], kp["c4_g"], kp["c4_beta"],
                   bn=True, n_out=ndf * 8)
    img_feat = x.reshape(B, -1)    # NHWC flatten; j1_wi rows permuted to match

    # text_net + joint_net fused into one pallas_call
    return joint_tail(img_feat, text_embed, kp, b_real=B)


if __name__ == "__main__":
    key = jax.random.PRNGKey(0)
    k_param, k_img, k_txt = jax.random.split(key, 3)

    params = prepare_params(init_params(k_param))

    B = 2
    img = jax.random.normal(
        k_img, (B, SmallConfig.channels, SmallConfig.img_size, SmallConfig.img_size),
        dtype=jnp.float32)
    text_embed = jax.random.normal(
        k_txt, (B, SmallConfig.text_embed_dim), dtype=jnp.float32)

    out = jax.jit(discriminator_forward)(params, img, text_embed)
    out = jax.block_until_ready(out)

    assert out.shape == (B, 1), out.shape
    assert bool(jnp.all(jnp.isfinite(out)))
    assert bool(jnp.all((out >= 0.0) & (out <= 1.0)))
    print("KERNEL_OK")
</pallas_src>

<mosaic_0001>
module attributes {stable_mosaic.version = 11 : i64} {
  func.func @_mm_kernel_1k(%arg0: i32, %arg1: memref<512x128xbf16, #tpu.memory_space<vmem>>, %arg2: memref<128x128xbf16, #tpu.memory_space<vmem>>, %arg3: memref<1x128xf32, #tpu.memory_space<vmem>>, %arg4: memref<512x128xbf16, #tpu.memory_space<vmem>>) attributes {dimension_semantics = [#tpu.dimension_semantics<parallel>], iteration_bounds = array<i64: 1>, scalar_prefetch = 0 : i64, scratch_operands = 0 : i64, tpu.core_type = #tpu.core_type<tc>, window_params = [{transform_indices = @transform_0, window_bounds = array<i64: 512, 128>}, {pipeline_mode = #tpu.pipeline_mode<synchronous>, transform_indices = @transform_1, window_bounds = array<i64: 128, 128>}, {pipeline_mode = #tpu.pipeline_mode<synchronous>, transform_indices = @transform_2, window_bounds = array<i64: 1, 128>}, {transform_indices = @transform_3, window_bounds = array<i64: 512, 128>}]} {
    %c0 = arith.constant 0 : index
    %c0_0 = arith.constant 0 : index
    %0 = vector.load %arg1[%c0, %c0_0] : memref<512x128xbf16, #tpu.memory_space<vmem>>, vector<512x128xbf16>
    %c0_1 = arith.constant 0 : index
    %c0_2 = arith.constant 0 : index
    %1 = vector.load %arg2[%c0_1, %c0_2] : memref<128x128xbf16, #tpu.memory_space<vmem>>, vector<128x128xbf16>
    %cst = arith.constant dense<0.000000e+00> : vector<512x128xf32>
    %2 = tpu.matmul %0, %1, %cst {dimension_numbers = #tpu.dot_dimension_numbers<[1], [0], [0], [1], [0, 0, 1, 1], [], []>} : vector<512x128xbf16>, vector<128x128xbf16>, vector<512x128xf32> -> vector<512x128xf32>
    %c0_3 = arith.constant 0 : index
    %c0_4 = arith.constant 0 : index
    %3 = vector.load %arg3[%c0_3, %c0_4] : memref<1x128xf32, #tpu.memory_space<vmem>>, vector<1x128xf32>
    %4 = vector.broadcast %3 : vector<1x128xf32> to vector<512x128xf32>
    %5 = arith.addf %2, %4 : vector<512x128xf32>
    %cst_5 = arith.constant 0.000000e+00 : f32
    %6 = vector.broadcast %cst_5 : f32 to vector<512x128xf32>
    %7 = arith.cmpf ogt, %5, %6 : vector<512x128xf32>
    %cst_6 = arith.constant 2.000000e-01 : f32
    %8 = vector.broadcast %cst_6 : f32 to vector<512x128xf32>
    %9 = arith.mulf %8, %5 : vector<512x128xf32>
    %10 = arith.select %7, %5, %9 : vector<512x128xi1>, vector<512x128xf32>
    %11 = arith.truncf %10 : vector<512x128xf32> to vector<512x128xbf16>
    %c0_7 = arith.constant 0 : index
    %c0_8 = arith.constant 0 : index
    %12 = vector.load %arg4[%c0_7, %c0_8] : memref<512x128xbf16, #tpu.memory_space<vmem>>, vector<512x128xbf16>
    tpu.vector_store %arg4[%c0_7, %c0_8], %11 {strides = array<i32>} : memref<512x128xbf16, #tpu.memory_space<vmem>>, vector<512x128xbf16>,
    return
  }
  func.func @transform_0(%arg0: i32) -> (i32, i32) {
    %c0_i32 = arith.constant 0 : i32
    %c0_i32_0 = arith.constant 0 : i32
    return %arg0, %c0_i32 : i32, i32
  }
  func.func @transform_1(%arg0: i32) -> (i32, i32) {
    %c0_i32 = arith.constant 0 : i32
    %c0_i32_0 = arith.constant 0 : i32
    %c0_i32_1 = arith.constant 0 : i32
    return %c0_i32, %c0_i32_0 : i32, i32
  }
  func.func @transform_2(%arg0: i32) -> (i32, i32) {
    %c0_i32 = arith.constant 0 : i32
    %c0_i32_0 = arith.constant 0 : i32
    %c0_i32_1 = arith.constant 0 : i32
    return %c0_i32, %c0_i32_0 : i32, i32
  }
  func.func @transform_3(%arg0: i32) -> (i32, i32) {
    %c0_i32 = arith.constant 0 : i32
    %c0_i32_0 = arith.constant 0 : i32
    return %arg0, %c0_i32 : i32, i32
  }
}

module attributes {stable_mosaic.version = 11 : i64} {
  func.func @_mm_kernel_1k(%arg0: i32, %arg1: memref<128x128xbf16, #tpu.memory_space<vmem>>, %arg2: memref<128x128xbf16, #tpu.memory_space<vmem>>, %arg3: memref<1x128xf32, #tpu.memory_space<vmem>>, %arg4: memref<128x128xbf16, #tpu.memory_space<vmem>>, %arg5: memref<1x1x128xf32, #tpu.memory_space<vmem>>, %arg6: memref<1x1x128xf32, #tpu.memory_space<vmem>>) attributes {dimension_semantics = [#tpu.dimension_semantics<parallel>], iteration_bounds = array<i64: 1>, scalar_prefetch = 0 : i64, scratch_operands = 0 : i64, tpu.core_type = #tpu.core_type<tc>, window_params = [{transform_indices = @transform_0, window_bounds = array<i64: 128, 128>}, {pipeline_mode = #tpu.pipeline_mode<synchronous>, transform_indices = @transform_1, window_bounds = array<i64: 128, 128>}, {pipeline_mode = #tpu.pipeline_mode<synchronous>, transform_indices = @transform_2, window_bounds = array<i64: 1, 128>}, {transform_indices = @transform_3, window_bounds = array<i64: 128, 128>}, {transform_indices = @transform_4, window_bounds = array<i64: 1, 1, 128>}, {transform_indices = @transform_5, window_bounds = array<i64: 1, 1, 128>}]} {
    %c0 = arith.constant 0 : index
    %c0_0 = arith.constant 0 : index
    %0 = vector.load %arg1[%c0, %c0_0] : memref<128x128xbf16, #tpu.memory_space<vmem>>, vector<128x128xbf16>
    %c0_1 = arith.constant 0 : index
    %c0_2 = arith.constant 0 : index
    %1 = vector.load %arg2[%c0_1, %c0_2] : memref<128x128xbf16, #tpu.memory_space<vmem>>, vector<128x128xbf16>
    %cst = arith.constant dense<0.000000e+00> : vector<128x128xf32>
    %2 = tpu.matmul %0, %1, %cst {dimension_numbers = #tpu.dot_dimension_numbers<[1], [0], [0], [1], [0, 0, 1, 1], [], []>} : vector<128x128xbf16>, vector<128x128xbf16>, vector<128x128xf32> -> vector<128x128xf32>
    %c0_3 = arith.constant 0 : index
    %c0_4 = arith.constant 0 : index
    %3 = vector.load %arg3[%c0_3, %c0_4] : memref<1x128xf32, #tpu.memory_space<vmem>>, vector<1x128xf32>
    %4 = vector.broadcast %3 : vector<1x128xf32> to vector<128x128xf32>
    %5 = arith.addf %2, %4 : vector<128x128xf32>
    %6 = tpu.iota {dimensions = array<i32: 0>} : vector<128x128xi32>
    %c128_i32 = arith.constant 128 : i32
    %7 = arith.muli %arg0, %c128_i32 : i32
    %8 = vector.broadcast %7 : i32 to vector<128x128xi32>
    %9 = arith.addi %6, %8 : vector<128x128xi32>
    %c128_i32_5 = arith.constant 128 : i32
    %10 = vector.broadcast %c128_i32_5 : i32 to vector<128x128xi32>
    %11 = arith.cmpi slt, %9, %10 : vector<128x128xi32>
    %cst_6 = arith.constant 0.000000e+00 : f32
    %12 = vector.broadcast %cst_6 : f32 to vector<128x128xf32>
    %13 = arith.select %11, %5, %12 : vector<128x128xi1>, vector<128x128xf32>
    %cst_7 = arith.constant dense<0.000000e+00> : vector<128xf32>
    %14 = vector.multi_reduction <add>, %13, %cst_7 [0] : vector<128x128xf32> to vector<128xf32>
    %15 = vector.shape_cast %14 : vector<128xf32> to vector<1x128xf32>
    %c0_8 = arith.constant 0 : index
    %c0_9 = arith.constant 0 : index
    %c0_10 = arith.constant 0 : index
    %16 = vector.load %arg5[%c0_8, %c0_9, %c0_10] : memref<1x1x128xf32, #tpu.memory_space<vmem>>, vector<1x1x128xf32>
    %17 = vector.shape_cast %16 : vector<1x1x128xf32> to vector<1x128xf32>
    %18 = vector.shape_cast %15 : vector<1x128xf32> to vector<1x1x128xf32>
    tpu.vector_store %arg5[%c0_8, %c0_9, %c0_10], %18 {strides = array<i32>} : memref<1x1x128xf32, #tpu.memory_space<vmem>>, vector<1x1x128xf32>,
    %19 = arith.mulf %13, %13 : vector<128x128xf32>
    %cst_11 = arith.constant dense<0.000000e+00> : vector<128xf32>
    %20 = vector.multi_reduction <add>, %19, %cst_11 [0] : vector<128x128xf32> to vector<128xf32>
    %21 = vector.shape_cast %20 : vector<128xf32> to vector<1x128xf32>
    %c0_12 = arith.constant 0 : index
    %c0_13 = arith.constant 0 : index
    %c0_14 = arith.constant 0 : index
    %22 = vector.load %arg6[%c0_12, %c0_13, %c0_14] : memref<1x1x128xf32, #tpu.memory_space<vmem>>, vector<1x1x128xf32>
    %23 = vector.shape_cast %22 : vector<1x1x128xf32> to vector<1x128xf32>
    %24 = vector.shape_cast %21 : vector<1x128xf32> to vector<1x1x128xf32>
    tpu.vector_store %arg6[%c0_12, %c0_13, %c0_14], %24 {strides = array<i32>} : memref<1x1x128xf32, #tpu.memory_space<vmem>>, vector<1x1x128xf32>,
    %25 = arith.truncf %5 : vector<128x128xf32> to vector<128x128xbf16>
    %c0_15 = arith.constant 0 : index
    %c0_16 = arith.constant 0 : index
    %26 = vector.load %arg4[%c0_15, %c0_16] : memref<128x128xbf16, #tpu.memory_space<vmem>>, vector<128x128xbf16>
    tpu.vector_store %arg4[%c0_15, %c0_16], %25 {strides = array<i32>} : memref<128x128xbf16, #tpu.memory_space<vmem>>, vector<128x128xbf16>,
    return
  }
  func.func @transform_0(%arg0: i32) -> (i32, i32) {
    %c0_i32 = arith.constant 0 : i32
    %c0_i32_0 = arith.constant 0 : i32
    return %arg0, %c0_i32 : i32, i32
  }
  func.func @transform_1(%arg0: i32) -> (i32, i32) {
    %c0_i32 = arith.constant 0 : i32
    %c0_i32_0 = arith.constant 0 : i32
    %c0_i32_1 = arith.constant 0 : i32
    return %c0_i32, %c0_i32_0 : i32, i32
  }
  func.func @transform_2(%arg0: i32) -> (i32, i32) {
    %c0_i32 = arith.constant 0 : i32
    %c0_i32_0 = arith.constant 0 : i32
    %c0_i32_1 = arith.constant 0 : i32
    return %c0_i32, %c0_i32_0 : i32, i32
  }
  func.func @transform_3(%arg0: i32) -> (i32, i32) {
    %c0_i32 = arith.constant 0 : i32
    %c0_i32_0 = arith.constant 0 : i32
    return %arg0, %c0_i32 : i32, i32
  }
  func.func @transform_4(%arg0: i32) -> (i32, i32, i32) {
    %c0_i32 = arith.constant 0 : i32
    %c0_i32_0 = arith.constant 0 : i32
    %c0_i32_1 = arith.constant 0 : i32
    return %arg0, %c0_i32, %c0_i32_0 : i32, i32, i32
  }
  func.func @transform_5(%arg0: i32) -> (i32, i32, i32) {
    %c0_i32 = arith.constant 0 : i32
    %c0_i32_0 = arith.constant 0 : i32
    %c0_i32_1 = arith.constant 0 : i32
    return %arg0, %c0_i32, %c0_i32_0 : i32, i32, i32
  }
}

module attributes {stable_mosaic.version = 11 : i64} {
  func.func @_bn_lrelu_kernel(%arg0: i32, %arg1: memref<128x128xbf16, #tpu.memory_space<vmem>>, %arg2: memref<1x128xf32, #tpu.memory_space<vmem>>, %arg3: memref<1x128xf32, #tpu.memory_space<vmem>>, %arg4: memref<1x128xf32, #tpu.memory_space<vmem>>, %arg5: memref<1x128xf32, #tpu.memory_space<vmem>>, %arg6: memref<128x128xbf16, #tpu.memory_space<vmem>>) attributes {dimension_semantics = [#tpu.dimension_semantics<parallel>], iteration_bounds = array<i64: 1>, scalar_prefetch = 0 : i64, scratch_operands = 0 : i64, tpu.core_type = #tpu.core_type<tc>, window_params = [{transform_indices = @transform_0, window_bounds = array<i64: 128, 128>}, {pipeline_mode = #tpu.pipeline_mode<synchronous>, transform_indices = @transform_1, window_bounds = array<i64: 1, 128>}, {pipeline_mode = #tpu.pipeline_mode<synchronous>, transform_indices = @transform_2, window_bounds = array<i64: 1, 128>}, {pipeline_mode = #tpu.pipeline_mode<synchronous>, transform_indices = @transform_3, window_bounds = array<i64: 1, 128>}, {pipeline_mode = #tpu.pipeline_mode<synchronous>, transform_indices = @transform_4, window_bounds = array<i64: 1, 128>}, {transform_indices = @transform_5, window_bounds = array<i64: 128, 128>}]} {
    %c0 = arith.constant 0 : index
    %c0_0 = arith.constant 0 : index
    %0 = vector.load %arg2[%c0, %c0_0] : memref<1x128xf32, #tpu.memory_space<vmem>>, vector<1x128xf32>
    %cst = arith.constant 7.812500e-03 : f32
    %1 = vector.broadcast %cst : f32 to vector<1x128xf32>
    %2 = arith.mulf %0, %1 : vector<1x128xf32>
    %c0_1 = arith.constant 0 : index
    %c0_2 = arith.constant 0 : index
    %3 = vector.load %arg3[%c0_1, %c0_2] : memref<1x128xf32, #tpu.memory_space<vmem>>, vector<1x128xf32>
    %cst_3 = arith.constant 7.812500e-03 : f32
    %4 = vector.broadcast %cst_3 : f32 to vector<1x128xf32>
    %5 = arith.mulf %3, %4 : vector<1x128xf32>
    %6 = arith.mulf %2, %2 : vector<1x128xf32>
    %7 = arith.subf %5, %6 : vector<1x128xf32>
    %cst_4 = arith.constant 0.000000e+00 : f32
    %8 = vector.broadcast %cst_4 : f32 to vector<1x128xf32>
    %9 = arith.maximumf %7, %8 : vector<1x128xf32>
    %cst_5 = arith.constant 9.99999974E-6 : f32
    %10 = vector.broadcast %cst_5 : f32 to vector<1x128xf32>
    %11 = arith.addf %9, %10 : vector<1x128xf32>
    %12 = math.rsqrt %11 : vector<1x128xf32>
    %c0_6 = arith.constant 0 : index
    %c0_7 = arith.constant 0 : index
    %13 = vector.load %arg4[%c0_6, %c0_7] : memref<1x128xf32, #tpu.memory_space<vmem>>, vector<1x128xf32>
    %14 = arith.mulf %12, %13 : vector<1x128xf32>
    %c0_8 = arith.constant 0 : index
    %c0_9 = arith.constant 0 : index
    %15 = vector.load %arg1[%c0_8, %c0_9] : memref<128x128xbf16, #tpu.memory_space<vmem>>, vector<128x128xbf16>
    %16 = arith.extf %15 : vector<128x128xbf16> to vector<128x128xf32>
    %17 = vector.broadcast %2 : vector<1x128xf32> to vector<128x128xf32>
    %18 = arith.subf %16, %17 : vector<128x128xf32>
    %19 = vector.broadcast %14 : vector<1x128xf32> to vector<128x128xf32>
    %20 = arith.mulf %18, %19 : vector<128x128xf32>
    %c0_10 = arith.constant 0 : index
    %c0_11 = arith.constant 0 : index
    %21 = vector.load %arg5[%c0_10, %c0_11] : memref<1x128xf32, #tpu.memory_space<vmem>>, vector<1x128xf32>
    %22 = vector.broadcast %21 : vector<1x128xf32> to vector<128x128xf32>
    %23 = arith.addf %20, %22 : vector<128x128xf32>
    %cst_12 = arith.constant 0.000000e+00 : f32
    %24 = vector.broadcast %cst_12 : f32 to vector<128x128xf32>
    %25 = arith.cmpf ogt, %23, %24 : vector<128x128xf32>
    %cst_13 = arith.constant 2.000000e-01 : f32
    %26 = vector.broadcast %cst_13 : f32 to vector<128x128xf32>
    %27 = arith.mulf %26, %23 : vector<128x128xf32>
    %28 = arith.select %25, %23, %27 : vector<128x128xi1>, vector<128x128xf32>
    %29 = arith.truncf %28 : vector<128x128xf32> to vector<128x128xbf16>
    %c0_14 = arith.constant 0 : index
    %c0_15 = arith.constant 0 : index
    %30 = vector.load %arg6[%c0_14, %c0_15] : memref<128x128xbf16, #tpu.memory_space<vmem>>, vector<128x128xbf16>
    tpu.vector_store %arg6[%c0_14, %c0_15], %29 {strides = array<i32>} : memref<128x128xbf16, #tpu.memory_space<vmem>>, vector<128x128xbf16>,
    return
  }
  func.func @transform_0(%arg0: i32) -> (i32, i32) {
    %c0_i32 = arith.constant 0 : i32
    %c0_i32_0 = arith.constant 0 : i32
    return %arg0, %c0_i32 : i32, i32
  }
  func.func @transform_1(%arg0: i32) -> (i32, i32) {
    %c0_i32 = arith.constant 0 : i32
    %c0_i32_0 = arith.constant 0 : i32
    %c0_i32_1 = arith.constant 0 : i32
    return %c0_i32, %c0_i32_0 : i32, i32
  }
  func.func @transform_2(%arg0: i32) -> (i32, i32) {
    %c0_i32 = arith.constant 0 : i32
    %c0_i32_0 = arith.constant 0 : i32
    %c0_i32_1 = arith.constant 0 : i32
    return %c0_i32, %c0_i32_0 : i32, i32
  }
  func.func @transform_3(%arg0: i32) -> (i32, i32) {
    %c0_i32 = arith.constant 0 : i32
    %c0_i32_0 = arith.constant 0 : i32
    %c0_i32_1 = arith.constant 0 : i32
    return %c0_i32, %c0_i32_0 : i32, i32
  }
  func.func @transform_4(%arg0: i32) -> (i32, i32) {
    %c0_i32 = arith.constant 0 : i32
    %c0_i32_0 = arith.constant 0 : i32
    %c0_i32_1 = arith.constant 0 : i32
    return %c0_i32, %c0_i32_0 : i32, i32
  }
  func.func @transform_5(%arg0: i32) -> (i32, i32) {
    %c0_i32 = arith.constant 0 : i32
    %c0_i32_0 = arith.constant 0 : i32
    return %arg0, %c0_i32 : i32, i32
  }
}

module attributes {stable_mosaic.version = 11 : i64} {
  func.func @_mm_kernel_1k(%arg0: i32, %arg1: memref<32x256xbf16, #tpu.memory_space<vmem>>, %arg2: memref<256x128xbf16, #tpu.memory_space<vmem>>, %arg3: memref<1x128xf32, #tpu.memory_space<vmem>>, %arg4: memref<32x128xbf16, #tpu.memory_space<vmem>>, %arg5: memref<1x1x128xf32, #tpu.memory_space<vmem>>, %arg6: memref<1x1x128xf32, #tpu.memory_space<vmem>>) attributes {dimension_semantics = [#tpu.dimension_semantics<parallel>], iteration_bounds = array<i64: 1>, scalar_prefetch = 0 : i64, scratch_operands = 0 : i64, tpu.core_type = #tpu.core_type<tc>, window_params = [{transform_indices = @transform_0, window_bounds = array<i64: 32, 256>}, {pipeline_mode = #tpu.pipeline_mode<synchronous>, transform_indices = @transform_1, window_bounds = array<i64: 256, 128>}, {pipeline_mode = #tpu.pipeline_mode<synchronous>, transform_indices = @transform_2, window_bounds = array<i64: 1, 128>}, {transform_indices = @transform_3, window_bounds = array<i64: 32, 128>}, {transform_indices = @transform_4, window_bounds = array<i64: 1, 1, 128>}, {transform_indices = @transform_5, window_bounds = array<i64: 1, 1, 128>}]} {
    %c0 = arith.constant 0 : index
    %c0_0 = arith.constant 0 : index
    %0 = vector.load %arg1[%c0, %c0_0] : memref<32x256xbf16, #tpu.memory_space<vmem>>, vector<32x256xbf16>
    %c0_1 = arith.constant 0 : index
    %c0_2 = arith.constant 0 : index
    %1 = vector.load %arg2[%c0_1, %c0_2] : memref<256x128xbf16, #tpu.memory_space<vmem>>, vector<256x128xbf16>
    %cst = arith.constant dense<0.000000e+00> : vector<32x128xf32>
    %2 = tpu.matmul %0, %1, %cst {dimension_numbers = #tpu.dot_dimension_numbers<[1], [0], [0], [1], [0, 0, 1, 1], [], []>} : vector<32x256xbf16>, vector<256x128xbf16>, vector<32x128xf32> -> vector<32x128xf32>
    %c0_3 = arith.constant 0 : index
    %c0_4 = arith.constant 0 : index
    %3 = vector.load %arg3[%c0_3, %c0_4] : memref<1x128xf32, #tpu.memory_space<vmem>>, vector<1x128xf32>
    %4 = vector.broadcast %3 : vector<1x128xf32> to vector<32x128xf32>
    %5 = arith.addf %2, %4 : vector<32x128xf32>
    %6 = tpu.iota {dimensions = array<i32: 0>} : vector<32x128xi32>
    %c32_i32 = arith.constant 32 : i32
    %7 = arith.muli %arg0, %c32_i32 : i32
    %8 = vector.broadcast %7 : i32 to vector<32x128xi32>
    %9 = arith.addi %6, %8 : vector<32x128xi32>
    %c32_i32_5 = arith.constant 32 : i32
    %10 = vector.broadcast %c32_i32_5 : i32 to vector<32x128xi32>
    %11 = arith.cmpi slt, %9, %10 : vector<32x128xi32>
    %cst_6 = arith.constant 0.000000e+00 : f32
    %12 = vector.broadcast %cst_6 : f32 to vector<32x128xf32>
    %13 = arith.select %11, %5, %12 : vector<32x128xi1>, vector<32x128xf32>
    %cst_7 = arith.constant dense<0.000000e+00> : vector<128xf32>
    %14 = vector.multi_reduction <add>, %13, %cst_7 [0] : vector<32x128xf32> to vector<128xf32>
    %15 = vector.shape_cast %14 : vector<128xf32> to vector<1x128xf32>
    %c0_8 = arith.constant 0 : index
    %c0_9 = arith.constant 0 : index
    %c0_10 = arith.constant 0 : index
    %16 = vector.load %arg5[%c0_8, %c0_9, %c0_10] : memref<1x1x128xf32, #tpu.memory_space<vmem>>, vector<1x1x128xf32>
    %17 = vector.shape_cast %16 : vector<1x1x128xf32> to vector<1x128xf32>
    %18 = vector.shape_cast %15 : vector<1x128xf32> to vector<1x1x128xf32>
    tpu.vector_store %arg5[%c0_8, %c0_9, %c0_10], %18 {strides = array<i32>} : memref<1x1x128xf32, #tpu.memory_space<vmem>>, vector<1x1x128xf32>,
    %19 = arith.mulf %13, %13 : vector<32x128xf32>
    %cst_11 = arith.constant dense<0.000000e+00> : vector<128xf32>
    %20 = vector.multi_reduction <add>, %19, %cst_11 [0] : vector<32x128xf32> to vector<128xf32>
    %21 = vector.shape_cast %20 : vector<128xf32> to vector<1x128xf32>
    %c0_12 = arith.constant 0 : index
    %c0_13 = arith.constant 0 : index
    %c0_14 = arith.constant 0 : index
    %22 = vector.load %arg6[%c0_12, %c0_13, %c0_14] : memref<1x1x128xf32, #tpu.memory_space<vmem>>, vector<1x1x128xf32>
    %23 = vector.shape_cast %22 : vector<1x1x128xf32> to vector<1x128xf32>
    %24 = vector.shape_cast %21 : vector<1x128xf32> to vector<1x1x128xf32>
    tpu.vector_store %arg6[%c0_12, %c0_13, %c0_14], %24 {strides = array<i32>} : memref<1x1x128xf32, #tpu.memory_space<vmem>>, vector<1x1x128xf32>,
    %25 = arith.truncf %5 : vector<32x128xf32> to vector<32x128xbf16>
    %c0_15 = arith.constant 0 : index
    %c0_16 = arith.constant 0 : index
    %26 = vector.load %arg4[%c0_15, %c0_16] : memref<32x128xbf16, #tpu.memory_space<vmem>>, vector<32x128xbf16>
    tpu.vector_store %arg4[%c0_15, %c0_16], %25 {strides = array<i32>} : memref<32x128xbf16, #tpu.memory_space<vmem>>, vector<32x128xbf16>,
    return
  }
  func.func @transform_0(%arg0: i32) -> (i32, i32) {
    %c0_i32 = arith.constant 0 : i32
    %c0_i32_0 = arith.constant 0 : i32
    return %arg0, %c0_i32 : i32, i32
  }
  func.func @transform_1(%arg0: i32) -> (i32, i32) {
    %c0_i32 = arith.constant 0 : i32
    %c0_i32_0 = arith.constant 0 : i32
    %c0_i32_1 = arith.constant 0 : i32
    return %c0_i32, %c0_i32_0 : i32, i32
  }
  func.func @transform_2(%arg0: i32) -> (i32, i32) {
    %c0_i32 = arith.constant 0 : i32
    %c0_i32_0 = arith.constant 0 : i32
    %c0_i32_1 = arith.constant 0 : i32
    return %c0_i32, %c0_i32_0 : i32, i32
  }
  func.func @transform_3(%arg0: i32) -> (i32, i32) {
    %c0_i32 = arith.constant 0 : i32
    %c0_i32_0 = arith.constant 0 : i32
    return %arg0, %c0_i32 : i32, i32
  }
  func.func @transform_4(%arg0: i32) -> (i32, i32, i32) {
    %c0_i32 = arith.constant 0 : i32
    %c0_i32_0 = arith.constant 0 : i32
    %c0_i32_1 = arith.constant 0 : i32
    return %arg0, %c0_i32, %c0_i32_0 : i32, i32, i32
  }
  func.func @transform_5(%arg0: i32) -> (i32, i32, i32) {
    %c0_i32 = arith.constant 0 : i32
    %c0_i32_0 = arith.constant 0 : i32
    %c0_i32_1 = arith.constant 0 : i32
    return %arg0, %c0_i32, %c0_i32_0 : i32, i32, i32
  }
}

module attributes {stable_mosaic.version = 11 : i64} {
  func.func @_bn_lrelu_kernel(%arg0: i32, %arg1: memref<32x128xbf16, #tpu.memory_space<vmem>>, %arg2: memref<1x128xf32, #tpu.memory_space<vmem>>, %arg3: memref<1x128xf32, #tpu.memory_space<vmem>>, %arg4: memref<1x128xf32, #tpu.memory_space<vmem>>, %arg5: memref<1x128xf32, #tpu.memory_space<vmem>>, %arg6: memref<32x128xbf16, #tpu.memory_space<vmem>>) attributes {dimension_semantics = [#tpu.dimension_semantics<parallel>], iteration_bounds = array<i64: 1>, scalar_prefetch = 0 : i64, scratch_operands = 0 : i64, tpu.core_type = #tpu.core_type<tc>, window_params = [{transform_indices = @transform_0, window_bounds = array<i64: 32, 128>}, {pipeline_mode = #tpu.pipeline_mode<synchronous>, transform_indices = @transform_1, window_bounds = array<i64: 1, 128>}, {pipeline_mode = #tpu.pipeline_mode<synchronous>, transform_indices = @transform_2, window_bounds = array<i64: 1, 128>}, {pipeline_mode = #tpu.pipeline_mode<synchronous>, transform_indices = @transform_3, window_bounds = array<i64: 1, 128>}, {pipeline_mode = #tpu.pipeline_mode<synchronous>, transform_indices = @transform_4, window_bounds = array<i64: 1, 128>}, {transform_indices = @transform_5, window_bounds = array<i64: 32, 128>}]} {
    %c0 = arith.constant 0 : index
    %c0_0 = arith.constant 0 : index
    %0 = vector.load %arg2[%c0, %c0_0] : memref<1x128xf32, #tpu.memory_space<vmem>>, vector<1x128xf32>
    %cst = arith.constant 3.125000e-02 : f32
    %1 = vector.broadcast %cst : f32 to vector<1x128xf32>
    %2 = arith.mulf %0, %1 : vector<1x128xf32>
    %c0_1 = arith.constant 0 : index
    %c0_2 = arith.constant 0 : index
    %3 = vector.load %arg3[%c0_1, %c0_2] : memref<1x128xf32, #tpu.memory_space<vmem>>, vector<1x128xf32>
    %cst_3 = arith.constant 3.125000e-02 : f32
    %4 = vector.broadcast %cst_3 : f32 to vector<1x128xf32>
    %5 = arith.mulf %3, %4 : vector<1x128xf32>
    %6 = arith.mulf %2, %2 : vector<1x128xf32>
    %7 = arith.subf %5, %6 : vector<1x128xf32>
    %cst_4 = arith.constant 0.000000e+00 : f32
    %8 = vector.broadcast %cst_4 : f32 to vector<1x128xf32>
    %9 = arith.maximumf %7, %8 : vector<1x128xf32>
    %cst_5 = arith.constant 9.99999974E-6 : f32
    %10 = vector.broadcast %cst_5 : f32 to vector<1x128xf32>
    %11 = arith.addf %9, %10 : vector<1x128xf32>
    %12 = math.rsqrt %11 : vector<1x128xf32>
    %c0_6 = arith.constant 0 : index
    %c0_7 = arith.constant 0 : index
    %13 = vector.load %arg4[%c0_6, %c0_7] : memref<1x128xf32, #tpu.memory_space<vmem>>, vector<1x128xf32>
    %14 = arith.mulf %12, %13 : vector<1x128xf32>
    %c0_8 = arith.constant 0 : index
    %c0_9 = arith.constant 0 : index
    %15 = vector.load %arg1[%c0_8, %c0_9] : memref<32x128xbf16, #tpu.memory_space<vmem>>, vector<32x128xbf16>
    %16 = arith.extf %15 : vector<32x128xbf16> to vector<32x128xf32>
    %17 = vector.broadcast %2 : vector<1x128xf32> to vector<32x128xf32>
    %18 = arith.subf %16, %17 : vector<32x128xf32>
    %19 = vector.broadcast %14 : vector<1x128xf32> to vector<32x128xf32>
    %20 = arith.mulf %18, %19 : vector<32x128xf32>
    %c0_10 = arith.constant 0 : index
    %c0_11 = arith.constant 0 : index
    %21 = vector.load %arg5[%c0_10, %c0_11] : memref<1x128xf32, #tpu.memory_space<vmem>>, vector<1x128xf32>
    %22 = vector.broadcast %21 : vector<1x128xf32> to vector<32x128xf32>
    %23 = arith.addf %20, %22 : vector<32x128xf32>
    %cst_12 = arith.constant 0.000000e+00 : f32
    %24 = vector.broadcast %cst_12 : f32 to vector<32x128xf32>
    %25 = arith.cmpf ogt, %23, %24 : vector<32x128xf32>
    %cst_13 = arith.constant 2.000000e-01 : f32
    %26 = vector.broadcast %cst_13 : f32 to vector<32x128xf32>
    %27 = arith.mulf %26, %23 : vector<32x128xf32>
    %28 = arith.select %25, %23, %27 : vector<32x128xi1>, vector<32x128xf32>
    %29 = arith.truncf %28 : vector<32x128xf32> to vector<32x128xbf16>
    %c0_14 = arith.constant 0 : index
    %c0_15 = arith.constant 0 : index
    %30 = vector.load %arg6[%c0_14, %c0_15] : memref<32x128xbf16, #tpu.memory_space<vmem>>, vector<32x128xbf16>
    tpu.vector_store %arg6[%c0_14, %c0_15], %29 {strides = array<i32>} : memref<32x128xbf16, #tpu.memory_space<vmem>>, vector<32x128xbf16>,
    return
  }
  func.func @transform_0(%arg0: i32) -> (i32, i32) {
    %c0_i32 = arith.constant 0 : i32
    %c0_i32_0 = arith.constant 0 : i32
    return %arg0, %c0_i32 : i32, i32
  }
  func.func @transform_1(%arg0: i32) -> (i32, i32) {
    %c0_i32 = arith.constant 0 : i32
    %c0_i32_0 = arith.constant 0 : i32
    %c0_i32_1 = arith.constant 0 : i32
    return %c0_i32, %c0_i32_0 : i32, i32
  }
  func.func @transform_2(%arg0: i32) -> (i32, i32) {
    %c0_i32 = arith.constant 0 : i32
    %c0_i32_0 = arith.constant 0 : i32
    %c0_i32_1 = arith.constant 0 : i32
    return %c0_i32, %c0_i32_0 : i32, i32
  }
  func.func @transform_3(%arg0: i32) -> (i32, i32) {
    %c0_i32 = arith.constant 0 : i32
    %c0_i32_0 = arith.constant 0 : i32
    %c0_i32_1 = arith.constant 0 : i32
    return %c0_i32, %c0_i32_0 : i32, i32
  }
  func.func @transform_4(%arg0: i32) -> (i32, i32) {
    %c0_i32 = arith.constant 0 : i32
    %c0_i32_0 = arith.constant 0 : i32
    %c0_i32_1 = arith.constant 0 : i32
    return %c0_i32, %c0_i32_0 : i32, i32
  }
  func.func @transform_5(%arg0: i32) -> (i32, i32) {
    %c0_i32 = arith.constant 0 : i32
    %c0_i32_0 = arith.constant 0 : i32
    return %arg0, %c0_i32 : i32, i32
  }
}

module attributes {stable_mosaic.version = 11 : i64} {
  func.func @_bn_lrelu_kernel(%arg0: i32, %arg1: memref<16x128xbf16, #tpu.memory_space<vmem>>, %arg2: memref<1x128xf32, #tpu.memory_space<vmem>>, %arg3: memref<1x128xf32, #tpu.memory_space<vmem>>, %arg4: memref<1x128xf32, #tpu.memory_space<vmem>>, %arg5: memref<1x128xf32, #tpu.memory_space<vmem>>, %arg6: memref<16x128xbf16, #tpu.memory_space<vmem>>) attributes {dimension_semantics = [#tpu.dimension_semantics<parallel>], iteration_bounds = array<i64: 1>, scalar_prefetch = 0 : i64, scratch_operands = 0 : i64, tpu.core_type = #tpu.core_type<tc>, window_params = [{transform_indices = @transform_0, window_bounds = array<i64: 16, 128>}, {pipeline_mode = #tpu.pipeline_mode<synchronous>, transform_indices = @transform_1, window_bounds = array<i64: 1, 128>}, {pipeline_mode = #tpu.pipeline_mode<synchronous>, transform_indices = @transform_2, window_bounds = array<i64: 1, 128>}, {pipeline_mode = #tpu.pipeline_mode<synchronous>, transform_indices = @transform_3, window_bounds = array<i64: 1, 128>}, {pipeline_mode = #tpu.pipeline_mode<synchronous>, transform_indices = @transform_4, window_bounds = array<i64: 1, 128>}, {transform_indices = @transform_5, window_bounds = array<i64: 16, 128>}]} {
    %c0 = arith.constant 0 : index
    %c0_0 = arith.constant 0 : index
    %0 = vector.load %arg2[%c0, %c0_0] : memref<1x128xf32, #tpu.memory_space<vmem>>, vector<1x128xf32>
    %cst = arith.constant 1.250000e-01 : f32
    %1 = vector.broadcast %cst : f32 to vector<1x128xf32>
    %2 = arith.mulf %0, %1 : vector<1x128xf32>
    %c0_1 = arith.constant 0 : index
    %c0_2 = arith.constant 0 : index
    %3 = vector.load %arg3[%c0_1, %c0_2] : memref<1x128xf32, #tpu.memory_space<vmem>>, vector<1x128xf32>
    %cst_3 = arith.constant 1.250000e-01 : f32
    %4 = vector.broadcast %cst_3 : f32 to vector<1x128xf32>
    %5 = arith.mulf %3, %4 : vector<1x128xf32>
    %6 = arith.mulf %2, %2 : vector<1x128xf32>
    %7 = arith.subf %5, %6 : vector<1x128xf32>
    %cst_4 = arith.constant 0.000000e+00 : f32
    %8 = vector.broadcast %cst_4 : f32 to vector<1x128xf32>
    %9 = arith.maximumf %7, %8 : vector<1x128xf32>
    %cst_5 = arith.constant 9.99999974E-6 : f32
    %10 = vector.broadcast %cst_5 : f32 to vector<1x128xf32>
    %11 = arith.addf %9, %10 : vector<1x128xf32>
    %12 = math.rsqrt %11 : vector<1x128xf32>
    %c0_6 = arith.constant 0 : index
    %c0_7 = arith.constant 0 : index
    %13 = vector.load %arg4[%c0_6, %c0_7] : memref<1x128xf32, #tpu.memory_space<vmem>>, vector<1x128xf32>
    %14 = arith.mulf %12, %13 : vector<1x128xf32>
    %c0_8 = arith.constant 0 : index
    %c0_9 = arith.constant 0 : index
    %15 = vector.load %arg1[%c0_8, %c0_9] : memref<16x128xbf16, #tpu.memory_space<vmem>>, vector<16x128xbf16>
    %16 = arith.extf %15 : vector<16x128xbf16> to vector<16x128xf32>
    %17 = vector.broadcast %2 : vector<1x128xf32> to vector<16x128xf32>
    %18 = arith.subf %16, %17 : vector<16x128xf32>
    %19 = vector.broadcast %14 : vector<1x128xf32> to vector<16x128xf32>
    %20 = arith.mulf %18, %19 : vector<16x128xf32>
    %c0_10 = arith.constant 0 : index
    %c0_11 = arith.constant 0 : index
    %21 = vector.load %arg5[%c0_10, %c0_11] : memref<1x128xf32, #tpu.memory_space<vmem>>, vector<1x128xf32>
    %22 = vector.broadcast %21 : vector<1x128xf32> to vector<16x128xf32>
    %23 = arith.addf %20, %22 : vector<16x128xf32>
    %cst_12 = arith.constant 0.000000e+00 : f32
    %24 = vector.broadcast %cst_12 : f32 to vector<16x128xf32>
    %25 = arith.cmpf ogt, %23, %24 : vector<16x128xf32>
    %cst_13 = arith.constant 2.000000e-01 : f32
    %26 = vector.broadcast %cst_13 : f32 to vector<16x128xf32>
    %27 = arith.mulf %26, %23 : vector<16x128xf32>
    %28 = arith.select %25, %23, %27 : vector<16x128xi1>, vector<16x128xf32>
    %29 = arith.truncf %28 : vector<16x128xf32> to vector<16x128xbf16>
    %c0_14 = arith.constant 0 : index
    %c0_15 = arith.constant 0 : index
    %30 = vector.load %arg6[%c0_14, %c0_15] : memref<16x128xbf16, #tpu.memory_space<vmem>>, vector<16x128xbf16>
    tpu.vector_store %arg6[%c0_14, %c0_15], %29 {strides = array<i32>} : memref<16x128xbf16, #tpu.memory_space<vmem>>, vector<16x128xbf16>,
    return
  }
  func.func @transform_0(%arg0: i32) -> (i32, i32) {
    %c0_i32 = arith.constant 0 : i32
    %c0_i32_0 = arith.constant 0 : i32
    return %arg0, %c0_i32 : i32, i32
  }
  func.func @transform_1(%arg0: i32) -> (i32, i32) {
    %c0_i32 = arith.constant 0 : i32
    %c0_i32_0 = arith.constant 0 : i32
    %c0_i32_1 = arith.constant 0 : i32
    return %c0_i32, %c0_i32_0 : i32, i32
  }
  func.func @transform_2(%arg0: i32) -> (i32, i32) {
    %c0_i32 = arith.constant 0 : i32
    %c0_i32_0 = arith.constant 0 : i32
    %c0_i32_1 = arith.constant 0 : i32
    return %c0_i32, %c0_i32_0 : i32, i32
  }
  func.func @transform_3(%arg0: i32) -> (i32, i32) {
    %c0_i32 = arith.constant 0 : i32
    %c0_i32_0 = arith.constant 0 : i32
    %c0_i32_1 = arith.constant 0 : i32
    return %c0_i32, %c0_i32_0 : i32, i32
  }
  func.func @transform_4(%arg0: i32) -> (i32, i32) {
    %c0_i32 = arith.constant 0 : i32
    %c0_i32_0 = arith.constant 0 : i32
    %c0_i32_1 = arith.constant 0 : i32
    return %c0_i32, %c0_i32_0 : i32, i32
  }
  func.func @transform_5(%arg0: i32) -> (i32, i32) {
    %c0_i32 = arith.constant 0 : i32
    %c0_i32_0 = arith.constant 0 : i32
    return %arg0, %c0_i32 : i32, i32
  }
}

module attributes {stable_mosaic.version = 11 : i64} {
  func.func @_mm_kernel_1k(%arg0: i32, %arg1: memref<16x512xbf16, #tpu.memory_space<vmem>>, %arg2: memref<512x128xbf16, #tpu.memory_space<vmem>>, %arg3: memref<1x128xf32, #tpu.memory_space<vmem>>, %arg4: memref<16x128xbf16, #tpu.memory_space<vmem>>, %arg5: memref<1x1x128xf32, #tpu.memory_space<vmem>>, %arg6: memref<1x1x128xf32, #tpu.memory_space<vmem>>) attributes {dimension_semantics = [#tpu.dimension_semantics<parallel>], iteration_bounds = array<i64: 1>, scalar_prefetch = 0 : i64, scratch_operands = 0 : i64, tpu.core_type = #tpu.core_type<tc>, window_params = [{transform_indices = @transform_0, window_bounds = array<i64: 16, 512>}, {pipeline_mode = #tpu.pipeline_mode<synchronous>, transform_indices = @transform_1, window_bounds = array<i64: 512, 128>}, {pipeline_mode = #tpu.pipeline_mode<synchronous>, transform_indices = @transform_2, window_bounds = array<i64: 1, 128>}, {transform_indices = @transform_3, window_bounds = array<i64: 16, 128>}, {transform_indices = @transform_4, window_bounds = array<i64: 1, 1, 128>}, {transform_indices = @transform_5, window_bounds = array<i64: 1, 1, 128>}]} {
    %c0 = arith.constant 0 : index
    %c0_0 = arith.constant 0 : index
    %0 = vector.load %arg1[%c0, %c0_0] : memref<16x512xbf16, #tpu.memory_space<vmem>>, vector<16x512xbf16>
    %c0_1 = arith.constant 0 : index
    %c0_2 = arith.constant 0 : index
    %1 = vector.load %arg2[%c0_1, %c0_2] : memref<512x128xbf16, #tpu.memory_space<vmem>>, vector<512x128xbf16>
    %cst = arith.constant dense<0.000000e+00> : vector<16x128xf32>
    %2 = tpu.matmul %0, %1, %cst {dimension_numbers = #tpu.dot_dimension_numbers<[1], [0], [0], [1], [0, 0, 1, 1], [], []>} : vector<16x512xbf16>, vector<512x128xbf16>, vector<16x128xf32> -> vector<16x128xf32>
    %c0_3 = arith.constant 0 : index
    %c0_4 = arith.constant 0 : index
    %3 = vector.load %arg3[%c0_3, %c0_4] : memref<1x128xf32, #tpu.memory_space<vmem>>, vector<1x128xf32>
    %4 = vector.broadcast %3 : vector<1x128xf32> to vector<16x128xf32>
    %5 = arith.addf %2, %4 : vector<16x128xf32>
    %6 = tpu.iota {dimensions = array<i32: 0>} : vector<16x128xi32>
    %c16_i32 = arith.constant 16 : i32
    %7 = arith.muli %arg0, %c16_i32 : i32
    %8 = vector.broadcast %7 : i32 to vector<16x128xi32>
    %9 = arith.addi %6, %8 : vector<16x128xi32>
    %c8_i32 = arith.constant 8 : i32
    %10 = vector.broadcast %c8_i32 : i32 to vector<16x128xi32>
    %11 = arith.cmpi slt, %9, %10 : vector<16x128xi32>
    %cst_5 = arith.constant 0.000000e+00 : f32
    %12 = vector.broadcast %cst_5 : f32 to vector<16x128xf32>
    %13 = arith.select %11, %5, %12 : vector<16x128xi1>, vector<16x128xf32>
    %cst_6 = arith.constant dense<0.000000e+00> : vector<128xf32>
    %14 = vector.multi_reduction <add>, %13, %cst_6 [0] : vector<16x128xf32> to vector<128xf32>
    %15 = vector.shape_cast %14 : vector<128xf32> to vector<1x128xf32>
    %c0_7 = arith.constant 0 : index
    %c0_8 = arith.constant 0 : index
    %c0_9 = arith.constant 0 : index
    %16 = vector.load %arg5[%c0_7, %c0_8, %c0_9] : memref<1x1x128xf32, #tpu.memory_space<vmem>>, vector<1x1x128xf32>
    %17 = vector.shape_cast %16 : vector<1x1x128xf32> to vector<1x128xf32>
    %18 = vector.shape_cast %15 : vector<1x128xf32> to vector<1x1x128xf32>
    tpu.vector_store %arg5[%c0_7, %c0_8, %c0_9], %18 {strides = array<i32>} : memref<1x1x128xf32, #tpu.memory_space<vmem>>, vector<1x1x128xf32>,
    %19 = arith.mulf %13, %13 : vector<16x128xf32>
    %cst_10 = arith.constant dense<0.000000e+00> : vector<128xf32>
    %20 = vector.multi_reduction <add>, %19, %cst_10 [0] : vector<16x128xf32> to vector<128xf32>
    %21 = vector.shape_cast %20 : vector<128xf32> to vector<1x128xf32>
    %c0_11 = arith.constant 0 : index
    %c0_12 = arith.constant 0 : index
    %c0_13 = arith.constant 0 : index
    %22 = vector.load %arg6[%c0_11, %c0_12, %c0_13] : memref<1x1x128xf32, #tpu.memory_space<vmem>>, vector<1x1x128xf32>
    %23 = vector.shape_cast %22 : vector<1x1x128xf32> to vector<1x128xf32>
    %24 = vector.shape_cast %21 : vector<1x128xf32> to vector<1x1x128xf32>
    tpu.vector_store %arg6[%c0_11, %c0_12, %c0_13], %24 {strides = array<i32>} : memref<1x1x128xf32, #tpu.memory_space<vmem>>, vector<1x1x128xf32>,
    %25 = arith.truncf %5 : vector<16x128xf32> to vector<16x128xbf16>
    %c0_14 = arith.constant 0 : index
    %c0_15 = arith.constant 0 : index
    %26 = vector.load %arg4[%c0_14, %c0_15] : memref<16x128xbf16, #tpu.memory_space<vmem>>, vector<16x128xbf16>
    tpu.vector_store %arg4[%c0_14, %c0_15], %25 {strides = array<i32>} : memref<16x128xbf16, #tpu.memory_space<vmem>>, vector<16x128xbf16>,
    return
  }
  func.func @transform_0(%arg0: i32) -> (i32, i32) {
    %c0_i32 = arith.constant 0 : i32
    %c0_i32_0 = arith.constant 0 : i32
    return %arg0, %c0_i32 : i32, i32
  }
  func.func @transform_1(%arg0: i32) -> (i32, i32) {
    %c0_i32 = arith.constant 0 : i32
    %c0_i32_0 = arith.constant 0 : i32
    %c0_i32_1 = arith.constant 0 : i32
    return %c0_i32, %c0_i32_0 : i32, i32
  }
  func.func @transform_2(%arg0: i32) -> (i32, i32) {
    %c0_i32 = arith.constant 0 : i32
    %c0_i32_0 = arith.constant 0 : i32
    %c0_i32_1 = arith.constant 0 : i32
    return %c0_i32, %c0_i32_0 : i32, i32
  }
  func.func @transform_3(%arg0: i32) -> (i32, i32) {
    %c0_i32 = arith.constant 0 : i32
    %c0_i32_0 = arith.constant 0 : i32
    return %arg0, %c0_i32 : i32, i32
  }
  func.func @transform_4(%arg0: i32) -> (i32, i32, i32) {
    %c0_i32 = arith.constant 0 : i32
    %c0_i32_0 = arith.constant 0 : i32
    %c0_i32_1 = arith.constant 0 : i32
    return %arg0, %c0_i32, %c0_i32_0 : i32, i32, i32
  }
  func.func @transform_5(%arg0: i32) -> (i32, i32, i32) {
    %c0_i32 = arith.constant 0 : i32
    %c0_i32_0 = arith.constant 0 : i32
    %c0_i32_1 = arith.constant 0 : i32
    return %arg0, %c0_i32, %c0_i32_0 : i32, i32, i32
  }
}

module attributes {stable_mosaic.version = 11 : i64} {
  func.func @_tail_kernel(%arg0: i32, %arg1: memref<16x256xbf16, #tpu.memory_space<vmem>>, %arg2: memref<16x128xbf16, #tpu.memory_space<vmem>>, %arg3: memref<128x128xbf16, #tpu.memory_space<vmem>>, %arg4: memref<3x128xf32, #tpu.memory_space<vmem>>, %arg5: memref<256x128xbf16, #tpu.memory_space<vmem>>, %arg6: memref<128x128xbf16, #tpu.memory_space<vmem>>, %arg7: memref<3x128xf32, #tpu.memory_space<vmem>>, %arg8: memref<128x128xbf16, #tpu.memory_space<vmem>>, %arg9: memref<1x128xf32, #tpu.memory_space<vmem>>, %arg10: memref<16x128xf32, #tpu.memory_space<vmem>>, %arg11: memref<16x128xf32, #tpu.memory_space<vmem>>, %arg12: memref<16x128xbf16, #tpu.memory_space<vmem>>) attributes {dimension_semantics = [#tpu.dimension_semantics<arbitrary>], iteration_bounds = array<i64: 1>, scalar_prefetch = 0 : i64, scratch_operands = 2 : i64, tpu.core_type = #tpu.core_type<tc>, window_params = [{transform_indices = @transform_0, window_bounds = array<i64: 16, 256>}, {pipeline_mode = #tpu.pipeline_mode<synchronous>, transform_indices = @transform_1, window_bounds = array<i64: 16, 128>}, {pipeline_mode = #tpu.pipeline_mode<synchronous>, transform_indices = @transform_2, window_bounds = array<i64: 128, 128>}, {pipeline_mode = #tpu.pipeline_mode<synchronous>, transform_indices = @transform_3, window_bounds = array<i64: 3, 128>}, {transform_indices = @transform_4, window_bounds = array<i64: 256, 128>}, {pipeline_mode = #tpu.pipeline_mode<synchronous>, transform_indices = @transform_5, window_bounds = array<i64: 128, 128>}, {pipeline_mode = #tpu.pipeline_mode<synchronous>, transform_indices = @transform_6, window_bounds = array<i64: 3, 128>}, {pipeline_mode = #tpu.pipeline_mode<synchronous>, transform_indices = @transform_7, window_bounds = array<i64: 128, 128>}, {pipeline_mode = #tpu.pipeline_mode<synchronous>, transform_indices = @transform_8, window_bounds = array<i64: 1, 128>}, {pipeline_mode = #tpu.pipeline_mode<synchronous>, transform_indices = @transform_9, window_bounds = array<i64: 16, 128>}]} {
    %c0_i32 = arith.constant 0 : i32
    %0 = arith.cmpi eq, %arg0, %c0_i32 : i32
    %1 = arith.extui %0 : i1 to i32
    %c0_i32_0 = arith.constant 0 : i32
    %2 = arith.cmpi ne, %1, %c0_i32_0 : i32
    scf.if %2 {
      %cst_10 = arith.constant 0.000000e+00 : f32
      %12 = vector.broadcast %cst_10 : f32 to vector<16x128xf32>
      %c0_11 = arith.constant 0 : index
      %c0_12 = arith.constant 0 : index
      %13 = vector.load %arg11[%c0_11, %c0_12] : memref<16x128xf32, #tpu.memory_space<vmem>>, vector<16x128xf32>
      tpu.vector_store %arg11[%c0_11, %c0_12], %12 {strides = array<i32>} : memref<16x128xf32, #tpu.memory_space<vmem>>, vector<16x128xf32>,
      %c0_13 = arith.constant 0 : index
      %c0_14 = arith.constant 0 : index
      %14 = vector.load %arg2[%c0_13, %c0_14] : memref<16x128xbf16, #tpu.memory_space<vmem>>, vector<16x128xbf16>
      %c0_15 = arith.constant 0 : index
      %c0_16 = arith.constant 0 : index
      %15 = vector.load %arg3[%c0_15, %c0_16] : memref<128x128xbf16, #tpu.memory_space<vmem>>, vector<128x128xbf16>
      %cst_17 = arith.constant dense<0.000000e+00> : vector<16x128xf32>
      %16 = tpu.matmul %14, %15, %cst_17 {dimension_numbers = #tpu.dot_dimension_numbers<[1], [0], [0], [1], [0, 0, 1, 1], [], []>} : vector<16x128xbf16>, vector<128x128xbf16>, vector<16x128xf32> -> vector<16x128xf32>
      %c0_18 = arith.constant 0 : index
      %c0_19 = arith.constant 0 : index
      %17 = vector.load %arg4[%c0_18, %c0_19] : memref<3x128xf32, #tpu.memory_space<vmem>>, vector<1x128xf32>
      %18 = vector.broadcast %17 : vector<1x128xf32> to vector<16x128xf32>
      %19 = arith.addf %16, %18 : vector<16x128xf32>
      %c1 = arith.constant 1 : index
      %c0_20 = arith.constant 0 : index
      %20 = vector.load %arg4[%c1, %c0_20] : memref<3x128xf32, #tpu.memory_space<vmem>>, vector<1x128xf32>
      %c2 = arith.constant 2 : index
      %c0_21 = arith.constant 0 : index
      %21 = vector.load %arg4[%c2, %c0_21] : memref<3x128xf32, #tpu.memory_space<vmem>>, vector<1x128xf32>
      %22 = tpu.iota {dimensions = array<i32: 0>} : vector<16x128xi32>
      %c2_i32 = arith.constant 2 : i32
      %23 = vector.broadcast %c2_i32 : i32 to vector<16x128xi32>
      %24 = arith.cmpi slt, %22, %23 : vector<16x128xi32>
      %25 = arith.extui %24 : vector<16x128xi1> to vector<16x128xi32>
      %26 = arith.sitofp %25 : vector<16x128xi32> to vector<16x128xf32>
      %27 = arith.mulf %19, %26 : vector<16x128xf32>
      %cst_22 = arith.constant dense<0.000000e+00> : vector<128xf32>
      %28 = vector.multi_reduction <add>, %27, %cst_22 [0] : vector<16x128xf32> to vector<128xf32>
      %29 = vector.shape_cast %28 : vector<128xf32> to vector<1x128xf32>
      %cst_23 = arith.constant 5.000000e-01 : f32
      %30 = vector.broadcast %cst_23 : f32 to vector<1x128xf32>
      %31 = arith.mulf %29, %30 : vector<1x128xf32>
      %32 = vector.broadcast %31 : vector<1x128xf32> to vector<16x128xf32>
      %33 = arith.subf %19, %32 : vector<16x128xf32>
      %34 = arith.mulf %33, %26 : vector<16x128xf32>
      %35 = arith.mulf %34, %34 : vector<16x128xf32>
      %cst_24 = arith.constant dense<0.000000e+00> : vector<128xf32>
      %36 = vector.multi_reduction <add>, %35, %cst_24 [0] : vector<16x128xf32> to vector<128xf32>
      %37 = vector.shape_cast %36 : vector<128xf32> to vector<1x128xf32>
      %cst_25 = arith.constant 5.000000e-01 : f32
      %38 = vector.broadcast %cst_25 : f32 to vector<1x128xf32>
      %39 = arith.mulf %37, %38 : vector<1x128xf32>
      %40 = vector.broadcast %31 : vector<1x128xf32> to vector<16x128xf32>
      %41 = arith.subf %19, %40 : vector<16x128xf32>
      %cst_26 = arith.constant 9.99999974E-6 : f32
      %42 = vector.broadcast %cst_26 : f32 to vector<1x128xf32>
      %43 = arith.addf %39, %42 : vector<1x128xf32>
      %44 = math.rsqrt %43 : vector<1x128xf32>
      %45 = vector.broadcast %44 : vector<1x128xf32> to vector<16x128xf32>
      %46 = arith.mulf %41, %45 : vector<16x128xf32>
      %47 = vector.broadcast %20 : vector<1x128xf32> to vector<16x128xf32>
      %48 = arith.mulf %46, %47 : vector<16x128xf32>
      %49 = vector.broadcast %21 : vector<1x128xf32> to vector<16x128xf32>
      %50 = arith.addf %48, %49 : vector<16x128xf32>
      %cst_27 = arith.constant 0.000000e+00 : f32
      %51 = vector.broadcast %cst_27 : f32 to vector<16x128xf32>
      %52 = arith.cmpf ogt, %50, %51 : vector<16x128xf32>
      %cst_28 = arith.constant 2.000000e-01 : f32
      %53 = vector.broadcast %cst_28 : f32 to vector<16x128xf32>
      %54 = arith.mulf %53, %50 : vector<16x128xf32>
      %55 = arith.select %52, %50, %54 : vector<16x128xi1>, vector<16x128xf32>
      %56 = arith.truncf %55 : vector<16x128xf32> to vector<16x128xbf16>
      %c0_29 = arith.constant 0 : index
      %c0_30 = arith.constant 0 : index
      %57 = vector.load %arg12[%c0_29, %c0_30] : memref<16x128xbf16, #tpu.memory_space<vmem>>, vector<16x128xbf16>
      tpu.vector_store %arg12[%c0_29, %c0_30], %56 {strides = array<i32>} : memref<16x128xbf16, #tpu.memory_space<vmem>>, vector<16x128xbf16>,
    } else {
    }
    %c0 = arith.constant 0 : index
    %c0_1 = arith.constant 0 : index
    %3 = vector.load %arg11[%c0, %c0_1] : memref<16x128xf32, #tpu.memory_space<vmem>>, vector<16x128xf32>
    %c0_2 = arith.constant 0 : index
    %c0_3 = arith.constant 0 : index
    %4 = vector.load %arg1[%c0_2, %c0_3] : memref<16x256xbf16, #tpu.memory_space<vmem>>, vector<16x256xbf16>
    %c0_4 = arith.constant 0 : index
    %c0_5 = arith.constant 0 : index
    %5 = vector.load %arg5[%c0_4, %c0_5] : memref<256x128xbf16, #tpu.memory_space<vmem>>, vector<256x128xbf16>
    %cst = arith.constant dense<0.000000e+00> : vector<16x128xf32>
    %6 = tpu.matmul %4, %5, %cst {dimension_numbers = #tpu.dot_dimension_numbers<[1], [0], [0], [1], [0, 0, 1, 1], [], []>} : vector<16x256xbf16>, vector<256x128xbf16>, vector<16x128xf32> -> vector<16x128xf32>
    %7 = arith.addf %3, %6 : vector<16x128xf32>
    %c0_6 = arith.constant 0 : index
    %c0_7 = arith.constant 0 : index
    %8 = vector.load %arg11[%c0_6, %c0_7] : memref<16x128xf32, #tpu.memory_space<vmem>>, vector<16x128xf32>
    tpu.vector_store %arg11[%c0_6, %c0_7], %7 {strides = array<i32>} : memref<16x128xf32, #tpu.memory_space<vmem>>, vector<16x128xf32>,
    %c0_i32_8 = arith.constant 0 : i32
    %9 = arith.cmpi eq, %arg0, %c0_i32_8 : i32
    %10 = arith.extui %9 : i1 to i32
    %c0_i32_9 = arith.constant 0 : i32
    %11 = arith.cmpi ne, %10, %c0_i32_9 : i32
    scf.if %11 {
      %c0_10 = arith.constant 0 : index
      %c0_11 = arith.constant 0 : index
      %12 = vector.load %arg11[%c0_10, %c0_11] : memref<16x128xf32, #tpu.memory_space<vmem>>, vector<16x128xf32>
      %c0_12 = arith.constant 0 : index
      %c0_13 = arith.constant 0 : index
      %13 = vector.load %arg12[%c0_12, %c0_13] : memref<16x128xbf16, #tpu.memory_space<vmem>>, vector<16x128xbf16>
      %c0_14 = arith.constant 0 : index
      %c0_15 = arith.constant 0 : index
      %14 = vector.load %arg6[%c0_14, %c0_15] : memref<128x128xbf16, #tpu.memory_space<vmem>>, vector<128x128xbf16>
      %cst_16 = arith.constant dense<0.000000e+00> : vector<16x128xf32>
      %15 = tpu.matmul %13, %14, %cst_16 {dimension_numbers = #tpu.dot_dimension_numbers<[1], [0], [0], [1], [0, 0, 1, 1], [], []>} : vector<16x128xbf16>, vector<128x128xbf16>, vector<16x128xf32> -> vector<16x128xf32>
      %16 = arith.addf %12, %15 : vector<16x128xf32>
      %c0_17 = arith.constant 0 : index
      %c0_18 = arith.constant 0 : index
      %17 = vector.load %arg7[%c0_17, %c0_18] : memref<3x128xf32, #tpu.memory_space<vmem>>, vector<1x128xf32>
      %18 = vector.broadcast %17 : vector<1x128xf32> to vector<16x128xf32>
      %19 = arith.addf %16, %18 : vector<16x128xf32>
      %c1 = arith.constant 1 : index
      %c0_19 = arith.constant 0 : index
      %20 = vector.load %arg7[%c1, %c0_19] : memref<3x128xf32, #tpu.memory_space<vmem>>, vector<1x128xf32>
      %c2 = arith.constant 2 : index
      %c0_20 = arith.constant 0 : index
      %21 = vector.load %arg7[%c2, %c0_20] : memref<3x128xf32, #tpu.memory_space<vmem>>, vector<1x128xf32>
      %22 = tpu.iota {dimensions = array<i32: 0>} : vector<16x128xi32>
      %c2_i32 = arith.constant 2 : i32
      %23 = vector.broadcast %c2_i32 : i32 to vector<16x128xi32>
      %24 = arith.cmpi slt, %22, %23 : vector<16x128xi32>
      %25 = arith.extui %24 : vector<16x128xi1> to vector<16x128xi32>
      %26 = arith.sitofp %25 : vector<16x128xi32> to vector<16x128xf32>
      %27 = arith.mulf %19, %26 : vector<16x128xf32>
      %cst_21 = arith.constant dense<0.000000e+00> : vector<128xf32>
      %28 = vector.multi_reduction <add>, %27, %cst_21 [0] : vector<16x128xf32> to vector<128xf32>
      %29 = vector.shape_cast %28 : vector<128xf32> to vector<1x128xf32>
      %cst_22 = arith.constant 5.000000e-01 : f32
      %30 = vector.broadcast %cst_22 : f32 to vector<1x128xf32>
      %31 = arith.mulf %29, %30 : vector<1x128xf32>
      %32 = vector.broadcast %31 : vector<1x128xf32> to vector<16x128xf32>
      %33 = arith.subf %19, %32 : vector<16x128xf32>
      %34 = arith.mulf %33, %26 : vector<16x128xf32>
      %35 = arith.mulf %34, %34 : vector<16x128xf32>
      %cst_23 = arith.constant dense<0.000000e+00> : vector<128xf32>
      %36 = vector.multi_reduction <add>, %35, %cst_23 [0] : vector<16x128xf32> to vector<128xf32>
      %37 = vector.shape_cast %36 : vector<128xf32> to vector<1x128xf32>
      %cst_24 = arith.constant 5.000000e-01 : f32
      %38 = vector.broadcast %cst_24 : f32 to vector<1x128xf32>
      %39 = arith.mulf %37, %38 : vector<1x128xf32>
      %40 = vector.broadcast %31 : vector<1x128xf32> to vector<16x128xf32>
      %41 = arith.subf %19, %40 : vector<16x128xf32>
      %cst_25 = arith.constant 9.99999974E-6 : f32
      %42 = vector.broadcast %cst_25 : f32 to vector<1x128xf32>
      %43 = arith.addf %39, %42 : vector<1x128xf32>
      %44 = math.rsqrt %43 : vector<1x128xf32>
      %45 = vector.broadcast %44 : vector<1x128xf32> to vector<16x128xf32>
      %46 = arith.mulf %41, %45 : vector<16x128xf32>
      %47 = vector.broadcast %20 : vector<1x128xf32> to vector<16x128xf32>
      %48 = arith.mulf %46, %47 : vector<16x128xf32>
      %49 = vector.broadcast %21 : vector<1x128xf32> to vector<16x128xf32>
      %50 = arith.addf %48, %49 : vector<16x128xf32>
      %cst_26 = arith.constant 0.000000e+00 : f32
      %51 = vector.broadcast %cst_26 : f32 to vector<16x128xf32>
      %52 = arith.cmpf ogt, %50, %51 : vector<16x128xf32>
      %cst_27 = arith.constant 2.000000e-01 : f32
      %53 = vector.broadcast %cst_27 : f32 to vector<16x128xf32>
      %54 = arith.mulf %53, %50 : vector<16x128xf32>
      %55 = arith.select %52, %50, %54 : vector<16x128xi1>, vector<16x128xf32>
      %56 = arith.truncf %55 : vector<16x128xf32> to vector<16x128xbf16>
      %c0_28 = arith.constant 0 : index
      %c0_29 = arith.constant 0 : index
      %57 = vector.load %arg8[%c0_28, %c0_29] : memref<128x128xbf16, #tpu.memory_space<vmem>>, vector<128x128xbf16>
      %cst_30 = arith.constant dense<0.000000e+00> : vector<16x128xf32>
      %58 = tpu.matmul %56, %57, %cst_30 {dimension_numbers = #tpu.dot_dimension_numbers<[1], [0], [0], [1], [0, 0, 1, 1], [], []>} : vector<16x128xbf16>, vector<128x128xbf16>, vector<16x128xf32> -> vector<16x128xf32>
      %c0_31 = arith.constant 0 : index
      %c0_32 = arith.constant 0 : index
      %59 = vector.load %arg9[%c0_31, %c0_32] : memref<1x128xf32, #tpu.memory_space<vmem>>, vector<1x128xf32>
      %60 = vector.broadcast %59 : vector<1x128xf32> to vector<16x128xf32>
      %61 = arith.addf %58, %60 : vector<16x128xf32>
      %cst_33 = arith.constant 0.000000e+00 : f32
      %62 = vector.broadcast %cst_33 : f32 to vector<16x128xf32>
      %63 = arith.subf %62, %61 : vector<16x128xf32>
      %64 = math.exp %63 : vector<16x128xf32>
      %cst_34 = arith.constant 1.000000e+00 : f32
      %65 = vector.broadcast %cst_34 : f32 to vector<16x128xf32>
      %66 = arith.addf %65, %64 : vector<16x128xf32>
      %cst_35 = arith.constant 1.000000e+00 : f32
      %67 = vector.broadcast %cst_35 : f32 to vector<16x128xf32>
      %68 = arith.divf %67, %66 : vector<16x128xf32>
      %c0_36 = arith.constant 0 : index
      %c0_37 = arith.constant 0 : index
      %69 = vector.load %arg10[%c0_36, %c0_37] : memref<16x128xf32, #tpu.memory_space<vmem>>, vector<16x128xf32>
      tpu.vector_store %arg10[%c0_36, %c0_37], %68 {strides = array<i32>} : memref<16x128xf32, #tpu.memory_space<vmem>>, vector<16x128xf32>,
    } else {
    }
    return
  }
  func.func @transform_0(%arg0: i32) -> (i32, i32) {
    %c0_i32 = arith.constant 0 : i32
    %c0_i32_0 = arith.constant 0 : i32
    return %c0_i32, %arg0 : i32, i32
  }
  func.func @transform_1(%arg0: i32) -> (i32, i32) {
    %c0_i32 = arith.constant 0 : i32
    %c0_i32_0 = arith.constant 0 : i32
    %c0_i32_1 = arith.constant 0 : i32
    return %c0_i32, %c0_i32_0 : i32, i32
  }
  func.func @transform_2(%arg0: i32) -> (i32, i32) {
    %c0_i32 = arith.constant 0 : i32
    %c0_i32_0 = arith.constant 0 : i32
    %c0_i32_1 = arith.constant 0 : i32
    return %c0_i32, %c0_i32_0 : i32, i32
  }
  func.func @transform_3(%arg0: i32) -> (i32, i32) {
    %c0_i32 = arith.constant 0 : i32
    %c0_i32_0 = arith.constant 0 : i32
    %c0_i32_1 = arith.constant 0 : i32
    return %c0_i32, %c0_i32_0 : i32, i32
  }
  func.func @transform_4(%arg0: i32) -> (i32, i32) {
    %c0_i32 = arith.constant 0 : i32
    %c0_i32_0 = arith.constant 0 : i32
    return %arg0, %c0_i32 : i32, i32
  }
  func.func @transform_5(%arg0: i32) -> (i32, i32) {
    %c0_i32 = arith.constant 0 : i32
    %c0_i32_0 = arith.constant 0 : i32
    %c0_i32_1 = arith.constant 0 : i32
    return %c0_i32, %c0_i32_0 : i32, i32
  }
  func.func @transform_6(%arg0: i32) -> (i32, i32) {
    %c0_i32 = arith.constant 0 : i32
    %c0_i32_0 = arith.constant 0 : i32
    %c0_i32_1 = arith.constant 0 : i32
    return %c0_i32, %c0_i32_0 : i32, i32
  }
  func.func @transform_7(%arg0: i32) -> (i32, i32) {
    %c0_i32 = arith.constant 0 : i32
    %c0_i32_0 = arith.constant 0 : i32
    %c0_i32_1 = arith.constant 0 : i32
    return %c0_i32, %c0_i32_0 : i32, i32
  }
  func.func @transform_8(%arg0: i32) -> (i32, i32) {
    %c0_i32 = arith.constant 0 : i32
    %c0_i32_0 = arith.constant 0 : i32
    %c0_i32_1 = arith.constant 0 : i32
    return %c0_i32, %c0_i32_0 : i32, i32
  }
  func.func @transform_9(%arg0: i32) -> (i32, i32) {
    %c0_i32 = arith.constant 0 : i32
    %c0_i32_0 = arith.constant 0 : i32
    %c0_i32_1 = arith.constant 0 : i32
    return %c0_i32, %c0_i32_0 : i32, i32
  }
}

</mosaic_0001>

<llo_original>
// kernel: discriminator_forward.8
$region0: #{discriminator_forward.8}
  #allocation0 [shape = 'u32[]', space=smem, size = 0x4, offset = 0x4, fixed_abs, tag = 'smem constant byte address 0x4 - core index']
  #allocation1 [shape = 'u32[144,128]{1,0:T(1,128)}', space=vmem, size = 0x12000, scoped, tag = 'internal scratch']
  %s0 = inlined_call_operand.vmem [shape: bf16[512,128], index: 0, kind: input, shape index: {}]
  %s1 = inlined_call_operand.vmem [shape: bf16[128,128], index: 1, kind: input, shape index: {}]
  %s2 = inlined_call_operand.vmem [shape: f32[1,128], index: 2, kind: input, shape index: {}]
  %s3 = inlined_call_operand.vmem [shape: bf16[512,128], index: 3, kind: output, shape index: {}]
  %s4 = sld [smem:[#allocation0]]
  $region22: #{discriminator_forward.8} parent=0
    _
  %s6 = ssub.s32 1, %s4
  %s7 = scalar_select 0, %s6, %s4
  // Predicated region
  $region2: #{discriminator_forward.8} parent=0 // pred_check
    _
  $region3: #{discriminator_forward.8} parent=0 // pred_check_branch
    %9 = sbr.rel (0) target = $region5
  $region4: #{discriminator_forward.8} parent=0 // pred_region
    _
  $region5: #{discriminator_forward.8} parent=0 // pred_fallthru
    _
  // Predicated region
  $region6: #{discriminator_forward.8} parent=0 // pred_check
    _
  $region7: #{discriminator_forward.8} parent=0 // pred_check_branch
    %11 = sbr.rel (0) target = $region9
  $region8: #{discriminator_forward.8} parent=0 // pred_region
    _
  $region9: #{discriminator_forward.8} parent=0 // pred_fallthru
    _
  // Predicated region
  $region10: #{discriminator_forward.8} parent=0 // pred_check
    _
  $region11: #{discriminator_forward.8} parent=0 // pred_check_branch
    %13 = sbr.rel (0) target = $region13
  $region12: #{discriminator_forward.8} parent=0 // pred_region
    _
  $region13: #{discriminator_forward.8} parent=0 // pred_fallthru
    _
  %v15 = vld [vmem:[%s0] sm:$0xf]
  %v16 = vld [vmem:[%s0 + $0x4] sm:$0xf]
  %v17 = vld [vmem:[%s0 + $0x8] sm:$0xf]
  %v18 = vld [vmem:[%s0 + $0xc] sm:$0xf]
  %v19 = vld [vmem:[%s0 + $0x10] sm:$0xf]
  %v20 = vld [vmem:[%s0 + $0x14] sm:$0xf]
  %v21 = vld [vmem:[%s0 + $0x18] sm:$0xf]
  %v22 = vld [vmem:[%s0 + $0x1c] sm:$0xf]
  %v23 = vld [vmem:[%s0 + $0x20] sm:$0xf]
  %v24 = vld [vmem:[%s0 + $0x24] sm:$0xf]
  %v25 = vld [vmem:[%s0 + $0x28] sm:$0xf]
  %v26 = vld [vmem:[%s0 + $0x2c] sm:$0xf]
  %v27 = vld [vmem:[%s0 + $0x30] sm:$0xf]
  %v28 = vld [vmem:[%s0 + $0x34] sm:$0xf]
  %v29 = vld [vmem:[%s0 + $0x38] sm:$0xf]
  %v30 = vld [vmem:[%s0 + $0x3c] sm:$0xf]
  %v31 = vld [vmem:[%s0 + $0x40] sm:$0xf]
  %v32 = vld [vmem:[%s0 + $0x44] sm:$0xf]
  %v33 = vld [vmem:[%s0 + $0x48] sm:$0xf]
  %v34 = vld [vmem:[%s0 + $0x4c] sm:$0xf]
  %v35 = vld [vmem:[%s0 + $0x50] sm:$0xf]
  %v36 = vld [vmem:[%s0 + $0x54] sm:$0xf]
  %v37 = vld [vmem:[%s0 + $0x58] sm:$0xf]
  %v38 = vld [vmem:[%s0 + $0x5c] sm:$0xf]
  %v39 = vld [vmem:[%s0 + $0x60] sm:$0xf]
  %v40 = vld [vmem:[%s0 + $0x64] sm:$0xf]
  %v41 = vld [vmem:[%s0 + $0x68] sm:$0xf]
  %v42 = vld [vmem:[%s0 + $0x6c] sm:$0xf]
  %v43 = vld [vmem:[%s0 + $0x70] sm:$0xf]
  %v44 = vld [vmem:[%s0 + $0x74] sm:$0xf]
  %v45 = vld [vmem:[%s0 + $0x78] sm:$0xf]
  %v46 = vld [vmem:[%s0 + $0x7c] sm:$0xf]
  %v47 = vld [vmem:[%s0 + $0x80] sm:$0xf]
  %v48 = vld [vmem:[%s0 + $0x84] sm:$0xf]
  %v49 = vld [vmem:[%s0 + $0x88] sm:$0xf]
  %v50 = vld [vmem:[%s0 + $0x8c] sm:$0xf]
  %v51 = vld [vmem:[%s0 + $0x90] sm:$0xf]
  %v52 = vld [vmem:[%s0 + $0x94] sm:$0xf]
  %v53 = vld [vmem:[%s0 + $0x98] sm:$0xf]
  %v54 = vld [vmem:[%s0 + $0x9c] sm:$0xf]
  %v55 = vld [vmem:[%s0 + $0xa0] sm:$0xf]
  %v56 = vld [vmem:[%s0 + $0xa4] sm:$0xf]
  %v57 = vld [vmem:[%s0 + $0xa8] sm:$0xf]
  %v58 = vld [vmem:[%s0 + $0xac] sm:$0xf]
  %v59 = vld [vmem:[%s0 + $0xb0] sm:$0xf]
  %v60 = vld [vmem:[%s0 + $0xb4] sm:$0xf]
  %v61 = vld [vmem:[%s0 + $0xb8] sm:$0xf]
  %v62 = vld [vmem:[%s0 + $0xbc] sm:$0xf]
  %v63 = vld [vmem:[%s0 + $0xc0] sm:$0xf]
  %v64 = vld [vmem:[%s0 + $0xc4] sm:$0xf]
  %v65 = vld [vmem:[%s0 + $0xc8] sm:$0xf]
  %v66 = vld [vmem:[%s0 + $0xcc] sm:$0xf]
  %v67 = vld [vmem:[%s0 + $0xd0] sm:$0xf]
  %v68 = vld [vmem:[%s0 + $0xd4] sm:$0xf]
  %v69 = vld [vmem:[%s0 + $0xd8] sm:$0xf]
  %v70 = vld [vmem:[%s0 + $0xdc] sm:$0xf]
  %v71 = vld [vmem:[%s0 + $0xe0] sm:$0xf]
  %v72 = vld [vmem:[%s0 + $0xe4] sm:$0xf]
  %v73 = vld [vmem:[%s0 + $0xe8] sm:$0xf]
  %v74 = vld [vmem:[%s0 + $0xec] sm:$0xf]
  %v75 = vld [vmem:[%s0 + $0xf0] sm:$0xf]
  %v76 = vld [vmem:[%s0 + $0xf4] sm:$0xf]
  %v77 = vld [vmem:[%s0 + $0xf8] sm:$0xf]
  %v78 = vld [vmem:[%s0 + $0xfc] sm:$0xf]
  %v79 = vld [vmem:[%s1] sm:$0xf]
  %v80 = vld [vmem:[%s1 + $0x4] sm:$0xf]
  %v81 = vld [vmem:[%s1 + $0x8] sm:$0xf]
  %v82 = vld [vmem:[%s1 + $0xc] sm:$0xf]
  %v83 = vld [vmem:[%s1 + $0x10] sm:$0xf]
  %v84 = vld [vmem:[%s1 + $0x14] sm:$0xf]
  %v85 = vld [vmem:[%s1 + $0x18] sm:$0xf]
  %v86 = vld [vmem:[%s1 + $0x1c] sm:$0xf]
  %v87 = vld [vmem:[%s1 + $0x20] sm:$0xf]
  %v88 = vld [vmem:[%s1 + $0x24] sm:$0xf]
  %v89 = vld [vmem:[%s1 + $0x28] sm:$0xf]
  %v90 = vld [vmem:[%s1 + $0x2c] sm:$0xf]
  %v91 = vld [vmem:[%s1 + $0x30] sm:$0xf]
  %v92 = vld [vmem:[%s1 + $0x34] sm:$0xf]
  %v93 = vld [vmem:[%s1 + $0x38] sm:$0xf]
  %v94 = vld [vmem:[%s1 + $0x3c] sm:$0xf]
  %v95 = vld [vmem:[%s2] sm:$0x1]
  %v97 = vlaneseq
  %v98 = vshrl.u32 %v97, 7
  %v99 = vsub.s32 0, %v98
  %v100 = vrot.slane %v95, %v99
  %v166 = vunpack.c.l.b16 %v15
  %v167 = vunpack.c.l.b16 %v16
  %v168 = vunpack.c.l.b16 %v17
  %v169 = vunpack.c.l.b16 %v18
  %v170 = vunpack.c.l.b16 %v19
  %v171 = vunpack.c.l.b16 %v20
  %v172 = vunpack.c.l.b16 %v21
  %v173 = vunpack.c.l.b16 %v22
  %v174 = vunpack.c.l.b16 %v23
  %v175 = vunpack.c.l.b16 %v24
  %v176 = vunpack.c.l.b16 %v25
  %v177 = vunpack.c.l.b16 %v26
  %v178 = vunpack.c.l.b16 %v27
  %v179 = vunpack.c.l.b16 %v28
  %v180 = vunpack.c.l.b16 %v29
  %v181 = vunpack.c.l.b16 %v30
  %v182 = vunpack.c.l.b16 %v31
  %v183 = vunpack.c.l.b16 %v32
  %v184 = vunpack.c.l.b16 %v33
  %v185 = vunpack.c.l.b16 %v34
  %v186 = vunpack.c.l.b16 %v35
  %v187 = vunpack.c.l.b16 %v36
  %v188 = vunpack.c.l.b16 %v37
  %v189 = vunpack.c.l.b16 %v38
  %v190 = vunpack.c.l.b16 %v39
  %v191 = vunpack.c.l.b16 %v40
  %v192 = vunpack.c.l.b16 %v41
  %v193 = vunpack.c.l.b16 %v42
  %v194 = vunpack.c.l.b16 %v43
  %v195 = vunpack.c.l.b16 %v44
  %v196 = vunpack.c.l.b16 %v45
  %v197 = vunpack.c.l.b16 %v46
  %v198 = vunpack.c.l.b16 %v47
  %v199 = vunpack.c.l.b16 %v48
  %v200 = vunpack.c.l.b16 %v49
  %v201 = vunpack.c.l.b16 %v50
  %v202 = vunpack.c.l.b16 %v51
  %v203 = vunpack.c.l.b16 %v52
  %v204 = vunpack.c.l.b16 %v53
  %v205 = vunpack.c.l.b16 %v54
  %v206 = vunpack.c.l.b16 %v55
  %v207 = vunpack.c.l.b16 %v56
  %v208 = vunpack.c.l.b16 %v57
  %v209 = vunpack.c.l.b16 %v58
  %v210 = vunpack.c.l.b16 %v59
  %v211 = vunpack.c.l.b16 %v60
  %v212 = vunpack.c.l.b16 %v61
  %v213 = vunpack.c.l.b16 %v62
  %v214 = vunpack.c.l.b16 %v63
  %v215 = vunpack.c.l.b16 %v64
  %v216 = vunpack.c.l.b16 %v65
  %v217 = vunpack.c.l.b16 %v66
  %v218 = vunpack.c.l.b16 %v67
  %v219 = vunpack.c.l.b16 %v68
  %v220 = vunpack.c.l.b16 %v69
  %v221 = vunpack.c.l.b16 %v70
  %v222 = vunpack.c.l.b16 %v71
  %v223 = vunpack.c.l.b16 %v72
  %v224 = vunpack.c.l.b16 %v73
  %v225 = vunpack.c.l.b16 %v74
  %v226 = vunpack.c.l.b16 %v75
  %v227 = vunpack.c.l.b16 %v76
  %v228 = vunpack.c.l.b16 %v77
  %v229 = vunpack.c.l.b16 %v78
  %v230 = vpack.c.b16 %v167, %v166
  %v231 = vpack.c.b16 %v169, %v168
  %v232 = vpack.c.b16 %v171, %v170
  %v233 = vpack.c.b16 %v173, %v172
  %v234 = vpack.c.b16 %v175, %v174
  %v235 = vpack.c.b16 %v177, %v176
  %v236 = vpack.c.b16 %v179, %v178
  %v237 = vpack.c.b16 %v181, %v180
  %v238 = vpack.c.b16 %v183, %v182
  %v239 = vpack.c.b16 %v185, %v184
  %v240 = vpack.c.b16 %v187, %v186
  %v241 = vpack.c.b16 %v189, %v188
  %v242 = vpack.c.b16 %v191, %v190
  %v243 = vpack.c.b16 %v193, %v192
  %v244 = vpack.c.b16 %v195, %v194
  %v245 = vpack.c.b16 %v197, %v196
  %v246 = vpack.c.b16 %v199, %v198
  %v247 = vpack.c.b16 %v201, %v200
  %v248 = vpack.c.b16 %v203, %v202
  %v249 = vpack.c.b16 %v205, %v204
  %v250 = vpack.c.b16 %v207, %v206
  %v251 = vpack.c.b16 %v209, %v208
  %v252 = vpack.c.b16 %v211, %v210
  %v253 = vpack.c.b16 %v213, %v212
  %v254 = vpack.c.b16 %v215, %v214
  %v255 = vpack.c.b16 %v217, %v216
  %v256 = vpack.c.b16 %v219, %v218
  %v257 = vpack.c.b16 %v221, %v220
  %v258 = vpack.c.b16 %v223, %v222
  %v259 = vpack.c.b16 %v225, %v224
  %v260 = vpack.c.b16 %v227, %v226
  %v261 = vpack.c.b16 %v229, %v228
  %v310 = vunpack.c.l.b16 %v79
  %v311 = vunpack.c.l.b16 %v80
  %v312 = vunpack.c.l.b16 %v81
  %v313 = vunpack.c.l.b16 %v82
  %v314 = vunpack.c.l.b16 %v83
  %v315 = vunpack.c.l.b16 %v84
  %v316 = vunpack.c.l.b16 %v85
  %v317 = vunpack.c.l.b16 %v86
  %v318 = vunpack.c.l.b16 %v87
  %v319 = vunpack.c.l.b16 %v88
  %v320 = vunpack.c.l.b16 %v89
  %v321 = vunpack.c.l.b16 %v90
  %v322 = vunpack.c.l.b16 %v91
  %v323 = vunpack.c.l.b16 %v92
  %v324 = vunpack.c.l.b16 %v93
  %v325 = vunpack.c.l.b16 %v94
  %v326 = vpack.c.b16 %v311, %v310
  %v327 = vpack.c.b16 %v313, %v312
  %v328 = vpack.c.b16 %v315, %v314
  %v329 = vpack.c.b16 %v317, %v316
  %v330 = vpack.c.b16 %v319, %v318
  %v331 = vpack.c.b16 %v321, %v320
  %v332 = vpack.c.b16 %v323, %v322
  %v333 = vpack.c.b16 %v325, %v324
  %342 = vmatprep.subr.bf16.mxu0 0
  %343 = vmatpush1.bf16.msra.mxu0 %v333
  %344 = vmatprep.subr.bf16.mxu0 0
  %345 = vmatpush1.bf16.msra.mxu0 %v332
  %346 = vmatprep.subr.bf16.mxu0 0
  %347 = vmatpush1.bf16.msra.mxu0 %v331
  %348 = vmatprep.subr.bf16.mxu0 0
  %349 = vmatpush1.bf16.msra.mxu0 %v330
  %350 = vmatprep.subr.bf16.mxu0 0
  %351 = vmatpush1.bf16.msra.mxu0 %v329
  %352 = vmatprep.subr.bf16.mxu0 0
  %353 = vmatpush1.bf16.msra.mxu0 %v328
  %354 = vmatprep.subr.bf16.mxu0 0
  %355 = vmatpush1.bf16.msra.mxu0 %v327
  %356 = vmatprep.subr.bf16.mxu0 0
  %357 = vmatpush1.bf16.msra.mxu0 %v326
  %358 = vmatprep.subr.bf16.mxu0 0
  %359 = vmatpush2.bf16.msra.mxu0 0
  %360 = vmatprep.subr.bf16.mxu0 0
  %361 = vmatpush2.bf16.msra.mxu0 0
  %362 = vmatprep.subr.bf16.mxu0 0
  %363 = vmatpush2.bf16.msra.mxu0 0
  %364 = vmatprep.subr.bf16.mxu0 0
  %365 = vmatpush2.bf16.msra.mxu0 0
  %366 = vmatprep.subr.bf16.mxu0 0
  %367 = vmatpush2.bf16.msra.mxu0 0
  %368 = vmatprep.subr.bf16.mxu0 0
  %369 = vmatpush2.bf16.msra.mxu0 0
  %370 = vmatprep.subr.bf16.mxu0 0
  %371 = vmatpush2.bf16.msra.mxu0 0
  %372 = vmatprep.subr.bf16.mxu0 0
  %373 = vmatpush2.bf16.msra.mxu0 0
  %374 = vmatprep.mubr.bf16.mxu0 0
  %375 = vmatmul.mubr.bf16.gmra.mxu0 %v230
  %v376 = vpop.f32.mrf.mxu0
  %v377 = vadd.f32 %v100, %v376
  %v378 = vpop.f32.mrf.mxu0
  %v379 = vpop.f32.mrf.mxu0
  %v380 = vadd.f32 %v100, %v379
  %v381 = vpop.f32.mrf.mxu0
  %382 = vmatprep.mubr.bf16.mxu0 0
  %383 = vmatmul.mubr.bf16.gmra.mxu0 %v231
  %v384 = vpop.f32.mrf.mxu0
  %v385 = vadd.f32 %v100, %v384
  %v386 = vpop.f32.mrf.mxu0
  %v387 = vpop.f32.mrf.mxu0
  %v388 = vadd.f32 %v100, %v387
  %v389 = vpop.f32.mrf.mxu0
  %390 = vmatprep.mubr.bf16.mxu0 0
  %391 = vmatmul.mubr.bf16.gmra.mxu0 %v232
  %v392 = vpop.f32.mrf.mxu0
  %v393 = vadd.f32 %v100, %v392
  %v394 = vpop.f32.mrf.mxu0
  %v395 = vpop.f32.mrf.mxu0
  %v396 = vadd.f32 %v100, %v395
  %v397 = vpop.f32.mrf.mxu0
  %398 = vmatprep.mubr.bf16.mxu0 0
  %399 = vmatmul.mubr.bf16.gmra.mxu0 %v233
  %v400 = vpop.f32.mrf.mxu0
  %v401 = vadd.f32 %v100, %v400
  %v402 = vpop.f32.mrf.mxu0
  %v403 = vpop.f32.mrf.mxu0
  %v404 = vadd.f32 %v100, %v403
  %v405 = vpop.f32.mrf.mxu0
  %406 = vmatprep.mubr.bf16.mxu0 0
  %407 = vmatmul.mubr.bf16.gmra.mxu0 %v234
  %v408 = vpop.f32.mrf.mxu0
  %v409 = vadd.f32 %v100, %v408
  %v410 = vpop.f32.mrf.mxu0
  %v411 = vpop.f32.mrf.mxu0
  %v412 = vadd.f32 %v100, %v411
  %v413 = vpop.f32.mrf.mxu0
  %414 = vmatprep.mubr.bf16.mxu0 0
  %415 = vmatmul.mubr.bf16.gmra.mxu0 %v235
  %v416 = vpop.f32.mrf.mxu0
  %v417 = vadd.f32 %v100, %v416
  %v418 = vpop.f32.mrf.mxu0
  %v419 = vpop.f32.mrf.mxu0
  %v420 = vadd.f32 %v100, %v419
  %v421 = vpop.f32.mrf.mxu0
  %422 = vmatprep.mubr.bf16.mxu0 0
  %423 = vmatmul.mubr.bf16.gmra.mxu0 %v236
  %v424 = vpop.f32.mrf.mxu0
  %v425 = vadd.f32 %v100, %v424
  %v426 = vpop.f32.mrf.mxu0
  %v427 = vpop.f32.mrf.mxu0
  %v428 = vadd.f32 %v100, %v427
  %v429 = vpop.f32.mrf.mxu0
  %430 = vmatprep.mubr.bf16.mxu0 0
  %431 = vmatmul.mubr.bf16.gmra.mxu0 %v237
  %v432 = vpop.f32.mrf.mxu0
  %v433 = vadd.f32 %v100, %v432
  %v434 = vpop.f32.mrf.mxu0
  %v435 = vpop.f32.mrf.mxu0
  %v436 = vadd.f32 %v100, %v435
  %v437 = vpop.f32.mrf.mxu0
  %438 = vmatprep.mubr.bf16.mxu0 0
  %439 = vmatmul.mubr.bf16.gmra.mxu0 %v238
  %v440 = vpop.f32.mrf.mxu0
  %v441 = vadd.f32 %v100, %v440
  %v442 = vpop.f32.mrf.mxu0
  %v443 = vpop.f32.mrf.mxu0
  %v444 = vadd.f32 %v100, %v443
  %v445 = vpop.f32.mrf.mxu0
  %446 = vmatprep.mubr.bf16.mxu0 0
  %447 = vmatmul.mubr.bf16.gmra.mxu0 %v239
  %v448 = vpop.f32.mrf.mxu0
  %v449 = vadd.f32 %v100, %v448
  %v450 = vpop.f32.mrf.mxu0
  %v451 = vpop.f32.mrf.mxu0
  %v452 = vadd.f32 %v100, %v451
  %v453 = vpop.f32.mrf.mxu0
  %454 = vmatprep.mubr.bf16.mxu0 0
  %455 = vmatmul.mubr.bf16.gmra.mxu0 %v240
  %v456 = vpop.f32.mrf.mxu0
  %v457 = vadd.f32 %v100, %v456
  %v458 = vpop.f32.mrf.mxu0
  %v459 = vpop.f32.mrf.mxu0
  %v460 = vadd.f32 %v100, %v459
  %v461 = vpop.f32.mrf.mxu0
  %462 = vmatprep.mubr.bf16.mxu0 0
  %463 = vmatmul.mubr.bf16.gmra.mxu0 %v241
  %v464 = vpop.f32.mrf.mxu0
  %v465 = vadd.f32 %v100, %v464
  %v466 = vpop.f32.mrf.mxu0
  %v467 = vpop.f32.mrf.mxu0
  %v468 = vadd.f32 %v100, %v467
  %v469 = vpop.f32.mrf.mxu0
  %470 = vmatprep.mubr.bf16.mxu0 0
  %471 = vmatmul.mubr.bf16.gmra.mxu0 %v242
  %v472 = vpop.f32.mrf.mxu0
  %v473 = vadd.f32 %v100, %v472
  %v474 = vpop.f32.mrf.mxu0
  %v475 = vpop.f32.mrf.mxu0
  %v476 = vadd.f32 %v100, %v475
  %v477 = vpop.f32.mrf.mxu0
  %478 = vmatprep.mubr.bf16.mxu0 0
  %479 = vmatmul.mubr.bf16.gmra.mxu0 %v243
  %v480 = vpop.f32.mrf.mxu0
  %v481 = vadd.f32 %v100, %v480
  %v482 = vpop.f32.mrf.mxu0
  %v483 = vpop.f32.mrf.mxu0
  %v484 = vadd.f32 %v100, %v483
  %v485 = vpop.f32.mrf.mxu0
  %486 = vmatprep.mubr.bf16.mxu0 0
  %487 = vmatmul.mubr.bf16.gmra.mxu0 %v244
  %v488 = vpop.f32.mrf.mxu0
  %v489 = vadd.f32 %v100, %v488
  %v490 = vpop.f32.mrf.mxu0
  %v491 = vpop.f32.mrf.mxu0
  %v492 = vadd.f32 %v100, %v491
  %v493 = vpop.f32.mrf.mxu0
  %494 = vmatprep.mubr.bf16.mxu0 0
  %495 = vmatmul.mubr.bf16.gmra.mxu0 %v245
  %v496 = vpop.f32.mrf.mxu0
  %v497 = vadd.f32 %v100, %v496
  %v498 = vpop.f32.mrf.mxu0
  %v499 = vpop.f32.mrf.mxu0
  %v500 = vadd.f32 %v100, %v499
  %v501 = vpop.f32.mrf.mxu0
  %502 = vmatprep.mubr.bf16.mxu0 0
  %503 = vmatmul.mubr.bf16.gmra.mxu0 %v246
  %v504 = vpop.f32.mrf.mxu0
  %v505 = vadd.f32 %v100, %v504
  %v506 = vpop.f32.mrf.mxu0
  %v507 = vpop.f32.mrf.mxu0
  %v508 = vadd.f32 %v100, %v507
  %v509 = vpop.f32.mrf.mxu0
  %510 = vmatprep.mubr.bf16.mxu0 0
  %511 = vmatmul.mubr.bf16.gmra.mxu0 %v247
  %v512 = vpop.f32.mrf.mxu0
  %v513 = vadd.f32 %v100, %v512
  %v514 = vpop.f32.mrf.mxu0
  %v515 = vpop.f32.mrf.mxu0
  %v516 = vadd.f32 %v100, %v515
  %v517 = vpop.f32.mrf.mxu0
  %518 = vmatprep.mubr.bf16.mxu0 0
  %519 = vmatmul.mubr.bf16.gmra.mxu0 %v248
  %v520 = vpop.f32.mrf.mxu0
  %v521 = vadd.f32 %v100, %v520
  %v522 = vpop.f32.mrf.mxu0
  %v523 = vpop.f32.mrf.mxu0
  %v524 = vadd.f32 %v100, %v523
  %v525 = vpop.f32.mrf.mxu0
  %526 = vmatprep.mubr.bf16.mxu0 0
  %527 = vmatmul.mubr.bf16.gmra.mxu0 %v249
  %v528 = vpop.f32.mrf.mxu0
  %v529 = vadd.f32 %v100, %v528
  %v530 = vpop.f32.mrf.mxu0
  %v531 = vpop.f32.mrf.mxu0
  %v532 = vadd.f32 %v100, %v531
  %v533 = vpop.f32.mrf.mxu0
  %534 = vmatprep.mubr.bf16.mxu0 0
  %535 = vmatmul.mubr.bf16.gmra.mxu0 %v250
  %v536 = vpop.f32.mrf.mxu0
  %v537 = vadd.f32 %v100, %v536
  %v538 = vpop.f32.mrf.mxu0
  %v539 = vpop.f32.mrf.mxu0
  %v540 = vadd.f32 %v100, %v539
  %v541 = vpop.f32.mrf.mxu0
  %542 = vmatprep.mubr.bf16.mxu0 0
  %543 = vmatmul.mubr.bf16.gmra.mxu0 %v251
  %v544 = vpop.f32.mrf.mxu0
  %v545 = vadd.f32 %v100, %v544
  %v546 = vpop.f32.mrf.mxu0
  %v547 = vpop.f32.mrf.mxu0
  %v548 = vadd.f32 %v100, %v547
  %v549 = vpop.f32.mrf.mxu0
  %550 = vmatprep.mubr.bf16.mxu0 0
  %551 = vmatmul.mubr.bf16.gmra.mxu0 %v252
  %v552 = vpop.f32.mrf.mxu0
  %v553 = vadd.f32 %v100, %v552
  %v554 = vpop.f32.mrf.mxu0
  %v555 = vpop.f32.mrf.mxu0
  %v556 = vadd.f32 %v100, %v555
  %v557 = vpop.f32.mrf.mxu0
  %558 = vmatprep.mubr.bf16.mxu0 0
  %559 = vmatmul.mubr.bf16.gmra.mxu0 %v253
  %v560 = vpop.f32.mrf.mxu0
  %v561 = vadd.f32 %v100, %v560
  %v562 = vpop.f32.mrf.mxu0
  %v563 = vpop.f32.mrf.mxu0
  %v564 = vadd.f32 %v100, %v563
  %v565 = vpop.f32.mrf.mxu0
  %566 = vmatprep.mubr.bf16.mxu0 0
  %567 = vmatmul.mubr.bf16.gmra.mxu0 %v254
  %v568 = vpop.f32.mrf.mxu0
  %v569 = vadd.f32 %v100, %v568
  %v570 = vpop.f32.mrf.mxu0
  %v571 = vpop.f32.mrf.mxu0
  %v572 = vadd.f32 %v100, %v571
  %v573 = vpop.f32.mrf.mxu0
  %574 = vmatprep.mubr.bf16.mxu0 0
  %575 = vmatmul.mubr.bf16.gmra.mxu0 %v255
  %v576 = vpop.f32.mrf.mxu0
  %v577 = vadd.f32 %v100, %v576
  %v578 = vpop.f32.mrf.mxu0
  %v579 = vpop.f32.mrf.mxu0
  %v580 = vadd.f32 %v100, %v579
  %v581 = vpop.f32.mrf.mxu0
  %582 = vmatprep.mubr.bf16.mxu0 0
  %583 = vmatmul.mubr.bf16.gmra.mxu0 %v256
  %v584 = vpop.f32.mrf.mxu0
  %v585 = vadd.f32 %v100, %v584
  %v586 = vpop.f32.mrf.mxu0
  %v587 = vpop.f32.mrf.mxu0
  %v588 = vadd.f32 %v100, %v587
  %v589 = vpop.f32.mrf.mxu0
  %590 = vmatprep.mubr.bf16.mxu0 0
  %591 = vmatmul.mubr.bf16.gmra.mxu0 %v257
  %v592 = vpop.f32.mrf.mxu0
  %v593 = vadd.f32 %v100, %v592
  %v594 = vpop.f32.mrf.mxu0
  %v595 = vpop.f32.mrf.mxu0
  %v596 = vadd.f32 %v100, %v595
  %v597 = vpop.f32.mrf.mxu0
  %598 = vmatprep.mubr.bf16.mxu0 0
  %599 = vmatmul.mubr.bf16.gmra.mxu0 %v258
  %v600 = vpop.f32.mrf.mxu0
  %v601 = vadd.f32 %v100, %v600
  %v602 = vpop.f32.mrf.mxu0
  %v603 = vpop.f32.mrf.mxu0
  %v604 = vadd.f32 %v100, %v603
  %v605 = vpop.f32.mrf.mxu0
  %606 = vmatprep.mubr.bf16.mxu0 0
  %607 = vmatmul.mubr.bf16.gmra.mxu0 %v259
  %v608 = vpop.f32.mrf.mxu0
  %v609 = vadd.f32 %v100, %v608
  %v610 = vpop.f32.mrf.mxu0
  %v611 = vpop.f32.mrf.mxu0
  %v612 = vadd.f32 %v100, %v611
  %v613 = vpop.f32.mrf.mxu0
  %614 = vmatprep.mubr.bf16.mxu0 0
  %615 = vmatmul.mubr.bf16.gmra.mxu0 %v260
  %v616 = vpop.f32.mrf.mxu0
  %v617 = vadd.f32 %v100, %v616
  %v618 = vpop.f32.mrf.mxu0
  %v619 = vpop.f32.mrf.mxu0
  %v620 = vadd.f32 %v100, %v619
  %v621 = vpop.f32.mrf.mxu0
  %622 = vmatprep.mubr.bf16.mxu0 0
  %623 = vmatmul.mubr.bf16.gmra.mxu0 %v261
  %v624 = vpop.f32.mrf.mxu0
  %v625 = vadd.f32 %v100, %v624
  %v626 = vpop.f32.mrf.mxu0
  %v627 = vpop.f32.mrf.mxu0
  %v628 = vadd.f32 %v100, %v627
  %v629 = vpop.f32.mrf.mxu0
  %630 = vdwg.mxu0
  %vm631 = vcmp.gt.f32.partialorder %v377, 0.0
  %vm632 = vcmp.gt.f32.partialorder %v380, 0.0
  %vm633 = vcmp.gt.f32.partialorder %v385, 0.0
  %vm634 = vcmp.gt.f32.partialorder %v388, 0.0
  %vm635 = vcmp.gt.f32.partialorder %v393, 0.0
  %vm636 = vcmp.gt.f32.partialorder %v396, 0.0
  %vm637 = vcmp.gt.f32.partialorder %v401, 0.0
  %vm638 = vcmp.gt.f32.partialorder %v404, 0.0
  %vm639 = vcmp.gt.f32.partialorder %v409, 0.0
  %vm640 = vcmp.gt.f32.partialorder %v412, 0.0
  %vm641 = vcmp.gt.f32.partialorder %v417, 0.0
  %vm642 = vcmp.gt.f32.partialorder %v420, 0.0
  %vm643 = vcmp.gt.f32.partialorder %v425, 0.0
  %vm644 = vcmp.gt.f32.partialorder %v428, 0.0
  %vm645 = vcmp.gt.f32.partialorder %v433, 0.0
  %vm646 = vcmp.gt.f32.partialorder %v436, 0.0
  %vm647 = vcmp.gt.f32.partialorder %v441, 0.0
  %vm648 = vcmp.gt.f32.partialorder %v444, 0.0
  %vm649 = vcmp.gt.f32.partialorder %v449, 0.0
  %vm650 = vcmp.gt.f32.partialorder %v452, 0.0
  %vm651 = vcmp.gt.f32.partialorder %v457, 0.0
  %vm652 = vcmp.gt.f32.partialorder %v460, 0.0
  %vm653 = vcmp.gt.f32.partialorder %v465, 0.0
  %vm654 = vcmp.gt.f32.partialorder %v468, 0.0
  %vm655 = vcmp.gt.f32.partialorder %v473, 0.0
  %vm656 = vcmp.gt.f32.partialorder %v476, 0.0
  %vm657 = vcmp.gt.f32.partialorder %v481, 0.0
  %vm658 = vcmp.gt.f32.partialorder %v484, 0.0
  %vm659 = vcmp.gt.f32.partialorder %v489, 0.0
  %vm660 = vcmp.gt.f32.partialorder %v492, 0.0
  %vm661 = vcmp.gt.f32.partialorder %v497, 0.0
  %vm662 = vcmp.gt.f32.partialorder %v500, 0.0
  %vm663 = vcmp.gt.f32.partialorder %v505, 0.0
  %vm664 = vcmp.gt.f32.partialorder %v508, 0.0
  %vm665 = vcmp.gt.f32.partialorder %v513, 0.0
  %vm666 = vcmp.gt.f32.partialorder %v516, 0.0
  %vm667 = vcmp.gt.f32.partialorder %v521, 0.0
  %vm668 = vcmp.gt.f32.partialorder %v524, 0.0
  %vm669 = vcmp.gt.f32.partialorder %v529, 0.0
  %vm670 = vcmp.gt.f32.partialorder %v532, 0.0
  %vm671 = vcmp.gt.f32.partialorder %v537, 0.0
  %vm672 = vcmp.gt.f32.partialorder %v540, 0.0
  %vm673 = vcmp.gt.f32.partialorder %v545, 0.0
  %vm674 = vcmp.gt.f32.partialorder %v548, 0.0
  %vm675 = vcmp.gt.f32.partialorder %v553, 0.0
  %vm676 = vcmp.gt.f32.partialorder %v556, 0.0
  %vm677 = vcmp.gt.f32.partialorder %v561, 0.0
  %vm678 = vcmp.gt.f32.partialorder %v564, 0.0
  %vm679 = vcmp.gt.f32.partialorder %v569, 0.0
  %vm680 = vcmp.gt.f32.partialorder %v572, 0.0
  %vm681 = vcmp.gt.f32.partialorder %v577, 0.0
  %vm682 = vcmp.gt.f32.partialorder %v580, 0.0
  %vm683 = vcmp.gt.f32.partialorder %v585, 0.0
  %vm684 = vcmp.gt.f32.partialorder %v588, 0.0
  %vm685 = vcmp.gt.f32.partialorder %v593, 0.0
  %vm686 = vcmp.gt.f32.partialorder %v596, 0.0
  %vm687 = vcmp.gt.f32.partialorder %v601, 0.0
  %vm688 = vcmp.gt.f32.partialorder %v604, 0.0
  %vm689 = vcmp.gt.f32.partialorder %v609, 0.0
  %vm690 = vcmp.gt.f32.partialorder %v612, 0.0
  %vm691 = vcmp.gt.f32.partialorder %v617, 0.0
  %vm692 = vcmp.gt.f32.partialorder %v620, 0.0
  %vm693 = vcmp.gt.f32.partialorder %v625, 0.0
  %vm694 = vcmp.gt.f32.partialorder %v628, 0.0
  %v695 = vmul.f32 %v377, 0.2
  %v696 = vmul.f32 %v380, 0.2
  %v697 = vmul.f32 %v385, 0.2
  %v698 = vmul.f32 %v388, 0.2
  %v699 = vmul.f32 %v393, 0.2
  %v700 = vmul.f32 %v396, 0.2
  %v701 = vmul.f32 %v401, 0.2
  %v702 = vmul.f32 %v404, 0.2
  %v703 = vmul.f32 %v409, 0.2
  %v704 = vmul.f32 %v412, 0.2
  %v705 = vmul.f32 %v417, 0.2
  %v706 = vmul.f32 %v420, 0.2
  %v707 = vmul.f32 %v425, 0.2
  %v708 = vmul.f32 %v428, 0.2
  %v709 = vmul.f32 %v433, 0.2
  %v710 = vmul.f32 %v436, 0.2
  %v711 = vmul.f32 %v441, 0.2
  %v712 = vmul.f32 %v444, 0.2
  %v713 = vmul.f32 %v449, 0.2
  %v714 = vmul.f32 %v452, 0.2
  %v715 = vmul.f32 %v457, 0.2
  %v716 = vmul.f32 %v460, 0.2
  %v717 = vmul.f32 %v465, 0.2
  %v718 = vmul.f32 %v468, 0.2
  %v719 = vmul.f32 %v473, 0.2
  %v720 = vmul.f32 %v476, 0.2
  %v721 = vmul.f32 %v481, 0.2
  %v722 = vmul.f32 %v484, 0.2
  %v723 = vmul.f32 %v489, 0.2
  %v724 = vmul.f32 %v492, 0.2
  %v725 = vmul.f32 %v497, 0.2
  %v726 = vmul.f32 %v500, 0.2
  %v727 = vmul.f32 %v505, 0.2
  %v728 = vmul.f32 %v508, 0.2
  %v729 = vmul.f32 %v513, 0.2
  %v730 = vmul.f32 %v516, 0.2
  %v731 = vmul.f32 %v521, 0.2
  %v732 = vmul.f32 %v524, 0.2
  %v733 = vmul.f32 %v529, 0.2
  %v734 = vmul.f32 %v532, 0.2
  %v735 = vmul.f32 %v537, 0.2
  %v736 = vmul.f32 %v540, 0.2
  %v737 = vmul.f32 %v545, 0.2
  %v738 = vmul.f32 %v548, 0.2
  %v739 = vmul.f32 %v553, 0.2
  %v740 = vmul.f32 %v556, 0.2
  %v741 = vmul.f32 %v561, 0.2
  %v742 = vmul.f32 %v564, 0.2
  %v743 = vmul.f32 %v569, 0.2
  %v744 = vmul.f32 %v572, 0.2
  %v745 = vmul.f32 %v577, 0.2
  %v746 = vmul.f32 %v580, 0.2
  %v747 = vmul.f32 %v585, 0.2
  %v748 = vmul.f32 %v588, 0.2
  %v749 = vmul.f32 %v593, 0.2
  %v750 = vmul.f32 %v596, 0.2
  %v751 = vmul.f32 %v601, 0.2
  %v752 = vmul.f32 %v604, 0.2
  %v753 = vmul.f32 %v609, 0.2
  %v754 = vmul.f32 %v612, 0.2
  %v755 = vmul.f32 %v617, 0.2
  %v756 = vmul.f32 %v620, 0.2
  %v757 = vmul.f32 %v625, 0.2
  %v758 = vmul.f32 %v628, 0.2
  %v759 = vsel %vm631, %v377, %v695
  %v760 = vsel %vm632, %v380, %v696
  %v761 = vsel %vm633, %v385, %v697
  %v762 = vsel %vm634, %v388, %v698
  %v763 = vsel %vm635, %v393, %v699
  %v764 = vsel %vm636, %v396, %v700
  %v765 = vsel %vm637, %v401, %v701
  %v766 = vsel %vm638, %v404, %v702
  %v767 = vsel %vm639, %v409, %v703
  %v768 = vsel %vm640, %v412, %v704
  %v769 = vsel %vm641, %v417, %v705
  %v770 = vsel %vm642, %v420, %v706
  %v771 = vsel %vm643, %v425, %v707
  %v772 = vsel %vm644, %v428, %v708
  %v773 = vsel %vm645, %v433, %v709
  %v774 = vsel %vm646, %v436, %v710
  %v775 = vsel %vm647, %v441, %v711
  %v776 = vsel %vm648, %v444, %v712
  %v777 = vsel %vm649, %v449, %v713
  %v778 = vsel %vm650, %v452, %v714
  %v779 = vsel %vm651, %v457, %v715
  %v780 = vsel %vm652, %v460, %v716
  %v781 = vsel %vm653, %v465, %v717
  %v782 = vsel %vm654, %v468, %v718
  %v783 = vsel %vm655, %v473, %v719
  %v784 = vsel %vm656, %v476, %v720
  %v785 = vsel %vm657, %v481, %v721
  %v786 = vsel %vm658, %v484, %v722
  %v787 = vsel %vm659, %v489, %v723
  %v788 = vsel %vm660, %v492, %v724
  %v789 = vsel %vm661, %v497, %v725
  %v790 = vsel %vm662, %v500, %v726
  %v791 = vsel %vm663, %v505, %v727
  %v792 = vsel %vm664, %v508, %v728
  %v793 = vsel %vm665, %v513, %v729
  %v794 = vsel %vm666, %v516, %v730
  %v795 = vsel %vm667, %v521, %v731
  %v796 = vsel %vm668, %v524, %v732
  %v797 = vsel %vm669, %v529, %v733
  %v798 = vsel %vm670, %v532, %v734
  %v799 = vsel %vm671, %v537, %v735
  %v800 = vsel %vm672, %v540, %v736
  %v801 = vsel %vm673, %v545, %v737
  %v802 = vsel %vm674, %v548, %v738
  %v803 = vsel %vm675, %v553, %v739
  %v804 = vsel %vm676, %v556, %v740
  %v805 = vsel %vm677, %v561, %v741
  %v806 = vsel %vm678, %v564, %v742
  %v807 = vsel %vm679, %v569, %v743
  %v808 = vsel %vm680, %v572, %v744
  %v809 = vsel %vm681, %v577, %v745
  %v810 = vsel %vm682, %v580, %v746
  %v811 = vsel %vm683, %v585, %v747
  %v812 = vsel %vm684, %v588, %v748
  %v813 = vsel %vm685, %v593, %v749
  %v814 = vsel %vm686, %v596, %v750
  %v815 = vsel %vm687, %v601, %v751
  %v816 = vsel %vm688, %v604, %v752
  %v817 = vsel %vm689, %v609, %v753
  %v818 = vsel %vm690, %v612, %v754
  %v819 = vsel %vm691, %v617, %v755
  %v820 = vsel %vm692, %v620, %v756
  %v821 = vsel %vm693, %v625, %v757
  %v822 = vsel %vm694, %v628, %v758
  %v823 = vpack.c.bf16 %v760, %v759
  %v824 = vpack.c.bf16 %v762, %v761
  %v825 = vpack.c.bf16 %v764, %v763
  %v826 = vpack.c.bf16 %v766, %v765
  %v827 = vpack.c.bf16 %v768, %v767
  %v828 = vpack.c.bf16 %v770, %v769
  %v829 = vpack.c.bf16 %v772, %v771
  %v830 = vpack.c.bf16 %v774, %v773
  %v831 = vpack.c.bf16 %v776, %v775
  %v832 = vpack.c.bf16 %v778, %v777
  %v833 = vpack.c.bf16 %v780, %v779
  %v834 = vpack.c.bf16 %v782, %v781
  %v835 = vpack.c.bf16 %v784, %v783
  %v836 = vpack.c.bf16 %v786, %v785
  %v837 = vpack.c.bf16 %v788, %v787
  %v838 = vpack.c.bf16 %v790, %v789
  %v839 = vpack.c.bf16 %v792, %v791
  %v840 = vpack.c.bf16 %v794, %v793
  %v841 = vpack.c.bf16 %v796, %v795
  %v842 = vpack.c.bf16 %v798, %v797
  %v843 = vpack.c.bf16 %v800, %v799
  %v844 = vpack.c.bf16 %v802, %v801
  %v845 = vpack.c.bf16 %v804, %v803
  %v846 = vpack.c.bf16 %v806, %v805
  %v847 = vpack.c.bf16 %v808, %v807
  %v848 = vpack.c.bf16 %v810, %v809
  %v849 = vpack.c.bf16 %v812, %v811
  %v850 = vpack.c.bf16 %v814, %v813
  %v851 = vpack.c.bf16 %v816, %v815
  %v852 = vpack.c.bf16 %v818, %v817
  %v853 = vpack.c.bf16 %v820, %v819
  %v854 = vpack.c.bf16 %v822, %v821
  %v887 = vunpack.c.l.b16 %v823
  %v888 = vunpack.c.h.b16 %v823
  %v889 = vunpack.c.l.b16 %v824
  %v890 = vunpack.c.h.b16 %v824
  %v891 = vunpack.c.l.b16 %v825
  %v892 = vunpack.c.h.b16 %v825
  %v893 = vunpack.c.l.b16 %v826
  %v894 = vunpack.c.h.b16 %v826
  %v895 = vunpack.c.l.b16 %v827
  %v896 = vunpack.c.h.b16 %v827
  %v897 = vunpack.c.l.b16 %v828
  %v898 = vunpack.c.h.b16 %v828
  %v899 = vunpack.c.l.b16 %v829
  %v900 = vunpack.c.h.b16 %v829
  %v901 = vunpack.c.l.b16 %v830
  %v902 = vunpack.c.h.b16 %v830
  %v903 = vunpack.c.l.b16 %v831
  %v904 = vunpack.c.h.b16 %v831
  %v905 = vunpack.c.l.b16 %v832
  %v906 = vunpack.c.h.b16 %v832
  %v907 = vunpack.c.l.b16 %v833
  %v908 = vunpack.c.h.b16 %v833
  %v909 = vunpack.c.l.b16 %v834
  %v910 = vunpack.c.h.b16 %v834
  %v911 = vunpack.c.l.b16 %v835
  %v912 = vunpack.c.h.b16 %v835
  %v913 = vunpack.c.l.b16 %v836
  %v914 = vunpack.c.h.b16 %v836
  %v915 = vunpack.c.l.b16 %v837
  %v916 = vunpack.c.h.b16 %v837
  %v917 = vunpack.c.l.b16 %v838
  %v918 = vunpack.c.h.b16 %v838
  %v919 = vunpack.c.l.b16 %v839
  %v920 = vunpack.c.h.b16 %v839
  %v921 = vunpack.c.l.b16 %v840
  %v922 = vunpack.c.h.b16 %v840
  %v923 = vunpack.c.l.b16 %v841
  %v924 = vunpack.c.h.b16 %v841
  %v925 = vunpack.c.l.b16 %v842
  %v926 = vunpack.c.h.b16 %v842
  %v927 = vunpack.c.l.b16 %v843
  %v928 = vunpack.c.h.b16 %v843
  %v929 = vunpack.c.l.b16 %v844
  %v930 = vunpack.c.h.b16 %v844
  %v931 = vunpack.c.l.b16 %v845
  %v932 = vunpack.c.h.b16 %v845
  %v933 = vunpack.c.l.b16 %v846
  %v934 = vunpack.c.h.b16 %v846
  %v935 = vunpack.c.l.b16 %v847
  %v936 = vunpack.c.h.b16 %v847
  %v937 = vunpack.c.l.b16 %v848
  %v938 = vunpack.c.h.b16 %v848
  %v939 = vunpack.c.l.b16 %v849
  %v940 = vunpack.c.h.b16 %v849
  %v941 = vunpack.c.l.b16 %v850
  %v942 = vunpack.c.h.b16 %v850
  %v943 = vunpack.c.l.b16 %v851
  %v944 = vunpack.c.h.b16 %v851
  %v945 = vunpack.c.l.b16 %v852
  %v946 = vunpack.c.h.b16 %v852
  %v947 = vunpack.c.l.b16 %v853
  %v948 = vunpack.c.h.b16 %v853
  %v949 = vunpack.c.l.b16 %v854
  %v950 = vunpack.c.h.b16 %v854
  %v951 = vpack.c.b16 %v887, %v887
  %v952 = vpack.c.b16 %v888, %v888
  %v953 = vpack.c.b16 %v889, %v889
  %v954 = vpack.c.b16 %v890, %v890
  %v955 = vpack.c.b16 %v891, %v891
  %v956 = vpack.c.b16 %v892, %v892
  %v957 = vpack.c.b16 %v893, %v893
  %v958 = vpack.c.b16 %v894, %v894
  %v959 = vpack.c.b16 %v895, %v895
  %v960 = vpack.c.b16 %v896, %v896
  %v961 = vpack.c.b16 %v897, %v897
  %v962 = vpack.c.b16 %v898, %v898
  %v963 = vpack.c.b16 %v899, %v899
  %v964 = vpack.c.b16 %v900, %v900
  %v965 = vpack.c.b16 %v901, %v901
  %v966 = vpack.c.b16 %v902, %v902
  %v967 = vpack.c.b16 %v903, %v903
  %v968 = vpack.c.b16 %v904, %v904
  %v969 = vpack.c.b16 %v905, %v905
  %v970 = vpack.c.b16 %v906, %v906
  %v971 = vpack.c.b16 %v907, %v907
  %v972 = vpack.c.b16 %v908, %v908
  %v973 = vpack.c.b16 %v909, %v909
  %v974 = vpack.c.b16 %v910, %v910
  %v975 = vpack.c.b16 %v911, %v911
  %v976 = vpack.c.b16 %v912, %v912
  %v977 = vpack.c.b16 %v913, %v913
  %v978 = vpack.c.b16 %v914, %v914
  %v979 = vpack.c.b16 %v915, %v915
  %v980 = vpack.c.b16 %v916, %v916
  %v981 = vpack.c.b16 %v917, %v917
  %v982 = vpack.c.b16 %v918, %v918
  %v983 = vpack.c.b16 %v919, %v919
  %v984 = vpack.c.b16 %v920, %v920
  %v985 = vpack.c.b16 %v921, %v921
  %v986 = vpack.c.b16 %v922, %v922
  %v987 = vpack.c.b16 %v923, %v923
  %v988 = vpack.c.b16 %v924, %v924
  %v989 = vpack.c.b16 %v925, %v925
  %v990 = vpack.c.b16 %v926, %v926
  %v991 = vpack.c.b16 %v927, %v927
  %v992 = vpack.c.b16 %v928, %v928
  %v993 = vpack.c.b16 %v929, %v929
  %v994 = vpack.c.b16 %v930, %v930
  %v995 = vpack.c.b16 %v931, %v931
  %v996 = vpack.c.b16 %v932, %v932
  %v997 = vpack.c.b16 %v933, %v933
  %v998 = vpack.c.b16 %v934, %v934
  %v999 = vpack.c.b16 %v935, %v935
  %v1000 = vpack.c.b16 %v936, %v936
  %v1001 = vpack.c.b16 %v937, %v937
  %v1002 = vpack.c.b16 %v938, %v938
  %v1003 = vpack.c.b16 %v939, %v939
  %v1004 = vpack.c.b16 %v940, %v940
  %v1005 = vpack.c.b16 %v941, %v941
  %v1006 = vpack.c.b16 %v942, %v942
  %v1007 = vpack.c.b16 %v943, %v943
  %v1008 = vpack.c.b16 %v944, %v944
  %v1009 = vpack.c.b16 %v945, %v945
  %v1010 = vpack.c.b16 %v946, %v946
  %v1011 = vpack.c.b16 %v947, %v947
  %v1012 = vpack.c.b16 %v948, %v948
  %v1013 = vpack.c.b16 %v949, %v949
  %v1014 = vpack.c.b16 %v950, %v950
  %1079 = vst [vmem:[%s3] sm:$0xf] %v951
  %1080 = vst [vmem:[%s3 + $0x4] sm:$0xf] %v952
  %1081 = vst [vmem:[%s3 + $0x8] sm:$0xf] %v953
  %1082 = vst [vmem:[%s3 + $0xc] sm:$0xf] %v954
  %1083 = vst [vmem:[%s3 + $0x10] sm:$0xf] %v955
  %1084 = vst [vmem:[%s3 + $0x14] sm:$0xf] %v956
  %1085 = vst [vmem:[%s3 + $0x18] sm:$0xf] %v957
  %1086 = vst [vmem:[%s3 + $0x1c] sm:$0xf] %v958
  %1087 = vst [vmem:[%s3 + $0x20] sm:$0xf] %v959
  %1088 = vst [vmem:[%s3 + $0x24] sm:$0xf] %v960
  %1089 = vst [vmem:[%s3 + $0x28] sm:$0xf] %v961
  %1090 = vst [vmem:[%s3 + $0x2c] sm:$0xf] %v962
  %1091 = vst [vmem:[%s3 + $0x30] sm:$0xf] %v963
  %1092 = vst [vmem:[%s3 + $0x34] sm:$0xf] %v964
  %1093 = vst [vmem:[%s3 + $0x38] sm:$0xf] %v965
  %1094 = vst [vmem:[%s3 + $0x3c] sm:$0xf] %v966
  %1095 = vst [vmem:[%s3 + $0x40] sm:$0xf] %v967
  %1096 = vst [vmem:[%s3 + $0x44] sm:$0xf] %v968
  %1097 = vst [vmem:[%s3 + $0x48] sm:$0xf] %v969
  %1098 = vst [vmem:[%s3 + $0x4c] sm:$0xf] %v970
  %1099 = vst [vmem:[%s3 + $0x50] sm:$0xf] %v971
  %1100 = vst [vmem:[%s3 + $0x54] sm:$0xf] %v972
  %1101 = vst [vmem:[%s3 + $0x58] sm:$0xf] %v973
  %1102 = vst [vmem:[%s3 + $0x5c] sm:$0xf] %v974
  %1103 = vst [vmem:[%s3 + $0x60] sm:$0xf] %v975
  %1104 = vst [vmem:[%s3 + $0x64] sm:$0xf] %v976
  %1105 = vst [vmem:[%s3 + $0x68] sm:$0xf] %v977
  %1106 = vst [vmem:[%s3 + $0x6c] sm:$0xf] %v978
  %1107 = vst [vmem:[%s3 + $0x70] sm:$0xf] %v979
  %1108 = vst [vmem:[%s3 + $0x74] sm:$0xf] %v980
  %1109 = vst [vmem:[%s3 + $0x78] sm:$0xf] %v981
  %1110 = vst [vmem:[%s3 + $0x7c] sm:$0xf] %v982
  %1111 = vst [vmem:[%s3 + $0x80] sm:$0xf] %v983
  %1112 = vst [vmem:[%s3 + $0x84] sm:$0xf] %v984
  %1113 = vst [vmem:[%s3 + $0x88] sm:$0xf] %v985
  %1114 = vst [vmem:[%s3 + $0x8c] sm:$0xf] %v986
  %1115 = vst [vmem:[%s3 + $0x90] sm:$0xf] %v987
  %1116 = vst [vmem:[%s3 + $0x94] sm:$0xf] %v988
  %1117 = vst [vmem:[%s3 + $0x98] sm:$0xf] %v989
  %1118 = vst [vmem:[%s3 + $0x9c] sm:$0xf] %v990
  %1119 = vst [vmem:[%s3 + $0xa0] sm:$0xf] %v991
  %1120 = vst [vmem:[%s3 + $0xa4] sm:$0xf] %v992
  %1121 = vst [vmem:[%s3 + $0xa8] sm:$0xf] %v993
  %1122 = vst [vmem:[%s3 + $0xac] sm:$0xf] %v994
  %1123 = vst [vmem:[%s3 + $0xb0] sm:$0xf] %v995
  %1124 = vst [vmem:[%s3 + $0xb4] sm:$0xf] %v996
  %1125 = vst [vmem:[%s3 + $0xb8] sm:$0xf] %v997
  %1126 = vst [vmem:[%s3 + $0xbc] sm:$0xf] %v998
  %1127 = vst [vmem:[%s3 + $0xc0] sm:$0xf] %v999
  %1128 = vst [vmem:[%s3 + $0xc4] sm:$0xf] %v1000
  %1129 = vst [vmem:[%s3 + $0xc8] sm:$0xf] %v1001
  %1130 = vst [vmem:[%s3 + $0xcc] sm:$0xf] %v1002
  %1131 = vst [vmem:[%s3 + $0xd0] sm:$0xf] %v1003
  %1132 = vst [vmem:[%s3 + $0xd4] sm:$0xf] %v1004
  %1133 = vst [vmem:[%s3 + $0xd8] sm:$0xf] %v1005
  %1134 = vst [vmem:[%s3 + $0xdc] sm:$0xf] %v1006
  %1135 = vst [vmem:[%s3 + $0xe0] sm:$0xf] %v1007
  %1136 = vst [vmem:[%s3 + $0xe4] sm:$0xf] %v1008
  %1137 = vst [vmem:[%s3 + $0xe8] sm:$0xf] %v1009
  %1138 = vst [vmem:[%s3 + $0xec] sm:$0xf] %v1010
  %1139 = vst [vmem:[%s3 + $0xf0] sm:$0xf] %v1011
  %1140 = vst [vmem:[%s3 + $0xf4] sm:$0xf] %v1012
  %1141 = vst [vmem:[%s3 + $0xf8] sm:$0xf] %v1013
  %1142 = vst [vmem:[%s3 + $0xfc] sm:$0xf] %v1014
  // Predicated region
  $region14: #{discriminator_forward.8} parent=0 // pred_check
    _
  $region15: #{discriminator_forward.8} parent=0 // pred_check_branch
    %1144 = sbr.rel (0) target = $region17
  $region16: #{discriminator_forward.8} parent=0 // pred_region
    _
  $region17: #{discriminator_forward.8} parent=0 // pred_fallthru
    _
  // Predicated region
  $region18: #{discriminator_forward.8} parent=0 // pred_check
    _
  $region19: #{discriminator_forward.8} parent=0 // pred_check_branch
    %1146 = sbr.rel (0) target = $region21
  $region20: #{discriminator_forward.8} parent=0 // pred_region
    _
  $region21: #{discriminator_forward.8} parent=0 // pred_fallthru
    _

// kernel: discriminator_forward.9
$region0: #{discriminator_forward.9}
  #allocation0 [shape = 'u32[]', space=smem, size = 0x4, offset = 0x4, fixed_abs, tag = 'smem constant byte address 0x4 - core index']
  #allocation1 [shape = 'u32[144,128]{1,0:T(1,128)}', space=vmem, size = 0x12000, scoped, tag = 'internal scratch']
  %s0 = inlined_call_operand.vmem [shape: bf16[128,128], index: 0, kind: input, shape index: {}]
  %s1 = inlined_call_operand.vmem [shape: bf16[128,128], index: 1, kind: input, shape index: {}]
  %s2 = inlined_call_operand.vmem [shape: f32[1,128], index: 2, kind: input, shape index: {}]
  %s3 = inlined_call_operand.vmem [shape: bf16[128,128], index: 3, kind: output, shape index: {0}]
  %s4 = inlined_call_operand.vmem [shape: f32[1,1,128], index: 4, kind: output, shape index: {1}]
  %s5 = inlined_call_operand.vmem [shape: f32[1,1,128], index: 5, kind: output, shape index: {2}]
  %6 = xla_tuple %s3, %s4, %s5
  %s7 = sld [smem:[#allocation0]]
  $region38: #{discriminator_forward.9} parent=0
    _
  %s9 = ssub.s32 1, %s7
  %s10 = scalar_select 0, %s9, %s7
  // Predicated region
  $region2: #{discriminator_forward.9} parent=0 // pred_check
    _
  $region3: #{discriminator_forward.9} parent=0 // pred_check_branch
    %12 = sbr.rel (0) target = $region5
  $region4: #{discriminator_forward.9} parent=0 // pred_region
    _
  $region5: #{discriminator_forward.9} parent=0 // pred_fallthru
    _
  // Predicated region
  $region6: #{discriminator_forward.9} parent=0 // pred_check
    _
  $region7: #{discriminator_forward.9} parent=0 // pred_check_branch
    %14 = sbr.rel (0) target = $region9
  $region8: #{discriminator_forward.9} parent=0 // pred_region
    _
  $region9: #{discriminator_forward.9} parent=0 // pred_fallthru
    _
  // Predicated region
  $region10: #{discriminator_forward.9} parent=0 // pred_check
    _
  $region11: #{discriminator_forward.9} parent=0 // pred_check_branch
    %16 = sbr.rel (0) target = $region13
  $region12: #{discriminator_forward.9} parent=0 // pred_region
    _
  $region13: #{discriminator_forward.9} parent=0 // pred_fallthru
    _
  %v18 = vld [vmem:[%s0] sm:$0xf]
  %v19 = vld [vmem:[%s0 + $0x4] sm:$0xf]
  %v20 = vld [vmem:[%s0 + $0x8] sm:$0xf]
  %v21 = vld [vmem:[%s0 + $0xc] sm:$0xf]
  %v22 = vld [vmem:[%s0 + $0x10] sm:$0xf]
  %v23 = vld [vmem:[%s0 + $0x14] sm:$0xf]
  %v24 = vld [vmem:[%s0 + $0x18] sm:$0xf]
  %v25 = vld [vmem:[%s0 + $0x1c] sm:$0xf]
  %v26 = vld [vmem:[%s0 + $0x20] sm:$0xf]
  %v27 = vld [vmem:[%s0 + $0x24] sm:$0xf]
  %v28 = vld [vmem:[%s0 + $0x28] sm:$0xf]
  %v29 = vld [vmem:[%s0 + $0x2c] sm:$0xf]
  %v30 = vld [vmem:[%s0 + $0x30] sm:$0xf]
  %v31 = vld [vmem:[%s0 + $0x34] sm:$0xf]
  %v32 = vld [vmem:[%s0 + $0x38] sm:$0xf]
  %v33 = vld [vmem:[%s0 + $0x3c] sm:$0xf]
  %v34 = vld [vmem:[%s1] sm:$0xf]
  %v35 = vld [vmem:[%s1 + $0x4] sm:$0xf]
  %v36 = vld [vmem:[%s1 + $0x8] sm:$0xf]
  %v37 = vld [vmem:[%s1 + $0xc] sm:$0xf]
  %v38 = vld [vmem:[%s1 + $0x10] sm:$0xf]
  %v39 = vld [vmem:[%s1 + $0x14] sm:$0xf]
  %v40 = vld [vmem:[%s1 + $0x18] sm:$0xf]
  %v41 = vld [vmem:[%s1 + $0x1c] sm:$0xf]
  %v42 = vld [vmem:[%s1 + $0x20] sm:$0xf]
  %v43 = vld [vmem:[%s1 + $0x24] sm:$0xf]
  %v44 = vld [vmem:[%s1 + $0x28] sm:$0xf]
  %v45 = vld [vmem:[%s1 + $0x2c] sm:$0xf]
  %v46 = vld [vmem:[%s1 + $0x30] sm:$0xf]
  %v47 = vld [vmem:[%s1 + $0x34] sm:$0xf]
  %v48 = vld [vmem:[%s1 + $0x38] sm:$0xf]
  %v49 = vld [vmem:[%s1 + $0x3c] sm:$0xf]
  %v50 = vld [vmem:[%s2] sm:$0x1]
  %v52 = vlaneseq
  %v53 = vshrl.u32 %v52, 7
  %v54 = vsub.s32 0, %v53
  %v55 = vrot.slane %v50, %v54
  %v73 = vunpack.c.l.b16 %v18
  %v74 = vunpack.c.l.b16 %v19
  %v75 = vunpack.c.l.b16 %v20
  %v76 = vunpack.c.l.b16 %v21
  %v77 = vunpack.c.l.b16 %v22
  %v78 = vunpack.c.l.b16 %v23
  %v79 = vunpack.c.l.b16 %v24
  %v80 = vunpack.c.l.b16 %v25
  %v81 = vunpack.c.l.b16 %v26
  %v82 = vunpack.c.l.b16 %v27
  %v83 = vunpack.c.l.b16 %v28
  %v84 = vunpack.c.l.b16 %v29
  %v85 = vunpack.c.l.b16 %v30
  %v86 = vunpack.c.l.b16 %v31
  %v87 = vunpack.c.l.b16 %v32
  %v88 = vunpack.c.l.b16 %v33
  %v89 = vpack.c.b16 %v74, %v73
  %v90 = vpack.c.b16 %v76, %v75
  %v91 = vpack.c.b16 %v78, %v77
  %v92 = vpack.c.b16 %v80, %v79
  %v93 = vpack.c.b16 %v82, %v81
  %v94 = vpack.c.b16 %v84, %v83
  %v95 = vpack.c.b16 %v86, %v85
  %v96 = vpack.c.b16 %v88, %v87
  %v121 = vunpack.c.l.b16 %v34
  %v122 = vunpack.c.l.b16 %v35
  %v123 = vunpack.c.l.b16 %v36
  %v124 = vunpack.c.l.b16 %v37
  %v125 = vunpack.c.l.b16 %v38
  %v126 = vunpack.c.l.b16 %v39
  %v127 = vunpack.c.l.b16 %v40
  %v128 = vunpack.c.l.b16 %v41
  %v129 = vunpack.c.l.b16 %v42
  %v130 = vunpack.c.l.b16 %v43
  %v131 = vunpack.c.l.b16 %v44
  %v132 = vunpack.c.l.b16 %v45
  %v133 = vunpack.c.l.b16 %v46
  %v134 = vunpack.c.l.b16 %v47
  %v135 = vunpack.c.l.b16 %v48
  %v136 = vunpack.c.l.b16 %v49
  %v137 = vpack.c.b16 %v122, %v121
  %v138 = vpack.c.b16 %v124, %v123
  %v139 = vpack.c.b16 %v126, %v125
  %v140 = vpack.c.b16 %v128, %v127
  %v141 = vpack.c.b16 %v130, %v129
  %v142 = vpack.c.b16 %v132, %v131
  %v143 = vpack.c.b16 %v134, %v133
  %v144 = vpack.c.b16 %v136, %v135
  %153 = vmatprep.subr.bf16.mxu0 0
  %154 = vmatpush1.bf16.msra.mxu0 %v144
  %155 = vmatprep.subr.bf16.mxu0 0
  %156 = vmatpush1.bf16.msra.mxu0 %v143
  %157 = vmatprep.subr.bf16.mxu0 0
  %158 = vmatpush1.bf16.msra.mxu0 %v142
  %159 = vmatprep.subr.bf16.mxu0 0
  %160 = vmatpush1.bf16.msra.mxu0 %v141
  %161 = vmatprep.subr.bf16.mxu0 0
  %162 = vmatpush1.bf16.msra.mxu0 %v140
  %163 = vmatprep.subr.bf16.mxu0 0
  %164 = vmatpush1.bf16.msra.mxu0 %v139
  %165 = vmatprep.subr.bf16.mxu0 0
  %166 = vmatpush1.bf16.msra.mxu0 %v138
  %167 = vmatprep.subr.bf16.mxu0 0
  %168 = vmatpush1.bf16.msra.mxu0 %v137
  %169 = vmatprep.subr.bf16.mxu0 0
  %170 = vmatpush2.bf16.msra.mxu0 0
  %171 = vmatprep.subr.bf16.mxu0 0
  %172 = vmatpush2.bf16.msra.mxu0 0
  %173 = vmatprep.subr.bf16.mxu0 0
  %174 = vmatpush2.bf16.msra.mxu0 0
  %175 = vmatprep.subr.bf16.mxu0 0
  %176 = vmatpush2.bf16.msra.mxu0 0
  %177 = vmatprep.subr.bf16.mxu0 0
  %178 = vmatpush2.bf16.msra.mxu0 0
  %179 = vmatprep.subr.bf16.mxu0 0
  %180 = vmatpush2.bf16.msra.mxu0 0
  %181 = vmatprep.subr.bf16.mxu0 0
  %182 = vmatpush2.bf16.msra.mxu0 0
  %183 = vmatprep.subr.bf16.mxu0 0
  %184 = vmatpush2.bf16.msra.mxu0 0
  %185 = vmatprep.mubr.bf16.mxu0 0
  %186 = vmatmul.mubr.bf16.gmra.mxu0 %v89
  %v187 = vpop.f32.mrf.mxu0
  %v188 = vadd.f32 %v55, %v187
  %v189 = vpop.f32.mrf.mxu0
  %v190 = vpop.f32.mrf.mxu0
  %v191 = vadd.f32 %v55, %v190
  %v192 = vpop.f32.mrf.mxu0
  %193 = vmatprep.mubr.bf16.mxu0 0
  %194 = vmatmul.mubr.bf16.gmra.mxu0 %v90
  %v195 = vpop.f32.mrf.mxu0
  %v196 = vadd.f32 %v55, %v195
  %v197 = vpop.f32.mrf.mxu0
  %v198 = vpop.f32.mrf.mxu0
  %v199 = vadd.f32 %v55, %v198
  %v200 = vpop.f32.mrf.mxu0
  %201 = vmatprep.mubr.bf16.mxu0 0
  %202 = vmatmul.mubr.bf16.gmra.mxu0 %v91
  %v203 = vpop.f32.mrf.mxu0
  %v204 = vadd.f32 %v55, %v203
  %v205 = vpop.f32.mrf.mxu0
  %v206 = vpop.f32.mrf.mxu0
  %v207 = vadd.f32 %v55, %v206
  %v208 = vpop.f32.mrf.mxu0
  %209 = vmatprep.mubr.bf16.mxu0 0
  %210 = vmatmul.mubr.bf16.gmra.mxu0 %v92
  %v211 = vpop.f32.mrf.mxu0
  %v212 = vadd.f32 %v55, %v211
  %v213 = vpop.f32.mrf.mxu0
  %v214 = vpop.f32.mrf.mxu0
  %v215 = vadd.f32 %v55, %v214
  %v216 = vpop.f32.mrf.mxu0
  %217 = vmatprep.mubr.bf16.mxu0 0
  %218 = vmatmul.mubr.bf16.gmra.mxu0 %v93
  %v219 = vpop.f32.mrf.mxu0
  %v220 = vadd.f32 %v55, %v219
  %v221 = vpop.f32.mrf.mxu0
  %v222 = vpop.f32.mrf.mxu0
  %v223 = vadd.f32 %v55, %v222
  %v224 = vpop.f32.mrf.mxu0
  %225 = vmatprep.mubr.bf16.mxu0 0
  %226 = vmatmul.mubr.bf16.gmra.mxu0 %v94
  %v227 = vpop.f32.mrf.mxu0
  %v228 = vadd.f32 %v55, %v227
  %v229 = vpop.f32.mrf.mxu0
  %v230 = vpop.f32.mrf.mxu0
  %v231 = vadd.f32 %v55, %v230
  %v232 = vpop.f32.mrf.mxu0
  %233 = vmatprep.mubr.bf16.mxu0 0
  %234 = vmatmul.mubr.bf16.gmra.mxu0 %v95
  %v235 = vpop.f32.mrf.mxu0
  %v236 = vadd.f32 %v55, %v235
  %v237 = vpop.f32.mrf.mxu0
  %v238 = vpop.f32.mrf.mxu0
  %v239 = vadd.f32 %v55, %v238
  %v240 = vpop.f32.mrf.mxu0
  %241 = vmatprep.mubr.bf16.mxu0 0
  %242 = vmatmul.mubr.bf16.gmra.mxu0 %v96
  %v243 = vpop.f32.mrf.mxu0
  %v244 = vadd.f32 %v55, %v243
  %v245 = vpop.f32.mrf.mxu0
  %v246 = vpop.f32.mrf.mxu0
  %v247 = vadd.f32 %v55, %v246
  %v248 = vpop.f32.mrf.mxu0
  %249 = vdwg.mxu0
  %v250 = vlaneseq
  %v251 = vshrl.u32 %v250, 7
  %v252 = vadd.s32 %v251, 8
  %v253 = vadd.s32 %v251, 16
  %v254 = vadd.s32 %v251, 24
  %v255 = vadd.s32 %v251, 32
  %v256 = vadd.s32 %v251, 40
  %v257 = vadd.s32 %v251, 48
  %v258 = vadd.s32 %v251, 56
  %v259 = vadd.s32 %v251, 64
  %v260 = vadd.s32 %v251, 72
  %v261 = vadd.s32 %v251, 80
  %v262 = vadd.s32 %v251, 88
  %v263 = vadd.s32 %v251, 96
  %v264 = vadd.s32 %v251, 104
  %v265 = vadd.s32 %v251, 112
  %v266 = vadd.s32 %v251, 120
  %s267 = smul.u32 0, 128
  %v268 = vstv %s267
  %v269 = vadd.s32 %v251, %v268
  %v270 = vadd.s32 %v252, %v268
  %v271 = vadd.s32 %v253, %v268
  %v272 = vadd.s32 %v254, %v268
  %v273 = vadd.s32 %v255, %v268
  %v274 = vadd.s32 %v256, %v268
  %v275 = vadd.s32 %v257, %v268
  %v276 = vadd.s32 %v258, %v268
  %v277 = vadd.s32 %v259, %v268
  %v278 = vadd.s32 %v260, %v268
  %v279 = vadd.s32 %v261, %v268
  %v280 = vadd.s32 %v262, %v268
  %v281 = vadd.s32 %v263, %v268
  %v282 = vadd.s32 %v264, %v268
  %v283 = vadd.s32 %v265, %v268
  %v284 = vadd.s32 %v266, %v268
  %vm285 = vcmp.lt.s32.totalorder %v269, 128
  %vm286 = vcmp.lt.s32.totalorder %v270, 128
  %vm287 = vcmp.lt.s32.totalorder %v271, 128
  %vm288 = vcmp.lt.s32.totalorder %v272, 128
  %vm289 = vcmp.lt.s32.totalorder %v273, 128
  %vm290 = vcmp.lt.s32.totalorder %v274, 128
  %vm291 = vcmp.lt.s32.totalorder %v275, 128
  %vm292 = vcmp.lt.s32.totalorder %v276, 128
  %vm293 = vcmp.lt.s32.totalorder %v277, 128
  %vm294 = vcmp.lt.s32.totalorder %v278, 128
  %vm295 = vcmp.lt.s32.totalorder %v279, 128
  %vm296 = vcmp.lt.s32.totalorder %v280, 128
  %vm297 = vcmp.lt.s32.totalorder %v281, 128
  %vm298 = vcmp.lt.s32.totalorder %v282, 128
  %vm299 = vcmp.lt.s32.totalorder %v283, 128
  %vm300 = vcmp.lt.s32.totalorder %v284, 128
  %v301 = vsel %vm285, %v188, 0.0
  %v302 = vsel %vm286, %v191, 0.0
  %v303 = vsel %vm287, %v196, 0.0
  %v304 = vsel %vm288, %v199, 0.0
  %v305 = vsel %vm289, %v204, 0.0
  %v306 = vsel %vm290, %v207, 0.0
  %v307 = vsel %vm291, %v212, 0.0
  %v308 = vsel %vm292, %v215, 0.0
  %v309 = vsel %vm293, %v220, 0.0
  %v310 = vsel %vm294, %v223, 0.0
  %v311 = vsel %vm295, %v228, 0.0
  %v312 = vsel %vm296, %v231, 0.0
  %v313 = vsel %vm297, %v236, 0.0
  %v314 = vsel %vm298, %v239, 0.0
  %v315 = vsel %vm299, %v244, 0.0
  %v316 = vsel %vm300, %v247, 0.0
  %v317 = vadd.f32 %v301, %v302
  %v318 = vadd.f32 %v317, %v303
  %v319 = vadd.f32 %v318, %v304
  %v320 = vadd.f32 %v319, %v305
  %v321 = vadd.f32 %v320, %v306
  %v322 = vadd.f32 %v321, %v307
  %v323 = vadd.f32 %v322, %v308
  %v324 = vadd.f32 %v323, %v309
  %v325 = vadd.f32 %v324, %v310
  %v326 = vadd.f32 %v325, %v311
  %v327 = vadd.f32 %v326, %v312
  %v328 = vadd.f32 %v327, %v313
  %v329 = vadd.f32 %v328, %v314
  %v330 = vadd.f32 %v329, %v315
  %v331 = vadd.f32 %v330, %v316
  %v332 = vrot.slane %v331, 4
  %v333 = vadd.f32 %v331, %v332
  %v334 = vrot.slane %v333, 2
  %v335 = vadd.f32 %v333, %v334
  %v336 = vrot.slane %v335, 1
  %v337 = vadd.f32 %v335, %v336
  %338 = vst [vmem:[%s4] sm:$0x1] %v337
  %v339 = vmul.f32 %v301, %v301
  %v340 = vmul.f32 %v302, %v302
  %v341 = vmul.f32 %v303, %v303
  %v342 = vmul.f32 %v304, %v304
  %v343 = vmul.f32 %v305, %v305
  %v344 = vmul.f32 %v306, %v306
  %v345 = vmul.f32 %v307, %v307
  %v346 = vmul.f32 %v308, %v308
  %v347 = vmul.f32 %v309, %v309
  %v348 = vmul.f32 %v310, %v310
  %v349 = vmul.f32 %v311, %v311
  %v350 = vmul.f32 %v312, %v312
  %v351 = vmul.f32 %v313, %v313
  %v352 = vmul.f32 %v314, %v314
  %v353 = vmul.f32 %v315, %v315
  %v354 = vmul.f32 %v316, %v316
  %v355 = vadd.f32 %v339, %v340
  %v356 = vadd.f32 %v355, %v341
  %v357 = vadd.f32 %v356, %v342
  %v358 = vadd.f32 %v357, %v343
  %v359 = vadd.f32 %v358, %v344
  %v360 = vadd.f32 %v359, %v345
  %v361 = vadd.f32 %v360, %v346
  %v362 = vadd.f32 %v361, %v347
  %v363 = vadd.f32 %v362, %v348
  %v364 = vadd.f32 %v363, %v349
  %v365 = vadd.f32 %v364, %v350
  %v366 = vadd.f32 %v365, %v351
  %v367 = vadd.f32 %v366, %v352
  %v368 = vadd.f32 %v367, %v353
  %v369 = vadd.f32 %v368, %v354
  %v370 = vrot.slane %v369, 4
  %v371 = vadd.f32 %v369, %v370
  %v372 = vrot.slane %v371, 2
  %v373 = vadd.f32 %v371, %v372
  %v374 = vrot.slane %v373, 1
  %v375 = vadd.f32 %v373, %v374
  %376 = vst [vmem:[%s5] sm:$0x1] %v375
  %v377 = vpack.c.bf16 %v191, %v188
  %v378 = vpack.c.bf16 %v199, %v196
  %v379 = vpack.c.bf16 %v207, %v204
  %v380 = vpack.c.bf16 %v215, %v212
  %v381 = vpack.c.bf16 %v223, %v220
  %v382 = vpack.c.bf16 %v231, %v228
  %v383 = vpack.c.bf16 %v239, %v236
  %v384 = vpack.c.bf16 %v247, %v244
  %v393 = vunpack.c.l.b16 %v377
  %v394 = vunpack.c.h.b16 %v377
  %v395 = vunpack.c.l.b16 %v378
  %v396 = vunpack.c.h.b16 %v378
  %v397 = vunpack.c.l.b16 %v379
  %v398 = vunpack.c.h.b16 %v379
  %v399 = vunpack.c.l.b16 %v380
  %v400 = vunpack.c.h.b16 %v380
  %v401 = vunpack.c.l.b16 %v381
  %v402 = vunpack.c.h.b16 %v381
  %v403 = vunpack.c.l.b16 %v382
  %v404 = vunpack.c.h.b16 %v382
  %v405 = vunpack.c.l.b16 %v383
  %v406 = vunpack.c.h.b16 %v383
  %v407 = vunpack.c.l.b16 %v384
  %v408 = vunpack.c.h.b16 %v384
  %v409 = vpack.c.b16 %v393, %v393
  %v410 = vpack.c.b16 %v394, %v394
  %v411 = vpack.c.b16 %v395, %v395
  %v412 = vpack.c.b16 %v396, %v396
  %v413 = vpack.c.b16 %v397, %v397
  %v414 = vpack.c.b16 %v398, %v398
  %v415 = vpack.c.b16 %v399, %v399
  %v416 = vpack.c.b16 %v400, %v400
  %v417 = vpack.c.b16 %v401, %v401
  %v418 = vpack.c.b16 %v402, %v402
  %v419 = vpack.c.b16 %v403, %v403
  %v420 = vpack.c.b16 %v404, %v404
  %v421 = vpack.c.b16 %v405, %v405
  %v422 = vpack.c.b16 %v406, %v406
  %v423 = vpack.c.b16 %v407, %v407
  %v424 = vpack.c.b16 %v408, %v408
  %441 = vst [vmem:[%s3] sm:$0xf] %v409
  %442 = vst [vmem:[%s3 + $0x4] sm:$0xf] %v410
  %443 = vst [vmem:[%s3 + $0x8] sm:$0xf] %v411
  %444 = vst [vmem:[%s3 + $0xc] sm:$0xf] %v412
  %445 = vst [vmem:[%s3 + $0x10] sm:$0xf] %v413
  %446 = vst [vmem:[%s3 + $0x14] sm:$0xf] %v414
  %447 = vst [vmem:[%s3 + $0x18] sm:$0xf] %v415
  %448 = vst [vmem:[%s3 + $0x1c] sm:$0xf] %v416
  %449 = vst [vmem:[%s3 + $0x20] sm:$0xf] %v417
  %450 = vst [vmem:[%s3 + $0x24] sm:$0xf] %v418
  %451 = vst [vmem:[%s3 + $0x28] sm:$0xf] %v419
  %452 = vst [vmem:[%s3 + $0x2c] sm:$0xf] %v420
  %453 = vst [vmem:[%s3 + $0x30] sm:$0xf] %v421
  %454 = vst [vmem:[%s3 + $0x34] sm:$0xf] %v422
  %455 = vst [vmem:[%s3 + $0x38] sm:$0xf] %v423
  %456 = vst [vmem:[%s3 + $0x3c] sm:$0xf] %v424
  // Predicated region
  $region14: #{discriminator_forward.9} parent=0 // pred_check
    _
  $region15: #{discriminator_forward.9} parent=0 // pred_check_branch
    %458 = sbr.rel (0) target = $region17
  $region16: #{discriminator_forward.9} parent=0 // pred_region
    _
  $region17: #{discriminator_forward.9} parent=0 // pred_fallthru
    _
  // Predicated region
  $region18: #{discriminator_forward.9} parent=0 // pred_check
    _
  $region19: #{discriminator_forward.9} parent=0 // pred_check_branch
    %460 = sbr.rel (0) target = $region21
  $region20: #{discriminator_forward.9} parent=0 // pred_region
    _
  $region21: #{discriminator_forward.9} parent=0 // pred_fallthru
    _
  // Predicated region
  $region22: #{discriminator_forward.9} parent=0 // pred_check
    _
  $region23: #{discriminator_forward.9} parent=0 // pred_check_branch
    %462 = sbr.rel (0) target = $region25
  $region24: #{discriminator_forward.9} parent=0 // pred_region
    _
  $region25: #{discriminator_forward.9} parent=0 // pred_fallthru
    _
  // Predicated region
  $region26: #{discriminator_forward.9} parent=0 // pred_check
    _
  $region27: #{discriminator_forward.9} parent=0 // pred_check_branch
    %464 = sbr.rel (0) target = $region29
  $region28: #{discriminator_forward.9} parent=0 // pred_region
    _
  $region29: #{discriminator_forward.9} parent=0 // pred_fallthru
    _
  // Predicated region
  $region30: #{discriminator_forward.9} parent=0 // pred_check
    _
  $region31: #{discriminator_forward.9} parent=0 // pred_check_branch
    %466 = sbr.rel (0) target = $region33
  $region32: #{discriminator_forward.9} parent=0 // pred_region
    _
  $region33: #{discriminator_forward.9} parent=0 // pred_fallthru
    _
  // Predicated region
  $region34: #{discriminator_forward.9} parent=0 // pred_check
    _
  $region35: #{discriminator_forward.9} parent=0 // pred_check_branch
    %468 = sbr.rel (0) target = $region37
  $region36: #{discriminator_forward.9} parent=0 // pred_region
    _
  $region37: #{discriminator_forward.9} parent=0 // pred_fallthru
    _

// kernel: discriminator_forward.10
$region0: #{discriminator_forward.10}
  #allocation0 [shape = 'u32[]', space=smem, size = 0x4, offset = 0x4, fixed_abs, tag = 'smem constant byte address 0x4 - core index']
  #allocation1 [shape = 'u32[144,128]{1,0:T(1,128)}', space=vmem, size = 0x12000, scoped, tag = 'internal scratch']
  %s0 = inlined_call_operand.vmem [shape: bf16[128,128], index: 0, kind: input, shape index: {}]
  %s1 = inlined_call_operand.vmem [shape: f32[1,128], index: 1, kind: input, shape index: {}]
  %s2 = inlined_call_operand.vmem [shape: f32[1,128], index: 2, kind: input, shape index: {}]
  %s3 = inlined_call_operand.vmem [shape: f32[1,128], index: 3, kind: input, shape index: {}]
  %s4 = inlined_call_operand.vmem [shape: f32[1,128], index: 4, kind: input, shape index: {}]
  %s5 = inlined_call_operand.vmem [shape: bf16[128,128], index: 5, kind: output, shape index: {}]
  %s6 = sld [smem:[#allocation0]]
  $region30: #{discriminator_forward.10} parent=0
    _
  %s8 = ssub.s32 1, %s6
  %s9 = scalar_select 0, %s8, %s6
  // Predicated region
  $region2: #{discriminator_forward.10} parent=0 // pred_check
    _
  $region3: #{discriminator_forward.10} parent=0 // pred_check_branch
    %11 = sbr.rel (0) target = $region5
  $region4: #{discriminator_forward.10} parent=0 // pred_region
    _
  $region5: #{discriminator_forward.10} parent=0 // pred_fallthru
    _
  // Predicated region
  $region6: #{discriminator_forward.10} parent=0 // pred_check
    _
  $region7: #{discriminator_forward.10} parent=0 // pred_check_branch
    %13 = sbr.rel (0) target = $region9
  $region8: #{discriminator_forward.10} parent=0 // pred_region
    _
  $region9: #{discriminator_forward.10} parent=0 // pred_fallthru
    _
  // Predicated region
  $region10: #{discriminator_forward.10} parent=0 // pred_check
    _
  $region11: #{discriminator_forward.10} parent=0 // pred_check_branch
    %15 = sbr.rel (0) target = $region13
  $region12: #{discriminator_forward.10} parent=0 // pred_region
    _
  $region13: #{discriminator_forward.10} parent=0 // pred_fallthru
    _
  // Predicated region
  $region14: #{discriminator_forward.10} parent=0 // pred_check
    _
  $region15: #{discriminator_forward.10} parent=0 // pred_check_branch
    %17 = sbr.rel (0) target = $region17
  $region16: #{discriminator_forward.10} parent=0 // pred_region
    _
  $region17: #{discriminator_forward.10} parent=0 // pred_fallthru
    _
  // Predicated region
  $region18: #{discriminator_forward.10} parent=0 // pred_check
    _
  $region19: #{discriminator_forward.10} parent=0 // pred_check_branch
    %19 = sbr.rel (0) target = $region21
  $region20: #{discriminator_forward.10} parent=0 // pred_region
    _
  $region21: #{discriminator_forward.10} parent=0 // pred_fallthru
    _
  %v20 = vld [vmem:[%s1] sm:$0x1]
  %v21 = vmul.f32 %v20, 0.0078125
  %v22 = vld [vmem:[%s2] sm:$0x1]
  %v23 = vmul.f32 %v22, 0.0078125
  %v24 = vmul.f32 %v21, %v21
  %v25 = vsub.f32 %v23, %v24
  %v26 = vmax.f32 %v25, 0.0
  %v27 = vadd.f32 %v26, 1e-05
  %v28 = vrsqrt.pop %v27
  %v29 = vld [vmem:[%s3] sm:$0x1]
  %v30 = vmul.f32 %v28, %v29
  %v31 = vld [vmem:[%s0] sm:$0xf]
  %v32 = vld [vmem:[%s0 + $0x4] sm:$0xf]
  %v33 = vld [vmem:[%s0 + $0x8] sm:$0xf]
  %v34 = vld [vmem:[%s0 + $0xc] sm:$0xf]
  %v35 = vld [vmem:[%s0 + $0x10] sm:$0xf]
  %v36 = vld [vmem:[%s0 + $0x14] sm:$0xf]
  %v37 = vld [vmem:[%s0 + $0x18] sm:$0xf]
  %v38 = vld [vmem:[%s0 + $0x1c] sm:$0xf]
  %v39 = vld [vmem:[%s0 + $0x20] sm:$0xf]
  %v40 = vld [vmem:[%s0 + $0x24] sm:$0xf]
  %v41 = vld [vmem:[%s0 + $0x28] sm:$0xf]
  %v42 = vld [vmem:[%s0 + $0x2c] sm:$0xf]
  %v43 = vld [vmem:[%s0 + $0x30] sm:$0xf]
  %v44 = vld [vmem:[%s0 + $0x34] sm:$0xf]
  %v45 = vld [vmem:[%s0 + $0x38] sm:$0xf]
  %v46 = vld [vmem:[%s0 + $0x3c] sm:$0xf]
  %v47 = vunpack.c.l.bf16 %v31
  %v48 = vunpack.c.l.bf16 %v32
  %v49 = vunpack.c.l.bf16 %v33
  %v50 = vunpack.c.l.bf16 %v34
  %v51 = vunpack.c.l.bf16 %v35
  %v52 = vunpack.c.l.bf16 %v36
  %v53 = vunpack.c.l.bf16 %v37
  %v54 = vunpack.c.l.bf16 %v38
  %v55 = vunpack.c.l.bf16 %v39
  %v56 = vunpack.c.l.bf16 %v40
  %v57 = vunpack.c.l.bf16 %v41
  %v58 = vunpack.c.l.bf16 %v42
  %v59 = vunpack.c.l.bf16 %v43
  %v60 = vunpack.c.l.bf16 %v44
  %v61 = vunpack.c.l.bf16 %v45
  %v62 = vunpack.c.l.bf16 %v46
  %v64 = vlaneseq
  %v65 = vshrl.u32 %v64, 7
  %v66 = vsub.s32 0, %v65
  %v67 = vrot.slane %v21, %v66
  %v69 = vsub.f32 %v47, %v67
  %v70 = vsub.f32 %v48, %v67
  %v71 = vsub.f32 %v49, %v67
  %v72 = vsub.f32 %v50, %v67
  %v73 = vsub.f32 %v51, %v67
  %v74 = vsub.f32 %v52, %v67
  %v75 = vsub.f32 %v53, %v67
  %v76 = vsub.f32 %v54, %v67
  %v77 = vsub.f32 %v55, %v67
  %v78 = vsub.f32 %v56, %v67
  %v79 = vsub.f32 %v57, %v67
  %v80 = vsub.f32 %v58, %v67
  %v81 = vsub.f32 %v59, %v67
  %v82 = vsub.f32 %v60, %v67
  %v83 = vsub.f32 %v61, %v67
  %v84 = vsub.f32 %v62, %v67
  %v86 = vlaneseq
  %v87 = vshrl.u32 %v86, 7
  %v88 = vsub.s32 0, %v87
  %v89 = vrot.slane %v30, %v88
  %v91 = vmul.f32 %v69, %v89
  %v92 = vmul.f32 %v70, %v89
  %v93 = vmul.f32 %v71, %v89
  %v94 = vmul.f32 %v72, %v89
  %v95 = vmul.f32 %v73, %v89
  %v96 = vmul.f32 %v74, %v89
  %v97 = vmul.f32 %v75, %v89
  %v98 = vmul.f32 %v76, %v89
  %v99 = vmul.f32 %v77, %v89
  %v100 = vmul.f32 %v78, %v89
  %v101 = vmul.f32 %v79, %v89
  %v102 = vmul.f32 %v80, %v89
  %v103 = vmul.f32 %v81, %v89
  %v104 = vmul.f32 %v82, %v89
  %v105 = vmul.f32 %v83, %v89
  %v106 = vmul.f32 %v84, %v89
  %v107 = vld [vmem:[%s4] sm:$0x1]
  %v109 = vlaneseq
  %v110 = vshrl.u32 %v109, 7
  %v111 = vsub.s32 0, %v110
  %v112 = vrot.slane %v107, %v111
  %v114 = vadd.f32 %v91, %v112
  %v115 = vadd.f32 %v92, %v112
  %v116 = vadd.f32 %v93, %v112
  %v117 = vadd.f32 %v94, %v112
  %v118 = vadd.f32 %v95, %v112
  %v119 = vadd.f32 %v96, %v112
  %v120 = vadd.f32 %v97, %v112
  %v121 = vadd.f32 %v98, %v112
  %v122 = vadd.f32 %v99, %v112
  %v123 = vadd.f32 %v100, %v112
  %v124 = vadd.f32 %v101, %v112
  %v125 = vadd.f32 %v102, %v112
  %v126 = vadd.f32 %v103, %v112
  %v127 = vadd.f32 %v104, %v112
  %v128 = vadd.f32 %v105, %v112
  %v129 = vadd.f32 %v106, %v112
  %vm130 = vcmp.gt.f32.partialorder %v114, 0.0
  %vm131 = vcmp.gt.f32.partialorder %v115, 0.0
  %vm132 = vcmp.gt.f32.partialorder %v116, 0.0
  %vm133 = vcmp.gt.f32.partialorder %v117, 0.0
  %vm134 = vcmp.gt.f32.partialorder %v118, 0.0
  %vm135 = vcmp.gt.f32.partialorder %v119, 0.0
  %vm136 = vcmp.gt.f32.partialorder %v120, 0.0
  %vm137 = vcmp.gt.f32.partialorder %v121, 0.0
  %vm138 = vcmp.gt.f32.partialorder %v122, 0.0
  %vm139 = vcmp.gt.f32.partialorder %v123, 0.0
  %vm140 = vcmp.gt.f32.partialorder %v124, 0.0
  %vm141 = vcmp.gt.f32.partialorder %v125, 0.0
  %vm142 = vcmp.gt.f32.partialorder %v126, 0.0
  %vm143 = vcmp.gt.f32.partialorder %v127, 0.0
  %vm144 = vcmp.gt.f32.partialorder %v128, 0.0
  %vm145 = vcmp.gt.f32.partialorder %v129, 0.0
  %v146 = vmul.f32 %v114, 0.2
  %v147 = vmul.f32 %v115, 0.2
  %v148 = vmul.f32 %v116, 0.2
  %v149 = vmul.f32 %v117, 0.2
  %v150 = vmul.f32 %v118, 0.2
  %v151 = vmul.f32 %v119, 0.2
  %v152 = vmul.f32 %v120, 0.2
  %v153 = vmul.f32 %v121, 0.2
  %v154 = vmul.f32 %v122, 0.2
  %v155 = vmul.f32 %v123, 0.2
  %v156 = vmul.f32 %v124, 0.2
  %v157 = vmul.f32 %v125, 0.2
  %v158 = vmul.f32 %v126, 0.2
  %v159 = vmul.f32 %v127, 0.2
  %v160 = vmul.f32 %v128, 0.2
  %v161 = vmul.f32 %v129, 0.2
  %v162 = vsel %vm130, %v114, %v146
  %v163 = vsel %vm131, %v115, %v147
  %v164 = vsel %vm132, %v116, %v148
  %v165 = vsel %vm133, %v117, %v149
  %v166 = vsel %vm134, %v118, %v150
  %v167 = vsel %vm135, %v119, %v151
  %v168 = vsel %vm136, %v120, %v152
  %v169 = vsel %vm137, %v121, %v153
  %v170 = vsel %vm138, %v122, %v154
  %v171 = vsel %vm139, %v123, %v155
  %v172 = vsel %vm140, %v124, %v156
  %v173 = vsel %vm141, %v125, %v157
  %v174 = vsel %vm142, %v126, %v158
  %v175 = vsel %vm143, %v127, %v159
  %v176 = vsel %vm144, %v128, %v160
  %v177 = vsel %vm145, %v129, %v161
  %v178 = vpack.c.bf16 %v163, %v162
  %v179 = vpack.c.bf16 %v165, %v164
  %v180 = vpack.c.bf16 %v167, %v166
  %v181 = vpack.c.bf16 %v169, %v168
  %v182 = vpack.c.bf16 %v171, %v170
  %v183 = vpack.c.bf16 %v173, %v172
  %v184 = vpack.c.bf16 %v175, %v174
  %v185 = vpack.c.bf16 %v177, %v176
  %v194 = vunpack.c.l.b16 %v178
  %v195 = vunpack.c.h.b16 %v178
  %v196 = vunpack.c.l.b16 %v179
  %v197 = vunpack.c.h.b16 %v179
  %v198 = vunpack.c.l.b16 %v180
  %v199 = vunpack.c.h.b16 %v180
  %v200 = vunpack.c.l.b16 %v181
  %v201 = vunpack.c.h.b16 %v181
  %v202 = vunpack.c.l.b16 %v182
  %v203 = vunpack.c.h.b16 %v182
  %v204 = vunpack.c.l.b16 %v183
  %v205 = vunpack.c.h.b16 %v183
  %v206 = vunpack.c.l.b16 %v184
  %v207 = vunpack.c.h.b16 %v184
  %v208 = vunpack.c.l.b16 %v185
  %v209 = vunpack.c.h.b16 %v185
  %v210 = vpack.c.b16 %v194, %v194
  %v211 = vpack.c.b16 %v195, %v195
  %v212 = vpack.c.b16 %v196, %v196
  %v213 = vpack.c.b16 %v197, %v197
  %v214 = vpack.c.b16 %v198, %v198
  %v215 = vpack.c.b16 %v199, %v199
  %v216 = vpack.c.b16 %v200, %v200
  %v217 = vpack.c.b16 %v201, %v201
  %v218 = vpack.c.b16 %v202, %v202
  %v219 = vpack.c.b16 %v203, %v203
  %v220 = vpack.c.b16 %v204, %v204
  %v221 = vpack.c.b16 %v205, %v205
  %v222 = vpack.c.b16 %v206, %v206
  %v223 = vpack.c.b16 %v207, %v207
  %v224 = vpack.c.b16 %v208, %v208
  %v225 = vpack.c.b16 %v209, %v209
  %242 = vst [vmem:[%s5] sm:$0xf] %v210
  %243 = vst [vmem:[%s5 + $0x4] sm:$0xf] %v211
  %244 = vst [vmem:[%s5 + $0x8] sm:$0xf] %v212
  %245 = vst [vmem:[%s5 + $0xc] sm:$0xf] %v213
  %246 = vst [vmem:[%s5 + $0x10] sm:$0xf] %v214
  %247 = vst [vmem:[%s5 + $0x14] sm:$0xf] %v215
  %248 = vst [vmem:[%s5 + $0x18] sm:$0xf] %v216
  %249 = vst [vmem:[%s5 + $0x1c] sm:$0xf] %v217
  %250 = vst [vmem:[%s5 + $0x20] sm:$0xf] %v218
  %251 = vst [vmem:[%s5 + $0x24] sm:$0xf] %v219
  %252 = vst [vmem:[%s5 + $0x28] sm:$0xf] %v220
  %253 = vst [vmem:[%s5 + $0x2c] sm:$0xf] %v221
  %254 = vst [vmem:[%s5 + $0x30] sm:$0xf] %v222
  %255 = vst [vmem:[%s5 + $0x34] sm:$0xf] %v223
  %256 = vst [vmem:[%s5 + $0x38] sm:$0xf] %v224
  %257 = vst [vmem:[%s5 + $0x3c] sm:$0xf] %v225
  // Predicated region
  $region22: #{discriminator_forward.10} parent=0 // pred_check
    _
  $region23: #{discriminator_forward.10} parent=0 // pred_check_branch
    %259 = sbr.rel (0) target = $region25
  $region24: #{discriminator_forward.10} parent=0 // pred_region
    _
  $region25: #{discriminator_forward.10} parent=0 // pred_fallthru
    _
  // Predicated region
  $region26: #{discriminator_forward.10} parent=0 // pred_check
    _
  $region27: #{discriminator_forward.10} parent=0 // pred_check_branch
    %261 = sbr.rel (0) target = $region29
  $region28: #{discriminator_forward.10} parent=0 // pred_region
    _
  $region29: #{discriminator_forward.10} parent=0 // pred_fallthru
    _

// kernel: discriminator_forward.12
$region0: #{discriminator_forward.12}
  #allocation0 [shape = 'u32[]', space=smem, size = 0x4, offset = 0x4, fixed_abs, tag = 'smem constant byte address 0x4 - core index']
  #allocation1 [shape = 'u32[144,128]{1,0:T(1,128)}', space=vmem, size = 0x12000, scoped, tag = 'internal scratch']
  %s0 = inlined_call_operand.vmem [shape: bf16[32,128], index: 0, kind: input, shape index: {}]
  %s1 = inlined_call_operand.vmem [shape: f32[1,128], index: 1, kind: input, shape index: {}]
  %s2 = inlined_call_operand.vmem [shape: f32[1,128], index: 2, kind: input, shape index: {}]
  %s3 = inlined_call_operand.vmem [shape: f32[1,128], index: 3, kind: input, shape index: {}]
  %s4 = inlined_call_operand.vmem [shape: f32[1,128], index: 4, kind: input, shape index: {}]
  %s5 = inlined_call_operand.vmem [shape: bf16[32,128], index: 5, kind: output, shape index: {}]
  %s6 = sld [smem:[#allocation0]]
  $region30: #{discriminator_forward.12} parent=0
    _
  %s8 = ssub.s32 1, %s6
  %s9 = scalar_select 0, %s8, %s6
  // Predicated region
  $region2: #{discriminator_forward.12} parent=0 // pred_check
    _
  $region3: #{discriminator_forward.12} parent=0 // pred_check_branch
    %11 = sbr.rel (0) target = $region5
  $region4: #{discriminator_forward.12} parent=0 // pred_region
    _
  $region5: #{discriminator_forward.12} parent=0 // pred_fallthru
    _
  // Predicated region
  $region6: #{discriminator_forward.12} parent=0 // pred_check
    _
  $region7: #{discriminator_forward.12} parent=0 // pred_check_branch
    %13 = sbr.rel (0) target = $region9
  $region8: #{discriminator_forward.12} parent=0 // pred_region
    _
  $region9: #{discriminator_forward.12} parent=0 // pred_fallthru
    _
  // Predicated region
  $region10: #{discriminator_forward.12} parent=0 // pred_check
    _
  $region11: #{discriminator_forward.12} parent=0 // pred_check_branch
    %15 = sbr.rel (0) target = $region13
  $region12: #{discriminator_forward.12} parent=0 // pred_region
    _
  $region13: #{discriminator_forward.12} parent=0 // pred_fallthru
    _
  // Predicated region
  $region14: #{discriminator_forward.12} parent=0 // pred_check
    _
  $region15: #{discriminator_forward.12} parent=0 // pred_check_branch
    %17 = sbr.rel (0) target = $region17
  $region16: #{discriminator_forward.12} parent=0 // pred_region
    _
  $region17: #{discriminator_forward.12} parent=0 // pred_fallthru
    _
  // Predicated region
  $region18: #{discriminator_forward.12} parent=0 // pred_check
    _
  $region19: #{discriminator_forward.12} parent=0 // pred_check_branch
    %19 = sbr.rel (0) target = $region21
  $region20: #{discriminator_forward.12} parent=0 // pred_region
    _
  $region21: #{discriminator_forward.12} parent=0 // pred_fallthru
    _
  %v20 = vld [vmem:[%s1] sm:$0x1]
  %v21 = vmul.f32 %v20, 0.03125
  %v22 = vld [vmem:[%s2] sm:$0x1]
  %v23 = vmul.f32 %v22, 0.03125
  %v24 = vmul.f32 %v21, %v21
  %v25 = vsub.f32 %v23, %v24
  %v26 = vmax.f32 %v25, 0.0
  %v27 = vadd.f32 %v26, 1e-05
  %v28 = vrsqrt.pop %v27
  %v29 = vld [vmem:[%s3] sm:$0x1]
  %v30 = vmul.f32 %v28, %v29
  %v31 = vld [vmem:[%s0] sm:$0xf]
  %v32 = vld [vmem:[%s0 + $0x4] sm:$0xf]
  %v33 = vld [vmem:[%s0 + $0x8] sm:$0xf]
  %v34 = vld [vmem:[%s0 + $0xc] sm:$0xf]
  %v35 = vunpack.c.l.bf16 %v31
  %v36 = vunpack.c.l.bf16 %v32
  %v37 = vunpack.c.l.bf16 %v33
  %v38 = vunpack.c.l.bf16 %v34
  %v40 = vlaneseq
  %v41 = vshrl.u32 %v40, 7
  %v42 = vsub.s32 0, %v41
  %v43 = vrot.slane %v21, %v42
  %v45 = vsub.f32 %v35, %v43
  %v46 = vsub.f32 %v36, %v43
  %v47 = vsub.f32 %v37, %v43
  %v48 = vsub.f32 %v38, %v43
  %v50 = vlaneseq
  %v51 = vshrl.u32 %v50, 7
  %v52 = vsub.s32 0, %v51
  %v53 = vrot.slane %v30, %v52
  %v55 = vmul.f32 %v45, %v53
  %v56 = vmul.f32 %v46, %v53
  %v57 = vmul.f32 %v47, %v53
  %v58 = vmul.f32 %v48, %v53
  %v59 = vld [vmem:[%s4] sm:$0x1]
  %v61 = vlaneseq
  %v62 = vshrl.u32 %v61, 7
  %v63 = vsub.s32 0, %v62
  %v64 = vrot.slane %v59, %v63
  %v66 = vadd.f32 %v55, %v64
  %v67 = vadd.f32 %v56, %v64
  %v68 = vadd.f32 %v57, %v64
  %v69 = vadd.f32 %v58, %v64
  %vm70 = vcmp.gt.f32.partialorder %v66, 0.0
  %vm71 = vcmp.gt.f32.partialorder %v67, 0.0
  %vm72 = vcmp.gt.f32.partialorder %v68, 0.0
  %vm73 = vcmp.gt.f32.partialorder %v69, 0.0
  %v74 = vmul.f32 %v66, 0.2
  %v75 = vmul.f32 %v67, 0.2
  %v76 = vmul.f32 %v68, 0.2
  %v77 = vmul.f32 %v69, 0.2
  %v78 = vsel %vm70, %v66, %v74
  %v79 = vsel %vm71, %v67, %v75
  %v80 = vsel %vm72, %v68, %v76
  %v81 = vsel %vm73, %v69, %v77
  %v82 = vpack.c.bf16 %v79, %v78
  %v83 = vpack.c.bf16 %v81, %v80
  %v86 = vunpack.c.l.b16 %v82
  %v87 = vunpack.c.h.b16 %v82
  %v88 = vunpack.c.l.b16 %v83
  %v89 = vunpack.c.h.b16 %v83
  %v90 = vpack.c.b16 %v86, %v86
  %v91 = vpack.c.b16 %v87, %v87
  %v92 = vpack.c.b16 %v88, %v88
  %v93 = vpack.c.b16 %v89, %v89
  %98 = vst [vmem:[%s5] sm:$0xf] %v90
  %99 = vst [vmem:[%s5 + $0x4] sm:$0xf] %v91
  %100 = vst [vmem:[%s5 + $0x8] sm:$0xf] %v92
  %101 = vst [vmem:[%s5 + $0xc] sm:$0xf] %v93
  // Predicated region
  $region22: #{discriminator_forward.12} parent=0 // pred_check
    _
  $region23: #{discriminator_forward.12} parent=0 // pred_check_branch
    %103 = sbr.rel (0) target = $region25
  $region24: #{discriminator_forward.12} parent=0 // pred_region
    _
  $region25: #{discriminator_forward.12} parent=0 // pred_fallthru
    _
  // Predicated region
  $region26: #{discriminator_forward.12} parent=0 // pred_check
    _
  $region27: #{discriminator_forward.12} parent=0 // pred_check_branch
    %105 = sbr.rel (0) target = $region29
  $region28: #{discriminator_forward.12} parent=0 // pred_region
    _
  $region29: #{discriminator_forward.12} parent=0 // pred_fallthru
    _

// kernel: discriminator_forward.11
$region0: #{discriminator_forward.11}
  #allocation0 [shape = 'u32[]', space=smem, size = 0x4, offset = 0x4, fixed_abs, tag = 'smem constant byte address 0x4 - core index']
  #allocation1 [shape = 'u32[144,128]{1,0:T(1,128)}', space=vmem, size = 0x12000, scoped, tag = 'internal scratch']
  %s0 = inlined_call_operand.vmem [shape: bf16[32,256], index: 0, kind: input, shape index: {}]
  %s1 = inlined_call_operand.vmem [shape: bf16[256,128], index: 1, kind: input, shape index: {}]
  %s2 = inlined_call_operand.vmem [shape: f32[1,128], index: 2, kind: input, shape index: {}]
  %s3 = inlined_call_operand.vmem [shape: bf16[32,128], index: 3, kind: output, shape index: {0}]
  %s4 = inlined_call_operand.vmem [shape: f32[1,1,128], index: 4, kind: output, shape index: {1}]
  %s5 = inlined_call_operand.vmem [shape: f32[1,1,128], index: 5, kind: output, shape index: {2}]
  %6 = xla_tuple %s3, %s4, %s5
  %s7 = sld [smem:[#allocation0]]
  $region38: #{discriminator_forward.11} parent=0
    _
  %s9 = ssub.s32 1, %s7
  %s10 = scalar_select 0, %s9, %s7
  // Predicated region
  $region2: #{discriminator_forward.11} parent=0 // pred_check
    _
  $region3: #{discriminator_forward.11} parent=0 // pred_check_branch
    %12 = sbr.rel (0) target = $region5
  $region4: #{discriminator_forward.11} parent=0 // pred_region
    _
  $region5: #{discriminator_forward.11} parent=0 // pred_fallthru
    _
  // Predicated region
  $region6: #{discriminator_forward.11} parent=0 // pred_check
    _
  $region7: #{discriminator_forward.11} parent=0 // pred_check_branch
    %14 = sbr.rel (0) target = $region9
  $region8: #{discriminator_forward.11} parent=0 // pred_region
    _
  $region9: #{discriminator_forward.11} parent=0 // pred_fallthru
    _
  // Predicated region
  $region10: #{discriminator_forward.11} parent=0 // pred_check
    _
  $region11: #{discriminator_forward.11} parent=0 // pred_check_branch
    %16 = sbr.rel (0) target = $region13
  $region12: #{discriminator_forward.11} parent=0 // pred_region
    _
  $region13: #{discriminator_forward.11} parent=0 // pred_fallthru
    _
  %v18 = vld [vmem:[%s0] sm:$0xff]
  %v19 = vld [vmem:[%s0 + $0x8] sm:$0xff]
  %v20 = vld [vmem:[%s0 + $0x10] sm:$0xff]
  %v21 = vld [vmem:[%s0 + $0x18] sm:$0xff]
  %v22 = vld [vmem:[%s1] sm:$0xf]
  %v23 = vld [vmem:[%s1 + $0x4] sm:$0xf]
  %v24 = vld [vmem:[%s1 + $0x8] sm:$0xf]
  %v25 = vld [vmem:[%s1 + $0xc] sm:$0xf]
  %v26 = vld [vmem:[%s1 + $0x10] sm:$0xf]
  %v27 = vld [vmem:[%s1 + $0x14] sm:$0xf]
  %v28 = vld [vmem:[%s1 + $0x18] sm:$0xf]
  %v29 = vld [vmem:[%s1 + $0x1c] sm:$0xf]
  %v30 = vld [vmem:[%s1 + $0x20] sm:$0xf]
  %v31 = vld [vmem:[%s1 + $0x24] sm:$0xf]
  %v32 = vld [vmem:[%s1 + $0x28] sm:$0xf]
  %v33 = vld [vmem:[%s1 + $0x2c] sm:$0xf]
  %v34 = vld [vmem:[%s1 + $0x30] sm:$0xf]
  %v35 = vld [vmem:[%s1 + $0x34] sm:$0xf]
  %v36 = vld [vmem:[%s1 + $0x38] sm:$0xf]
  %v37 = vld [vmem:[%s1 + $0x3c] sm:$0xf]
  %v38 = vld [vmem:[%s1 + $0x40] sm:$0xf]
  %v39 = vld [vmem:[%s1 + $0x44] sm:$0xf]
  %v40 = vld [vmem:[%s1 + $0x48] sm:$0xf]
  %v41 = vld [vmem:[%s1 + $0x4c] sm:$0xf]
  %v42 = vld [vmem:[%s1 + $0x50] sm:$0xf]
  %v43 = vld [vmem:[%s1 + $0x54] sm:$0xf]
  %v44 = vld [vmem:[%s1 + $0x58] sm:$0xf]
  %v45 = vld [vmem:[%s1 + $0x5c] sm:$0xf]
  %v46 = vld [vmem:[%s1 + $0x60] sm:$0xf]
  %v47 = vld [vmem:[%s1 + $0x64] sm:$0xf]
  %v48 = vld [vmem:[%s1 + $0x68] sm:$0xf]
  %v49 = vld [vmem:[%s1 + $0x6c] sm:$0xf]
  %v50 = vld [vmem:[%s1 + $0x70] sm:$0xf]
  %v51 = vld [vmem:[%s1 + $0x74] sm:$0xf]
  %v52 = vld [vmem:[%s1 + $0x78] sm:$0xf]
  %v53 = vld [vmem:[%s1 + $0x7c] sm:$0xf]
  %v54 = vld [vmem:[%s2] sm:$0x1]
  %v56 = vlaneseq
  %v57 = vshrl.u32 %v56, 7
  %v58 = vsub.s32 0, %v57
  %v59 = vrot.slane %v54, %v58
  %v65 = vunpack.c.l.b16 %v18
  %v66 = vunpack.c.h.b16 %v18
  %v67 = vunpack.c.l.b16 %v19
  %v68 = vunpack.c.h.b16 %v19
  %v69 = vunpack.c.l.b16 %v20
  %v70 = vunpack.c.h.b16 %v20
  %v71 = vunpack.c.l.b16 %v21
  %v72 = vunpack.c.h.b16 %v21
  %v73 = vpack.c.b16 %v67, %v65
  %v74 = vpack.c.b16 %v68, %v66
  %v75 = vpack.c.b16 %v71, %v69
  %v76 = vpack.c.b16 %v72, %v70
  %v113 = vunpack.c.l.b16 %v22
  %v114 = vunpack.c.l.b16 %v23
  %v115 = vunpack.c.l.b16 %v24
  %v116 = vunpack.c.l.b16 %v25
  %v117 = vunpack.c.l.b16 %v26
  %v118 = vunpack.c.l.b16 %v27
  %v119 = vunpack.c.l.b16 %v28
  %v120 = vunpack.c.l.b16 %v29
  %v121 = vunpack.c.l.b16 %v30
  %v122 = vunpack.c.l.b16 %v31
  %v123 = vunpack.c.l.b16 %v32
  %v124 = vunpack.c.l.b16 %v33
  %v125 = vunpack.c.l.b16 %v34
  %v126 = vunpack.c.l.b16 %v35
  %v127 = vunpack.c.l.b16 %v36
  %v128 = vunpack.c.l.b16 %v37
  %v129 = vunpack.c.l.b16 %v38
  %v130 = vunpack.c.l.b16 %v39
  %v131 = vunpack.c.l.b16 %v40
  %v132 = vunpack.c.l.b16 %v41
  %v133 = vunpack.c.l.b16 %v42
  %v134 = vunpack.c.l.b16 %v43
  %v135 = vunpack.c.l.b16 %v44
  %v136 = vunpack.c.l.b16 %v45
  %v137 = vunpack.c.l.b16 %v46
  %v138 = vunpack.c.l.b16 %v47
  %v139 = vunpack.c.l.b16 %v48
  %v140 = vunpack.c.l.b16 %v49
  %v141 = vunpack.c.l.b16 %v50
  %v142 = vunpack.c.l.b16 %v51
  %v143 = vunpack.c.l.b16 %v52
  %v144 = vunpack.c.l.b16 %v53
  %v145 = vpack.c.b16 %v114, %v113
  %v146 = vpack.c.b16 %v116, %v115
  %v147 = vpack.c.b16 %v118, %v117
  %v148 = vpack.c.b16 %v120, %v119
  %v149 = vpack.c.b16 %v122, %v121
  %v150 = vpack.c.b16 %v124, %v123
  %v151 = vpack.c.b16 %v126, %v125
  %v152 = vpack.c.b16 %v128, %v127
  %v153 = vpack.c.b16 %v130, %v129
  %v154 = vpack.c.b16 %v132, %v131
  %v155 = vpack.c.b16 %v134, %v133
  %v156 = vpack.c.b16 %v136, %v135
  %v157 = vpack.c.b16 %v138, %v137
  %v158 = vpack.c.b16 %v140, %v139
  %v159 = vpack.c.b16 %v142, %v141
  %v160 = vpack.c.b16 %v144, %v143
  %177 = vmatprep.subr.bf16.mxu0 0
  %178 = vmatpush1.bf16.msra.mxu0 %v152
  %179 = vmatprep.subr.bf16.mxu0 0
  %180 = vmatpush1.bf16.msra.mxu0 %v151
  %181 = vmatprep.subr.bf16.mxu0 0
  %182 = vmatpush1.bf16.msra.mxu0 %v150
  %183 = vmatprep.subr.bf16.mxu0 0
  %184 = vmatpush1.bf16.msra.mxu0 %v149
  %185 = vmatprep.subr.bf16.mxu0 0
  %186 = vmatpush1.bf16.msra.mxu0 %v148
  %187 = vmatprep.subr.bf16.mxu0 0
  %188 = vmatpush1.bf16.msra.mxu0 %v147
  %189 = vmatprep.subr.bf16.mxu0 0
  %190 = vmatpush1.bf16.msra.mxu0 %v146
  %191 = vmatprep.subr.bf16.mxu0 0
  %192 = vmatpush1.bf16.msra.mxu0 %v145
  %193 = vmatprep.subr.bf16.mxu0 0
  %194 = vmatpush2.bf16.msra.mxu0 %v160
  %195 = vmatprep.subr.bf16.mxu0 0
  %196 = vmatpush2.bf16.msra.mxu0 %v159
  %197 = vmatprep.subr.bf16.mxu0 0
  %198 = vmatpush2.bf16.msra.mxu0 %v158
  %199 = vmatprep.subr.bf16.mxu0 0
  %200 = vmatpush2.bf16.msra.mxu0 %v157
  %201 = vmatprep.subr.bf16.mxu0 0
  %202 = vmatpush2.bf16.msra.mxu0 %v156
  %203 = vmatprep.subr.bf16.mxu0 0
  %204 = vmatpush2.bf16.msra.mxu0 %v155
  %205 = vmatprep.subr.bf16.mxu0 0
  %206 = vmatpush2.bf16.msra.mxu0 %v154
  %207 = vmatprep.subr.bf16.mxu0 0
  %208 = vmatpush2.bf16.msra.mxu0 %v153
  %209 = vmatprep.mubr.bf16.mxu0 %v74
  %210 = vmatmul.mubr.bf16.gmra.mxu0 %v73
  %v211 = vpop.f32.mrf.mxu0
  %v212 = vadd.f32 %v59, %v211
  %v213 = vpop.f32.mrf.mxu0
  %v214 = vpop.f32.mrf.mxu0
  %v215 = vadd.f32 %v59, %v214
  %v216 = vpop.f32.mrf.mxu0
  %217 = vmatprep.mubr.bf16.mxu0 %v76
  %218 = vmatmul.mubr.bf16.gmra.mxu0 %v75
  %v219 = vpop.f32.mrf.mxu0
  %v220 = vadd.f32 %v59, %v219
  %v221 = vpop.f32.mrf.mxu0
  %v222 = vpop.f32.mrf.mxu0
  %v223 = vadd.f32 %v59, %v222
  %v224 = vpop.f32.mrf.mxu0
  %225 = vdwg.mxu0
  %v226 = vlaneseq
  %v227 = vshrl.u32 %v226, 7
  %v228 = vadd.s32 %v227, 8
  %v229 = vadd.s32 %v227, 16
  %v230 = vadd.s32 %v227, 24
  %s231 = smul.u32 0, 32
  %v232 = vstv %s231
  %v233 = vadd.s32 %v227, %v232
  %v234 = vadd.s32 %v228, %v232
  %v235 = vadd.s32 %v229, %v232
  %v236 = vadd.s32 %v230, %v232
  %vm237 = vcmp.lt.s32.totalorder %v233, 32
  %vm238 = vcmp.lt.s32.totalorder %v234, 32
  %vm239 = vcmp.lt.s32.totalorder %v235, 32
  %vm240 = vcmp.lt.s32.totalorder %v236, 32
  %v241 = vsel %vm237, %v212, 0.0
  %v242 = vsel %vm238, %v215, 0.0
  %v243 = vsel %vm239, %v220, 0.0
  %v244 = vsel %vm240, %v223, 0.0
  %v245 = vadd.f32 %v241, %v242
  %v246 = vadd.f32 %v245, %v243
  %v247 = vadd.f32 %v246, %v244
  %v248 = vrot.slane %v247, 4
  %v249 = vadd.f32 %v247, %v248
  %v250 = vrot.slane %v249, 2
  %v251 = vadd.f32 %v249, %v250
  %v252 = vrot.slane %v251, 1
  %v253 = vadd.f32 %v251, %v252
  %254 = vst [vmem:[%s4] sm:$0x1] %v253
  %v255 = vmul.f32 %v241, %v241
  %v256 = vmul.f32 %v242, %v242
  %v257 = vmul.f32 %v243, %v243
  %v258 = vmul.f32 %v244, %v244
  %v259 = vadd.f32 %v255, %v256
  %v260 = vadd.f32 %v259, %v257
  %v261 = vadd.f32 %v260, %v258
  %v262 = vrot.slane %v261, 4
  %v263 = vadd.f32 %v261, %v262
  %v264 = vrot.slane %v263, 2
  %v265 = vadd.f32 %v263, %v264
  %v266 = vrot.slane %v265, 1
  %v267 = vadd.f32 %v265, %v266
  %268 = vst [vmem:[%s5] sm:$0x1] %v267
  %v269 = vpack.c.bf16 %v215, %v212
  %v270 = vpack.c.bf16 %v223, %v220
  %v273 = vunpack.c.l.b16 %v269
  %v274 = vunpack.c.h.b16 %v269
  %v275 = vunpack.c.l.b16 %v270
  %v276 = vunpack.c.h.b16 %v270
  %v277 = vpack.c.b16 %v273, %v273
  %v278 = vpack.c.b16 %v274, %v274
  %v279 = vpack.c.b16 %v275, %v275
  %v280 = vpack.c.b16 %v276, %v276
  %285 = vst [vmem:[%s3] sm:$0xf] %v277
  %286 = vst [vmem:[%s3 + $0x4] sm:$0xf] %v278
  %287 = vst [vmem:[%s3 + $0x8] sm:$0xf] %v279
  %288 = vst [vmem:[%s3 + $0xc] sm:$0xf] %v280
  // Predicated region
  $region14: #{discriminator_forward.11} parent=0 // pred_check
    _
  $region15: #{discriminator_forward.11} parent=0 // pred_check_branch
    %290 = sbr.rel (0) target = $region17
  $region16: #{discriminator_forward.11} parent=0 // pred_region
    _
  $region17: #{discriminator_forward.11} parent=0 // pred_fallthru
    _
  // Predicated region
  $region18: #{discriminator_forward.11} parent=0 // pred_check
    _
  $region19: #{discriminator_forward.11} parent=0 // pred_check_branch
    %292 = sbr.rel (0) target = $region21
  $region20: #{discriminator_forward.11} parent=0 // pred_region
    _
  $region21: #{discriminator_forward.11} parent=0 // pred_fallthru
    _
  // Predicated region
  $region22: #{discriminator_forward.11} parent=0 // pred_check
    _
  $region23: #{discriminator_forward.11} parent=0 // pred_check_branch
    %294 = sbr.rel (0) target = $region25
  $region24: #{discriminator_forward.11} parent=0 // pred_region
    _
  $region25: #{discriminator_forward.11} parent=0 // pred_fallthru
    _
  // Predicated region
  $region26: #{discriminator_forward.11} parent=0 // pred_check
    _
  $region27: #{discriminator_forward.11} parent=0 // pred_check_branch
    %296 = sbr.rel (0) target = $region29
  $region28: #{discriminator_forward.11} parent=0 // pred_region
    _
  $region29: #{discriminator_forward.11} parent=0 // pred_fallthru
    _
  // Predicated region
  $region30: #{discriminator_forward.11} parent=0 // pred_check
    _
  $region31: #{discriminator_forward.11} parent=0 // pred_check_branch
    %298 = sbr.rel (0) target = $region33
  $region32: #{discriminator_forward.11} parent=0 // pred_region
    _
  $region33: #{discriminator_forward.11} parent=0 // pred_fallthru
    _
  // Predicated region
  $region34: #{discriminator_forward.11} parent=0 // pred_check
    _
  $region35: #{discriminator_forward.11} parent=0 // pred_check_branch
    %300 = sbr.rel (0) target = $region37
  $region36: #{discriminator_forward.11} parent=0 // pred_region
    _
  $region37: #{discriminator_forward.11} parent=0 // pred_fallthru
    _

// kernel: discriminator_forward.14
$region0: #{discriminator_forward.14}
  #allocation0 [shape = 'u32[]', space=smem, size = 0x4, offset = 0x4, fixed_abs, tag = 'smem constant byte address 0x4 - core index']
  #allocation1 [shape = 'u32[144,128]{1,0:T(1,128)}', space=vmem, size = 0x12000, scoped, tag = 'internal scratch']
  %s0 = inlined_call_operand.vmem [shape: bf16[16,128], index: 0, kind: input, shape index: {}]
  %s1 = inlined_call_operand.vmem [shape: f32[1,128], index: 1, kind: input, shape index: {}]
  %s2 = inlined_call_operand.vmem [shape: f32[1,128], index: 2, kind: input, shape index: {}]
  %s3 = inlined_call_operand.vmem [shape: f32[1,128], index: 3, kind: input, shape index: {}]
  %s4 = inlined_call_operand.vmem [shape: f32[1,128], index: 4, kind: input, shape index: {}]
  %s5 = inlined_call_operand.vmem [shape: bf16[16,128], index: 5, kind: output, shape index: {}]
  %s6 = sld [smem:[#allocation0]]
  $region30: #{discriminator_forward.14} parent=0
    _
  %s8 = ssub.s32 1, %s6
  %s9 = scalar_select 0, %s8, %s6
  // Predicated region
  $region2: #{discriminator_forward.14} parent=0 // pred_check
    _
  $region3: #{discriminator_forward.14} parent=0 // pred_check_branch
    %11 = sbr.rel (0) target = $region5
  $region4: #{discriminator_forward.14} parent=0 // pred_region
    _
  $region5: #{discriminator_forward.14} parent=0 // pred_fallthru
    _
  // Predicated region
  $region6: #{discriminator_forward.14} parent=0 // pred_check
    _
  $region7: #{discriminator_forward.14} parent=0 // pred_check_branch
    %13 = sbr.rel (0) target = $region9
  $region8: #{discriminator_forward.14} parent=0 // pred_region
    _
  $region9: #{discriminator_forward.14} parent=0 // pred_fallthru
    _
  // Predicated region
  $region10: #{discriminator_forward.14} parent=0 // pred_check
    _
  $region11: #{discriminator_forward.14} parent=0 // pred_check_branch
    %15 = sbr.rel (0) target = $region13
  $region12: #{discriminator_forward.14} parent=0 // pred_region
    _
  $region13: #{discriminator_forward.14} parent=0 // pred_fallthru
    _
  // Predicated region
  $region14: #{discriminator_forward.14} parent=0 // pred_check
    _
  $region15: #{discriminator_forward.14} parent=0 // pred_check_branch
    %17 = sbr.rel (0) target = $region17
  $region16: #{discriminator_forward.14} parent=0 // pred_region
    _
  $region17: #{discriminator_forward.14} parent=0 // pred_fallthru
    _
  // Predicated region
  $region18: #{discriminator_forward.14} parent=0 // pred_check
    _
  $region19: #{discriminator_forward.14} parent=0 // pred_check_branch
    %19 = sbr.rel (0) target = $region21
  $region20: #{discriminator_forward.14} parent=0 // pred_region
    _
  $region21: #{discriminator_forward.14} parent=0 // pred_fallthru
    _
  %v20 = vld [vmem:[%s1] sm:$0x1]
  %v21 = vmul.f32 %v20, 0.125
  %v22 = vld [vmem:[%s2] sm:$0x1]
  %v23 = vmul.f32 %v22, 0.125
  %v24 = vmul.f32 %v21, %v21
  %v25 = vsub.f32 %v23, %v24
  %v26 = vmax.f32 %v25, 0.0
  %v27 = vadd.f32 %v26, 1e-05
  %v28 = vrsqrt.pop %v27
  %v29 = vld [vmem:[%s3] sm:$0x1]
  %v30 = vmul.f32 %v28, %v29
  %v31 = vld [vmem:[%s0] sm:$0xf]
  %v32 = vld [vmem:[%s0 + $0x4] sm:$0xf]
  %v33 = vunpack.c.l.bf16 %v31
  %v34 = vunpack.c.l.bf16 %v32
  %v36 = vlaneseq
  %v37 = vshrl.u32 %v36, 7
  %v38 = vsub.s32 0, %v37
  %v39 = vrot.slane %v21, %v38
  %v41 = vsub.f32 %v33, %v39
  %v42 = vsub.f32 %v34, %v39
  %v44 = vlaneseq
  %v45 = vshrl.u32 %v44, 7
  %v46 = vsub.s32 0, %v45
  %v47 = vrot.slane %v30, %v46
  %v49 = vmul.f32 %v41, %v47
  %v50 = vmul.f32 %v42, %v47
  %v51 = vld [vmem:[%s4] sm:$0x1]
  %v53 = vlaneseq
  %v54 = vshrl.u32 %v53, 7
  %v55 = vsub.s32 0, %v54
  %v56 = vrot.slane %v51, %v55
  %v58 = vadd.f32 %v49, %v56
  %v59 = vadd.f32 %v50, %v56
  %vm60 = vcmp.gt.f32.partialorder %v58, 0.0
  %vm61 = vcmp.gt.f32.partialorder %v59, 0.0
  %v62 = vmul.f32 %v58, 0.2
  %v63 = vmul.f32 %v59, 0.2
  %v64 = vsel %vm60, %v58, %v62
  %v65 = vsel %vm61, %v59, %v63
  %v66 = vpack.c.bf16 %v65, %v64
  %v68 = vunpack.c.l.b16 %v66
  %v69 = vunpack.c.h.b16 %v66
  %v70 = vpack.c.b16 %v68, %v68
  %v71 = vpack.c.b16 %v69, %v69
  %74 = vst [vmem:[%s5] sm:$0xf] %v70
  %75 = vst [vmem:[%s5 + $0x4] sm:$0xf] %v71
  // Predicated region
  $region22: #{discriminator_forward.14} parent=0 // pred_check
    _
  $region23: #{discriminator_forward.14} parent=0 // pred_check_branch
    %77 = sbr.rel (0) target = $region25
  $region24: #{discriminator_forward.14} parent=0 // pred_region
    _
  $region25: #{discriminator_forward.14} parent=0 // pred_fallthru
    _
  // Predicated region
  $region26: #{discriminator_forward.14} parent=0 // pred_check
    _
  $region27: #{discriminator_forward.14} parent=0 // pred_check_branch
    %79 = sbr.rel (0) target = $region29
  $region28: #{discriminator_forward.14} parent=0 // pred_region
    _
  $region29: #{discriminator_forward.14} parent=0 // pred_fallthru
    _

// kernel: discriminator_forward.13
$region0: #{discriminator_forward.13}
  #allocation0 [shape = 'u32[]', space=smem, size = 0x4, offset = 0x4, fixed_abs, tag = 'smem constant byte address 0x4 - core index']
  #allocation1 [shape = 'u32[144,128]{1,0:T(1,128)}', space=vmem, size = 0x12000, scoped, tag = 'internal scratch']
  %s0 = inlined_call_operand.vmem [shape: bf16[16,512], index: 0, kind: input, shape index: {}]
  %s1 = inlined_call_operand.vmem [shape: bf16[512,128], index: 1, kind: input, shape index: {}]
  %s2 = inlined_call_operand.vmem [shape: f32[1,128], index: 2, kind: input, shape index: {}]
  %s3 = inlined_call_operand.vmem [shape: bf16[16,128], index: 3, kind: output, shape index: {0}]
  %s4 = inlined_call_operand.vmem [shape: f32[1,1,128], index: 4, kind: output, shape index: {1}]
  %s5 = inlined_call_operand.vmem [shape: f32[1,1,128], index: 5, kind: output, shape index: {2}]
  %6 = xla_tuple %s3, %s4, %s5
  %s7 = sld [smem:[#allocation0]]
  $region38: #{discriminator_forward.13} parent=0
    _
  %s9 = ssub.s32 1, %s7
  %s10 = scalar_select 0, %s9, %s7
  // Predicated region
  $region2: #{discriminator_forward.13} parent=0 // pred_check
    _
  $region3: #{discriminator_forward.13} parent=0 // pred_check_branch
    %12 = sbr.rel (0) target = $region5
  $region4: #{discriminator_forward.13} parent=0 // pred_region
    _
  $region5: #{discriminator_forward.13} parent=0 // pred_fallthru
    _
  // Predicated region
  $region6: #{discriminator_forward.13} parent=0 // pred_check
    _
  $region7: #{discriminator_forward.13} parent=0 // pred_check_branch
    %14 = sbr.rel (0) target = $region9
  $region8: #{discriminator_forward.13} parent=0 // pred_region
    _
  $region9: #{discriminator_forward.13} parent=0 // pred_fallthru
    _
  // Predicated region
  $region10: #{discriminator_forward.13} parent=0 // pred_check
    _
  $region11: #{discriminator_forward.13} parent=0 // pred_check_branch
    %16 = sbr.rel (0) target = $region13
  $region12: #{discriminator_forward.13} parent=0 // pred_region
    _
  $region13: #{discriminator_forward.13} parent=0 // pred_fallthru
    _
  %v18 = vld [vmem:[%s0] sm:$0xff]
  %v19 = vld [vmem:[%s0 + $0x8] sm:$0xff]
  %v20 = vld [vmem:[%s0 + $0x10] sm:$0xff]
  %v21 = vld [vmem:[%s0 + $0x18] sm:$0xff]
  %v22 = vld [vmem:[%s1] sm:$0xf]
  %v23 = vld [vmem:[%s1 + $0x4] sm:$0xf]
  %v24 = vld [vmem:[%s1 + $0x8] sm:$0xf]
  %v25 = vld [vmem:[%s1 + $0xc] sm:$0xf]
  %v26 = vld [vmem:[%s1 + $0x10] sm:$0xf]
  %v27 = vld [vmem:[%s1 + $0x14] sm:$0xf]
  %v28 = vld [vmem:[%s1 + $0x18] sm:$0xf]
  %v29 = vld [vmem:[%s1 + $0x1c] sm:$0xf]
  %v30 = vld [vmem:[%s1 + $0x20] sm:$0xf]
  %v31 = vld [vmem:[%s1 + $0x24] sm:$0xf]
  %v32 = vld [vmem:[%s1 + $0x28] sm:$0xf]
  %v33 = vld [vmem:[%s1 + $0x2c] sm:$0xf]
  %v34 = vld [vmem:[%s1 + $0x30] sm:$0xf]
  %v35 = vld [vmem:[%s1 + $0x34] sm:$0xf]
  %v36 = vld [vmem:[%s1 + $0x38] sm:$0xf]
  %v37 = vld [vmem:[%s1 + $0x3c] sm:$0xf]
  %v38 = vld [vmem:[%s1 + $0x40] sm:$0xf]
  %v39 = vld [vmem:[%s1 + $0x44] sm:$0xf]
  %v40 = vld [vmem:[%s1 + $0x48] sm:$0xf]
  %v41 = vld [vmem:[%s1 + $0x4c] sm:$0xf]
  %v42 = vld [vmem:[%s1 + $0x50] sm:$0xf]
  %v43 = vld [vmem:[%s1 + $0x54] sm:$0xf]
  %v44 = vld [vmem:[%s1 + $0x58] sm:$0xf]
  %v45 = vld [vmem:[%s1 + $0x5c] sm:$0xf]
  %v46 = vld [vmem:[%s1 + $0x60] sm:$0xf]
  %v47 = vld [vmem:[%s1 + $0x64] sm:$0xf]
  %v48 = vld [vmem:[%s1 + $0x68] sm:$0xf]
  %v49 = vld [vmem:[%s1 + $0x6c] sm:$0xf]
  %v50 = vld [vmem:[%s1 + $0x70] sm:$0xf]
  %v51 = vld [vmem:[%s1 + $0x74] sm:$0xf]
  %v52 = vld [vmem:[%s1 + $0x78] sm:$0xf]
  %v53 = vld [vmem:[%s1 + $0x7c] sm:$0xf]
  %v54 = vld [vmem:[%s1 + $0x80] sm:$0xf]
  %v55 = vld [vmem:[%s1 + $0x84] sm:$0xf]
  %v56 = vld [vmem:[%s1 + $0x88] sm:$0xf]
  %v57 = vld [vmem:[%s1 + $0x8c] sm:$0xf]
  %v58 = vld [vmem:[%s1 + $0x90] sm:$0xf]
  %v59 = vld [vmem:[%s1 + $0x94] sm:$0xf]
  %v60 = vld [vmem:[%s1 + $0x98] sm:$0xf]
  %v61 = vld [vmem:[%s1 + $0x9c] sm:$0xf]
  %v62 = vld [vmem:[%s1 + $0xa0] sm:$0xf]
  %v63 = vld [vmem:[%s1 + $0xa4] sm:$0xf]
  %v64 = vld [vmem:[%s1 + $0xa8] sm:$0xf]
  %v65 = vld [vmem:[%s1 + $0xac] sm:$0xf]
  %v66 = vld [vmem:[%s1 + $0xb0] sm:$0xf]
  %v67 = vld [vmem:[%s1 + $0xb4] sm:$0xf]
  %v68 = vld [vmem:[%s1 + $0xb8] sm:$0xf]
  %v69 = vld [vmem:[%s1 + $0xbc] sm:$0xf]
  %v70 = vld [vmem:[%s1 + $0xc0] sm:$0xf]
  %v71 = vld [vmem:[%s1 + $0xc4] sm:$0xf]
  %v72 = vld [vmem:[%s1 + $0xc8] sm:$0xf]
  %v73 = vld [vmem:[%s1 + $0xcc] sm:$0xf]
  %v74 = vld [vmem:[%s1 + $0xd0] sm:$0xf]
  %v75 = vld [vmem:[%s1 + $0xd4] sm:$0xf]
  %v76 = vld [vmem:[%s1 + $0xd8] sm:$0xf]
  %v77 = vld [vmem:[%s1 + $0xdc] sm:$0xf]
  %v78 = vld [vmem:[%s1 + $0xe0] sm:$0xf]
  %v79 = vld [vmem:[%s1 + $0xe4] sm:$0xf]
  %v80 = vld [vmem:[%s1 + $0xe8] sm:$0xf]
  %v81 = vld [vmem:[%s1 + $0xec] sm:$0xf]
  %v82 = vld [vmem:[%s1 + $0xf0] sm:$0xf]
  %v83 = vld [vmem:[%s1 + $0xf4] sm:$0xf]
  %v84 = vld [vmem:[%s1 + $0xf8] sm:$0xf]
  %v85 = vld [vmem:[%s1 + $0xfc] sm:$0xf]
  %v86 = vld [vmem:[%s2] sm:$0x1]
  %v88 = vlaneseq
  %v89 = vshrl.u32 %v88, 7
  %v90 = vsub.s32 0, %v89
  %v91 = vrot.slane %v86, %v90
  %v97 = vunpack.c.l.b16 %v18
  %v98 = vunpack.c.h.b16 %v18
  %v99 = vunpack.c.l.b16 %v19
  %v100 = vunpack.c.h.b16 %v19
  %v101 = vunpack.c.l.b16 %v20
  %v102 = vunpack.c.h.b16 %v20
  %v103 = vunpack.c.l.b16 %v21
  %v104 = vunpack.c.h.b16 %v21
  %v105 = vpack.c.b16 %v101, %v97
  %v106 = vpack.c.b16 %v102, %v98
  %v107 = vpack.c.b16 %v103, %v99
  %v108 = vpack.c.b16 %v104, %v100
  %v177 = vunpack.c.l.b16 %v22
  %v178 = vunpack.c.l.b16 %v23
  %v179 = vunpack.c.l.b16 %v24
  %v180 = vunpack.c.l.b16 %v25
  %v181 = vunpack.c.l.b16 %v26
  %v182 = vunpack.c.l.b16 %v27
  %v183 = vunpack.c.l.b16 %v28
  %v184 = vunpack.c.l.b16 %v29
  %v185 = vunpack.c.l.b16 %v30
  %v186 = vunpack.c.l.b16 %v31
  %v187 = vunpack.c.l.b16 %v32
  %v188 = vunpack.c.l.b16 %v33
  %v189 = vunpack.c.l.b16 %v34
  %v190 = vunpack.c.l.b16 %v35
  %v191 = vunpack.c.l.b16 %v36
  %v192 = vunpack.c.l.b16 %v37
  %v193 = vunpack.c.l.b16 %v38
  %v194 = vunpack.c.l.b16 %v39
  %v195 = vunpack.c.l.b16 %v40
  %v196 = vunpack.c.l.b16 %v41
  %v197 = vunpack.c.l.b16 %v42
  %v198 = vunpack.c.l.b16 %v43
  %v199 = vunpack.c.l.b16 %v44
  %v200 = vunpack.c.l.b16 %v45
  %v201 = vunpack.c.l.b16 %v46
  %v202 = vunpack.c.l.b16 %v47
  %v203 = vunpack.c.l.b16 %v48
  %v204 = vunpack.c.l.b16 %v49
  %v205 = vunpack.c.l.b16 %v50
  %v206 = vunpack.c.l.b16 %v51
  %v207 = vunpack.c.l.b16 %v52
  %v208 = vunpack.c.l.b16 %v53
  %v209 = vunpack.c.l.b16 %v54
  %v210 = vunpack.c.l.b16 %v55
  %v211 = vunpack.c.l.b16 %v56
  %v212 = vunpack.c.l.b16 %v57
  %v213 = vunpack.c.l.b16 %v58
  %v214 = vunpack.c.l.b16 %v59
  %v215 = vunpack.c.l.b16 %v60
  %v216 = vunpack.c.l.b16 %v61
  %v217 = vunpack.c.l.b16 %v62
  %v218 = vunpack.c.l.b16 %v63
  %v219 = vunpack.c.l.b16 %v64
  %v220 = vunpack.c.l.b16 %v65
  %v221 = vunpack.c.l.b16 %v66
  %v222 = vunpack.c.l.b16 %v67
  %v223 = vunpack.c.l.b16 %v68
  %v224 = vunpack.c.l.b16 %v69
  %v225 = vunpack.c.l.b16 %v70
  %v226 = vunpack.c.l.b16 %v71
  %v227 = vunpack.c.l.b16 %v72
  %v228 = vunpack.c.l.b16 %v73
  %v229 = vunpack.c.l.b16 %v74
  %v230 = vunpack.c.l.b16 %v75
  %v231 = vunpack.c.l.b16 %v76
  %v232 = vunpack.c.l.b16 %v77
  %v233 = vunpack.c.l.b16 %v78
  %v234 = vunpack.c.l.b16 %v79
  %v235 = vunpack.c.l.b16 %v80
  %v236 = vunpack.c.l.b16 %v81
  %v237 = vunpack.c.l.b16 %v82
  %v238 = vunpack.c.l.b16 %v83
  %v239 = vunpack.c.l.b16 %v84
  %v240 = vunpack.c.l.b16 %v85
  %v241 = vpack.c.b16 %v178, %v177
  %v242 = vpack.c.b16 %v180, %v179
  %v243 = vpack.c.b16 %v182, %v181
  %v244 = vpack.c.b16 %v184, %v183
  %v245 = vpack.c.b16 %v186, %v185
  %v246 = vpack.c.b16 %v188, %v187
  %v247 = vpack.c.b16 %v190, %v189
  %v248 = vpack.c.b16 %v192, %v191
  %v249 = vpack.c.b16 %v194, %v193
  %v250 = vpack.c.b16 %v196, %v195
  %v251 = vpack.c.b16 %v198, %v197
  %v252 = vpack.c.b16 %v200, %v199
  %v253 = vpack.c.b16 %v202, %v201
  %v254 = vpack.c.b16 %v204, %v203
  %v255 = vpack.c.b16 %v206, %v205
  %v256 = vpack.c.b16 %v208, %v207
  %v257 = vpack.c.b16 %v210, %v209
  %v258 = vpack.c.b16 %v212, %v211
  %v259 = vpack.c.b16 %v214, %v213
  %v260 = vpack.c.b16 %v216, %v215
  %v261 = vpack.c.b16 %v218, %v217
  %v262 = vpack.c.b16 %v220, %v219
  %v263 = vpack.c.b16 %v222, %v221
  %v264 = vpack.c.b16 %v224, %v223
  %v265 = vpack.c.b16 %v226, %v225
  %v266 = vpack.c.b16 %v228, %v227
  %v267 = vpack.c.b16 %v230, %v229
  %v268 = vpack.c.b16 %v232, %v231
  %v269 = vpack.c.b16 %v234, %v233
  %v270 = vpack.c.b16 %v236, %v235
  %v271 = vpack.c.b16 %v238, %v237
  %v272 = vpack.c.b16 %v240, %v239
  %305 = vmatprep.subr.bf16.mxu0 0
  %306 = vmatpush1.bf16.msra.mxu0 %v248
  %307 = vmatprep.subr.bf16.mxu0 0
  %308 = vmatpush1.bf16.msra.mxu0 %v247
  %309 = vmatprep.subr.bf16.mxu0 0
  %310 = vmatpush1.bf16.msra.mxu0 %v246
  %311 = vmatprep.subr.bf16.mxu0 0
  %312 = vmatpush1.bf16.msra.mxu0 %v245
  %313 = vmatprep.subr.bf16.mxu0 0
  %314 = vmatpush1.bf16.msra.mxu0 %v244
  %315 = vmatprep.subr.bf16.mxu0 0
  %316 = vmatpush1.bf16.msra.mxu0 %v243
  %317 = vmatprep.subr.bf16.mxu0 0
  %318 = vmatpush1.bf16.msra.mxu0 %v242
  %319 = vmatprep.subr.bf16.mxu0 0
  %320 = vmatpush1.bf16.msra.mxu0 %v241
  %321 = vmatprep.subr.bf16.mxu0 0
  %322 = vmatpush2.bf16.msra.mxu0 %v256
  %323 = vmatprep.subr.bf16.mxu0 0
  %324 = vmatpush2.bf16.msra.mxu0 %v255
  %325 = vmatprep.subr.bf16.mxu0 0
  %326 = vmatpush2.bf16.msra.mxu0 %v254
  %327 = vmatprep.subr.bf16.mxu0 0
  %328 = vmatpush2.bf16.msra.mxu0 %v253
  %329 = vmatprep.subr.bf16.mxu0 0
  %330 = vmatpush2.bf16.msra.mxu0 %v252
  %331 = vmatprep.subr.bf16.mxu0 0
  %332 = vmatpush2.bf16.msra.mxu0 %v251
  %333 = vmatprep.subr.bf16.mxu0 0
  %334 = vmatpush2.bf16.msra.mxu0 %v250
  %335 = vmatprep.subr.bf16.mxu0 0
  %336 = vmatpush2.bf16.msra.mxu0 %v249
  %337 = vmatprep.mubr.bf16.mxu0 %v106
  %338 = vmatmul.mubr.bf16.gmra.mxu0 %v105
  %v339 = vpop.f32.mrf.mxu0
  %v340 = vadd.f32 %v91, %v339
  %v341 = vpop.f32.mrf.mxu0
  %v342 = vpop.f32.mrf.mxu0
  %v343 = vadd.f32 %v91, %v342
  %v344 = vpop.f32.mrf.mxu0
  %345 = vdwg.mxu0
  %346 = vmatprep.subr.bf16.mxu0 0
  %347 = vmatpush1.bf16.msra.mxu0 %v264
  %348 = vmatprep.subr.bf16.mxu0 0
  %349 = vmatpush1.bf16.msra.mxu0 %v263
  %350 = vmatprep.subr.bf16.mxu0 0
  %351 = vmatpush1.bf16.msra.mxu0 %v262
  %352 = vmatprep.subr.bf16.mxu0 0
  %353 = vmatpush1.bf16.msra.mxu0 %v261
  %354 = vmatprep.subr.bf16.mxu0 0
  %355 = vmatpush1.bf16.msra.mxu0 %v260
  %356 = vmatprep.subr.bf16.mxu0 0
  %357 = vmatpush1.bf16.msra.mxu0 %v259
  %358 = vmatprep.subr.bf16.mxu0 0
  %359 = vmatpush1.bf16.msra.mxu0 %v258
  %360 = vmatprep.subr.bf16.mxu0 0
  %361 = vmatpush1.bf16.msra.mxu0 %v257
  %362 = vmatprep.subr.bf16.mxu0 0
  %363 = vmatpush2.bf16.msra.mxu0 %v272
  %364 = vmatprep.subr.bf16.mxu0 0
  %365 = vmatpush2.bf16.msra.mxu0 %v271
  %366 = vmatprep.subr.bf16.mxu0 0
  %367 = vmatpush2.bf16.msra.mxu0 %v270
  %368 = vmatprep.subr.bf16.mxu0 0
  %369 = vmatpush2.bf16.msra.mxu0 %v269
  %370 = vmatprep.subr.bf16.mxu0 0
  %371 = vmatpush2.bf16.msra.mxu0 %v268
  %372 = vmatprep.subr.bf16.mxu0 0
  %373 = vmatpush2.bf16.msra.mxu0 %v267
  %374 = vmatprep.subr.bf16.mxu0 0
  %375 = vmatpush2.bf16.msra.mxu0 %v266
  %376 = vmatprep.subr.bf16.mxu0 0
  %377 = vmatpush2.bf16.msra.mxu0 %v265
  %378 = vmatprep.mubr.bf16.mxu0 %v108
  %379 = vmatmul.mubr.bf16.gmra.mxu0 %v107
  %v380 = vpop.f32.mrf.mxu0
  %v381 = vadd.f32 %v340, %v380
  %v382 = vpop.f32.mrf.mxu0
  %v383 = vpop.f32.mrf.mxu0
  %v384 = vadd.f32 %v343, %v383
  %v385 = vpop.f32.mrf.mxu0
  %386 = vdwg.mxu0
  %v387 = vlaneseq
  %v388 = vshrl.u32 %v387, 7
  %v389 = vadd.s32 %v388, 8
  %s390 = smul.u32 0, 16
  %v391 = vstv %s390
  %v392 = vadd.s32 %v388, %v391
  %v393 = vadd.s32 %v389, %v391
  %vm394 = vcmp.lt.s32.totalorder %v392, 8
  %vm395 = vcmp.lt.s32.totalorder %v393, 8
  %v396 = vsel %vm394, %v381, 0.0
  %v397 = vsel %vm395, %v384, 0.0
  %v398 = vadd.f32 %v396, %v397
  %v399 = vrot.slane %v398, 4
  %v400 = vadd.f32 %v398, %v399
  %v401 = vrot.slane %v400, 2
  %v402 = vadd.f32 %v400, %v401
  %v403 = vrot.slane %v402, 1
  %v404 = vadd.f32 %v402, %v403
  %405 = vst [vmem:[%s4] sm:$0x1] %v404
  %v406 = vmul.f32 %v396, %v396
  %v407 = vmul.f32 %v397, %v397
  %v408 = vadd.f32 %v406, %v407
  %v409 = vrot.slane %v408, 4
  %v410 = vadd.f32 %v408, %v409
  %v411 = vrot.slane %v410, 2
  %v412 = vadd.f32 %v410, %v411
  %v413 = vrot.slane %v412, 1
  %v414 = vadd.f32 %v412, %v413
  %415 = vst [vmem:[%s5] sm:$0x1] %v414
  %v416 = vpack.c.bf16 %v384, %v381
  %v418 = vunpack.c.l.b16 %v416
  %v419 = vunpack.c.h.b16 %v416
  %v420 = vpack.c.b16 %v418, %v418
  %v421 = vpack.c.b16 %v419, %v419
  %424 = vst [vmem:[%s3] sm:$0xf] %v420
  %425 = vst [vmem:[%s3 + $0x4] sm:$0xf] %v421
  // Predicated region
  $region14: #{discriminator_forward.13} parent=0 // pred_check
    _
  $region15: #{discriminator_forward.13} parent=0 // pred_check_branch
    %427 = sbr.rel (0) target = $region17
  $region16: #{discriminator_forward.13} parent=0 // pred_region
    _
  $region17: #{discriminator_forward.13} parent=0 // pred_fallthru
    _
  // Predicated region
  $region18: #{discriminator_forward.13} parent=0 // pred_check
    _
  $region19: #{discriminator_forward.13} parent=0 // pred_check_branch
    %429 = sbr.rel (0) target = $region21
  $region20: #{discriminator_forward.13} parent=0 // pred_region
    _
  $region21: #{discriminator_forward.13} parent=0 // pred_fallthru
    _
  // Predicated region
  $region22: #{discriminator_forward.13} parent=0 // pred_check
    _
  $region23: #{discriminator_forward.13} parent=0 // pred_check_branch
    %431 = sbr.rel (0) target = $region25
  $region24: #{discriminator_forward.13} parent=0 // pred_region
    _
  $region25: #{discriminator_forward.13} parent=0 // pred_fallthru
    _
  // Predicated region
  $region26: #{discriminator_forward.13} parent=0 // pred_check
    _
  $region27: #{discriminator_forward.13} parent=0 // pred_check_branch
    %433 = sbr.rel (0) target = $region29
  $region28: #{discriminator_forward.13} parent=0 // pred_region
    _
  $region29: #{discriminator_forward.13} parent=0 // pred_fallthru
    _
  // Predicated region
  $region30: #{discriminator_forward.13} parent=0 // pred_check
    _
  $region31: #{discriminator_forward.13} parent=0 // pred_check_branch
    %435 = sbr.rel (0) target = $region33
  $region32: #{discriminator_forward.13} parent=0 // pred_region
    _
  $region33: #{discriminator_forward.13} parent=0 // pred_fallthru
    _
  // Predicated region
  $region34: #{discriminator_forward.13} parent=0 // pred_check
    _
  $region35: #{discriminator_forward.13} parent=0 // pred_check_branch
    %437 = sbr.rel (0) target = $region37
  $region36: #{discriminator_forward.13} parent=0 // pred_region
    _
  $region37: #{discriminator_forward.13} parent=0 // pred_fallthru
    _

// kernel: discriminator_forward.15
$region0: #{discriminator_forward.15}
  #allocation0 [shape = 'u32[]', space=smem, size = 0x4, offset = 0x4, fixed_abs, tag = 'smem constant byte address 0x4 - core index']
  #allocation1 [shape = 'u32[144,128]{1,0:T(1,128)}', space=vmem, size = 0x12000, scoped, tag = 'internal scratch']
  #allocation2 [shape = 'f32[16,128]{1,0:T(8,128)}', space=vmem, size = 0x2000, scoped, tag = 'scratch operand']
  #allocation3 [shape = 'bf16[16,128]{1,0:T(8,128)(2,1)}', space=vmem, size = 0x1000, scoped, tag = 'scratch operand']
  %s0 = inlined_call_operand.vmem [shape: bf16[16,256], index: 0, kind: input, shape index: {}]
  %s1 = inlined_call_operand.vmem [shape: bf16[16,128], index: 1, kind: input, shape index: {}]
  %s2 = inlined_call_operand.vmem [shape: bf16[128,128], index: 2, kind: input, shape index: {}]
  %s3 = inlined_call_operand.vmem [shape: f32[3,128], index: 3, kind: input, shape index: {}]
  %s4 = inlined_call_operand.vmem [shape: bf16[256,128], index: 4, kind: input, shape index: {}]
  %s5 = inlined_call_operand.vmem [shape: bf16[128,128], index: 5, kind: input, shape index: {}]
  %s6 = inlined_call_operand.vmem [shape: f32[3,128], index: 6, kind: input, shape index: {}]
  %s7 = inlined_call_operand.vmem [shape: bf16[128,128], index: 7, kind: input, shape index: {}]
  %s8 = inlined_call_operand.vmem [shape: f32[1,128], index: 8, kind: input, shape index: {}]
  %s9 = inlined_call_operand.vmem [shape: f32[16,128], index: 9, kind: output, shape index: {}]
  %s10 = sld [smem:[#allocation0]]
  $region54: #{discriminator_forward.15} parent=0
    _
  %s12 = ssub.s32 1, %s10
  %s13 = scalar_select 0, %s12, %s10
  // Predicated region
  $region2: #{discriminator_forward.15} parent=0 // pred_check
    _
  $region3: #{discriminator_forward.15} parent=0 // pred_check_branch
    %15 = sbr.rel (0) target = $region5
  $region4: #{discriminator_forward.15} parent=0 // pred_region
    _
  $region5: #{discriminator_forward.15} parent=0 // pred_fallthru
    _
  // Predicated region
  $region6: #{discriminator_forward.15} parent=0 // pred_check
    _
  $region7: #{discriminator_forward.15} parent=0 // pred_check_branch
    %17 = sbr.rel (0) target = $region9
  $region8: #{discriminator_forward.15} parent=0 // pred_region
    _
  $region9: #{discriminator_forward.15} parent=0 // pred_fallthru
    _
  // Predicated region
  $region10: #{discriminator_forward.15} parent=0 // pred_check
    _
  $region11: #{discriminator_forward.15} parent=0 // pred_check_branch
    %19 = sbr.rel (0) target = $region13
  $region12: #{discriminator_forward.15} parent=0 // pred_region
    _
  $region13: #{discriminator_forward.15} parent=0 // pred_fallthru
    _
  // Predicated region
  $region14: #{discriminator_forward.15} parent=0 // pred_check
    _
  $region15: #{discriminator_forward.15} parent=0 // pred_check_branch
    %21 = sbr.rel (0) target = $region17
  $region16: #{discriminator_forward.15} parent=0 // pred_region
    _
  $region17: #{discriminator_forward.15} parent=0 // pred_fallthru
    _
  // Predicated region
  $region18: #{discriminator_forward.15} parent=0 // pred_check
    _
  $region19: #{discriminator_forward.15} parent=0 // pred_check_branch
    %23 = sbr.rel (0) target = $region21
  $region20: #{discriminator_forward.15} parent=0 // pred_region
    _
  $region21: #{discriminator_forward.15} parent=0 // pred_fallthru
    _
  // Predicated region
  $region22: #{discriminator_forward.15} parent=0 // pred_check
    _
  $region23: #{discriminator_forward.15} parent=0 // pred_check_branch
    %25 = sbr.rel (0) target = $region25
  $region24: #{discriminator_forward.15} parent=0 // pred_region
    _
  $region25: #{discriminator_forward.15} parent=0 // pred_fallthru
    _
  // Predicated region
  $region26: #{discriminator_forward.15} parent=0 // pred_check
    _
  $region27: #{discriminator_forward.15} parent=0 // pred_check_branch
    %27 = sbr.rel (0) target = $region29
  $region28: #{discriminator_forward.15} parent=0 // pred_region
    _
  $region29: #{discriminator_forward.15} parent=0 // pred_fallthru
    _
  // Predicated region
  $region30: #{discriminator_forward.15} parent=0 // pred_check
    _
  $region31: #{discriminator_forward.15} parent=0 // pred_check_branch
    %29 = sbr.rel (0) target = $region33
  $region32: #{discriminator_forward.15} parent=0 // pred_region
    _
  $region33: #{discriminator_forward.15} parent=0 // pred_fallthru
    _
  // Predicated region
  $region34: #{discriminator_forward.15} parent=0 // pred_check
    _
  $region35: #{discriminator_forward.15} parent=0 // pred_check_branch
    %31 = sbr.rel (0) target = $region37
  $region36: #{discriminator_forward.15} parent=0 // pred_region
    _
  $region37: #{discriminator_forward.15} parent=0 // pred_fallthru
    _
  %p33 = scmp.eq.s32.totalorder 0, 0
  // Predicated region
  $region38: #{discriminator_forward.15} parent=0 // pred_check
    %p34 = pneg %p33
  $region39: #{discriminator_forward.15} parent=0 // pred_check_branch
    %36 = sbr.rel (%p34) target = $region41
  $region40: #{discriminator_forward.15} parent=0 // pred_region
    %37 = vst [vmem:[#allocation2] sm:$0xff] 0.0
    %38 = vst [vmem:[#allocation2 + $0x8] sm:$0xff] 0.0
    %v39 = vld [vmem:[%s1] sm:$0xf]
    %v40 = vld [vmem:[%s1 + $0x4] sm:$0xf]
    %v41 = vld [vmem:[%s2] sm:$0xf]
    %v42 = vld [vmem:[%s2 + $0x4] sm:$0xf]
    %v43 = vld [vmem:[%s2 + $0x8] sm:$0xf]
    %v44 = vld [vmem:[%s2 + $0xc] sm:$0xf]
    %v45 = vld [vmem:[%s2 + $0x10] sm:$0xf]
    %v46 = vld [vmem:[%s2 + $0x14] sm:$0xf]
    %v47 = vld [vmem:[%s2 + $0x18] sm:$0xf]
    %v48 = vld [vmem:[%s2 + $0x1c] sm:$0xf]
    %v49 = vld [vmem:[%s2 + $0x20] sm:$0xf]
    %v50 = vld [vmem:[%s2 + $0x24] sm:$0xf]
    %v51 = vld [vmem:[%s2 + $0x28] sm:$0xf]
    %v52 = vld [vmem:[%s2 + $0x2c] sm:$0xf]
    %v53 = vld [vmem:[%s2 + $0x30] sm:$0xf]
    %v54 = vld [vmem:[%s2 + $0x34] sm:$0xf]
    %v55 = vld [vmem:[%s2 + $0x38] sm:$0xf]
    %v56 = vld [vmem:[%s2 + $0x3c] sm:$0xf]
    %v57 = vld [vmem:[%s3] sm:$0x1]
    %v58 = vlaneseq
    %v59 = vshrl.u32 %v58, 7
    %v60 = vsub.s32 0, %v59
    %v61 = vrot.slane %v57, %v60
    %v64 = vunpack.c.l.b16 %v39
    %v65 = vunpack.c.l.b16 %v40
    %v66 = vpack.c.b16 %v65, %v64
    %v84 = vunpack.c.l.b16 %v41
    %v85 = vunpack.c.l.b16 %v42
    %v86 = vunpack.c.l.b16 %v43
    %v87 = vunpack.c.l.b16 %v44
    %v88 = vunpack.c.l.b16 %v45
    %v89 = vunpack.c.l.b16 %v46
    %v90 = vunpack.c.l.b16 %v47
    %v91 = vunpack.c.l.b16 %v48
    %v92 = vunpack.c.l.b16 %v49
    %v93 = vunpack.c.l.b16 %v50
    %v94 = vunpack.c.l.b16 %v51
    %v95 = vunpack.c.l.b16 %v52
    %v96 = vunpack.c.l.b16 %v53
    %v97 = vunpack.c.l.b16 %v54
    %v98 = vunpack.c.l.b16 %v55
    %v99 = vunpack.c.l.b16 %v56
    %v100 = vpack.c.b16 %v85, %v84
    %v101 = vpack.c.b16 %v87, %v86
    %v102 = vpack.c.b16 %v89, %v88
    %v103 = vpack.c.b16 %v91, %v90
    %v104 = vpack.c.b16 %v93, %v92
    %v105 = vpack.c.b16 %v95, %v94
    %v106 = vpack.c.b16 %v97, %v96
    %v107 = vpack.c.b16 %v99, %v98
    %116 = vmatprep.subr.bf16.mxu0 0
    %117 = vmatpush1.bf16.msra.mxu0 %v107
    %118 = vmatprep.subr.bf16.mxu0 0
    %119 = vmatpush1.bf16.msra.mxu0 %v106
    %120 = vmatprep.subr.bf16.mxu0 0
    %121 = vmatpush1.bf16.msra.mxu0 %v105
    %122 = vmatprep.subr.bf16.mxu0 0
    %123 = vmatpush1.bf16.msra.mxu0 %v104
    %124 = vmatprep.subr.bf16.mxu0 0
    %125 = vmatpush1.bf16.msra.mxu0 %v103
    %126 = vmatprep.subr.bf16.mxu0 0
    %127 = vmatpush1.bf16.msra.mxu0 %v102
    %128 = vmatprep.subr.bf16.mxu0 0
    %129 = vmatpush1.bf16.msra.mxu0 %v101
    %130 = vmatprep.subr.bf16.mxu0 0
    %131 = vmatpush1.bf16.msra.mxu0 %v100
    %132 = vmatprep.subr.bf16.mxu0 0
    %133 = vmatpush2.bf16.msra.mxu0 0
    %134 = vmatprep.subr.bf16.mxu0 0
    %135 = vmatpush2.bf16.msra.mxu0 0
    %136 = vmatprep.subr.bf16.mxu0 0
    %137 = vmatpush2.bf16.msra.mxu0 0
    %138 = vmatprep.subr.bf16.mxu0 0
    %139 = vmatpush2.bf16.msra.mxu0 0
    %140 = vmatprep.subr.bf16.mxu0 0
    %141 = vmatpush2.bf16.msra.mxu0 0
    %142 = vmatprep.subr.bf16.mxu0 0
    %143 = vmatpush2.bf16.msra.mxu0 0
    %144 = vmatprep.subr.bf16.mxu0 0
    %145 = vmatpush2.bf16.msra.mxu0 0
    %146 = vmatprep.subr.bf16.mxu0 0
    %147 = vmatpush2.bf16.msra.mxu0 0
    %148 = vmatprep.mubr.bf16.mxu0 0
    %149 = vmatmul.mubr.bf16.gmra.mxu0 %v66
    %v150 = vpop.f32.mrf.mxu0
    %v151 = vadd.f32 %v61, %v150
    %v152 = vpop.f32.mrf.mxu0
    %v153 = vpop.f32.mrf.mxu0
    %v154 = vadd.f32 %v61, %v153
    %v155 = vpop.f32.mrf.mxu0
    %156 = vdwg.mxu0
    %v157 = vld [vmem:[%s3 + $0x1] sm:$0x1]
    %v158 = vld [vmem:[%s3 + $0x2] sm:$0x1]
    %v159 = vlaneseq
    %v160 = vshrl.u32 %v159, 7
    %v161 = vadd.s32 %v160, 8
    %vm162 = vcmp.lt.s32.totalorder %v160, 2
    %vm163 = vcmp.lt.s32.totalorder %v161, 2
    %v164 = vsel %vm162, 1, 0
    %v165 = vsel %vm163, 1, 0
    %v166 = vcvt.s32.f32 %v164
    %v167 = vcvt.s32.f32 %v165
    %v168 = vmul.f32 %v151, %v166
    %v169 = vmul.f32 %v154, %v167
    %v170 = vadd.f32 %v168, %v169
    %v171 = vrot.slane %v170, 4
    %v172 = vadd.f32 %v170, %v171
    %v173 = vrot.slane %v172, 2
    %v174 = vadd.f32 %v172, %v173
    %v175 = vrot.slane %v174, 1
    %v176 = vadd.f32 %v174, %v175
    %v177 = vmul.f32 %v176, 0.5
    %v178 = vsub.f32 %v151, %v177
    %v179 = vsub.f32 %v154, %v177
    %v180 = vmul.f32 %v178, %v166
    %v181 = vmul.f32 %v179, %v167
    %v182 = vmul.f32 %v180, %v180
    %v183 = vmul.f32 %v181, %v181
    %v184 = vadd.f32 %v182, %v183
    %v185 = vrot.slane %v184, 4
    %v186 = vadd.f32 %v184, %v185
    %v187 = vrot.slane %v186, 2
    %v188 = vadd.f32 %v186, %v187
    %v189 = vrot.slane %v188, 1
    %v190 = vadd.f32 %v188, %v189
    %v191 = vmul.f32 %v190, 0.5
    %v192 = vadd.f32 %v191, 1e-05
    %v193 = vrsqrt.pop %v192
    %v194 = vmul.f32 %v178, %v193
    %v195 = vmul.f32 %v179, %v193
    %v196 = vlaneseq
    %v197 = vshrl.u32 %v196, 7
    %v198 = vsub.s32 0, %v197
    %v199 = vrot.slane %v157, %v198
    %v200 = vmul.f32 %v194, %v199
    %v201 = vmul.f32 %v195, %v199
    %v202 = vlaneseq
    %v203 = vshrl.u32 %v202, 7
    %v204 = vsub.s32 0, %v203
    %v205 = vrot.slane %v158, %v204
    %v206 = vadd.f32 %v200, %v205
    %v207 = vadd.f32 %v201, %v205
    %vm208 = vcmp.gt.f32.partialorder %v206, 0.0
    %vm209 = vcmp.gt.f32.partialorder %v207, 0.0
    %v210 = vmul.f32 %v206, 0.2
    %v211 = vmul.f32 %v207, 0.2
    %v212 = vsel %vm208, %v206, %v210
    %v213 = vsel %vm209, %v207, %v211
    %v214 = vpack.c.bf16 %v213, %v212
    %v216 = vunpack.c.l.b16 %v214
    %v217 = vunpack.c.h.b16 %v214
    %v218 = vpack.c.b16 %v216, %v216
    %v219 = vpack.c.b16 %v217, %v217
    %222 = vst [vmem:[#allocation3] sm:$0xf] %v218
    %223 = vst [vmem:[#allocation3 + $0x4] sm:$0xf] %v219
  $region41: #{discriminator_forward.15} parent=0 // pred_fallthru
    _
  %v224 = vld [vmem:[#allocation2] sm:$0xff]
  %v225 = vld [vmem:[#allocation2 + $0x8] sm:$0xff]
  %v226 = vld [vmem:[%s0] sm:$0xff]
  %v227 = vld [vmem:[%s0 + $0x8] sm:$0xff]
  %v228 = vld [vmem:[%s4] sm:$0xf]
  %v229 = vld [vmem:[%s4 + $0x4] sm:$0xf]
  %v230 = vld [vmem:[%s4 + $0x8] sm:$0xf]
  %v231 = vld [vmem:[%s4 + $0xc] sm:$0xf]
  %v232 = vld [vmem:[%s4 + $0x10] sm:$0xf]
  %v233 = vld [vmem:[%s4 + $0x14] sm:$0xf]
  %v234 = vld [vmem:[%s4 + $0x18] sm:$0xf]
  %v235 = vld [vmem:[%s4 + $0x1c] sm:$0xf]
  %v236 = vld [vmem:[%s4 + $0x20] sm:$0xf]
  %v237 = vld [vmem:[%s4 + $0x24] sm:$0xf]
  %v238 = vld [vmem:[%s4 + $0x28] sm:$0xf]
  %v239 = vld [vmem:[%s4 + $0x2c] sm:$0xf]
  %v240 = vld [vmem:[%s4 + $0x30] sm:$0xf]
  %v241 = vld [vmem:[%s4 + $0x34] sm:$0xf]
  %v242 = vld [vmem:[%s4 + $0x38] sm:$0xf]
  %v243 = vld [vmem:[%s4 + $0x3c] sm:$0xf]
  %v244 = vld [vmem:[%s4 + $0x40] sm:$0xf]
  %v245 = vld [vmem:[%s4 + $0x44] sm:$0xf]
  %v246 = vld [vmem:[%s4 + $0x48] sm:$0xf]
  %v247 = vld [vmem:[%s4 + $0x4c] sm:$0xf]
  %v248 = vld [vmem:[%s4 + $0x50] sm:$0xf]
  %v249 = vld [vmem:[%s4 + $0x54] sm:$0xf]
  %v250 = vld [vmem:[%s4 + $0x58] sm:$0xf]
  %v251 = vld [vmem:[%s4 + $0x5c] sm:$0xf]
  %v252 = vld [vmem:[%s4 + $0x60] sm:$0xf]
  %v253 = vld [vmem:[%s4 + $0x64] sm:$0xf]
  %v254 = vld [vmem:[%s4 + $0x68] sm:$0xf]
  %v255 = vld [vmem:[%s4 + $0x6c] sm:$0xf]
  %v256 = vld [vmem:[%s4 + $0x70] sm:$0xf]
  %v257 = vld [vmem:[%s4 + $0x74] sm:$0xf]
  %v258 = vld [vmem:[%s4 + $0x78] sm:$0xf]
  %v259 = vld [vmem:[%s4 + $0x7c] sm:$0xf]
  %v262 = vunpack.c.l.b16 %v226
  %v263 = vunpack.c.h.b16 %v226
  %v264 = vunpack.c.l.b16 %v227
  %v265 = vunpack.c.h.b16 %v227
  %v266 = vpack.c.b16 %v264, %v262
  %v267 = vpack.c.b16 %v265, %v263
  %v302 = vunpack.c.l.b16 %v228
  %v303 = vunpack.c.l.b16 %v229
  %v304 = vunpack.c.l.b16 %v230
  %v305 = vunpack.c.l.b16 %v231
  %v306 = vunpack.c.l.b16 %v232
  %v307 = vunpack.c.l.b16 %v233
  %v308 = vunpack.c.l.b16 %v234
  %v309 = vunpack.c.l.b16 %v235
  %v310 = vunpack.c.l.b16 %v236
  %v311 = vunpack.c.l.b16 %v237
  %v312 = vunpack.c.l.b16 %v238
  %v313 = vunpack.c.l.b16 %v239
  %v314 = vunpack.c.l.b16 %v240
  %v315 = vunpack.c.l.b16 %v241
  %v316 = vunpack.c.l.b16 %v242
  %v317 = vunpack.c.l.b16 %v243
  %v318 = vunpack.c.l.b16 %v244
  %v319 = vunpack.c.l.b16 %v245
  %v320 = vunpack.c.l.b16 %v246
  %v321 = vunpack.c.l.b16 %v247
  %v322 = vunpack.c.l.b16 %v248
  %v323 = vunpack.c.l.b16 %v249
  %v324 = vunpack.c.l.b16 %v250
  %v325 = vunpack.c.l.b16 %v251
  %v326 = vunpack.c.l.b16 %v252
  %v327 = vunpack.c.l.b16 %v253
  %v328 = vunpack.c.l.b16 %v254
  %v329 = vunpack.c.l.b16 %v255
  %v330 = vunpack.c.l.b16 %v256
  %v331 = vunpack.c.l.b16 %v257
  %v332 = vunpack.c.l.b16 %v258
  %v333 = vunpack.c.l.b16 %v259
  %v334 = vpack.c.b16 %v303, %v302
  %v335 = vpack.c.b16 %v305, %v304
  %v336 = vpack.c.b16 %v307, %v306
  %v337 = vpack.c.b16 %v309, %v308
  %v338 = vpack.c.b16 %v311, %v310
  %v339 = vpack.c.b16 %v313, %v312
  %v340 = vpack.c.b16 %v315, %v314
  %v341 = vpack.c.b16 %v317, %v316
  %v342 = vpack.c.b16 %v319, %v318
  %v343 = vpack.c.b16 %v321, %v320
  %v344 = vpack.c.b16 %v323, %v322
  %v345 = vpack.c.b16 %v325, %v324
  %v346 = vpack.c.b16 %v327, %v326
  %v347 = vpack.c.b16 %v329, %v328
  %v348 = vpack.c.b16 %v331, %v330
  %v349 = vpack.c.b16 %v333, %v332
  %366 = vmatprep.subr.bf16.mxu0 0
  %367 = vmatpush1.bf16.msra.mxu0 %v341
  %368 = vmatprep.subr.bf16.mxu0 0
  %369 = vmatpush1.bf16.msra.mxu0 %v340
  %370 = vmatprep.subr.bf16.mxu0 0
  %371 = vmatpush1.bf16.msra.mxu0 %v339
  %372 = vmatprep.subr.bf16.mxu0 0
  %373 = vmatpush1.bf16.msra.mxu0 %v338
  %374 = vmatprep.subr.bf16.mxu0 0
  %375 = vmatpush1.bf16.msra.mxu0 %v337
  %376 = vmatprep.subr.bf16.mxu0 0
  %377 = vmatpush1.bf16.msra.mxu0 %v336
  %378 = vmatprep.subr.bf16.mxu0 0
  %379 = vmatpush1.bf16.msra.mxu0 %v335
  %380 = vmatprep.subr.bf16.mxu0 0
  %381 = vmatpush1.bf16.msra.mxu0 %v334
  %382 = vmatprep.subr.bf16.mxu0 0
  %383 = vmatpush2.bf16.msra.mxu0 %v349
  %384 = vmatprep.subr.bf16.mxu0 0
  %385 = vmatpush2.bf16.msra.mxu0 %v348
  %386 = vmatprep.subr.bf16.mxu0 0
  %387 = vmatpush2.bf16.msra.mxu0 %v347
  %388 = vmatprep.subr.bf16.mxu0 0
  %389 = vmatpush2.bf16.msra.mxu0 %v346
  %390 = vmatprep.subr.bf16.mxu0 0
  %391 = vmatpush2.bf16.msra.mxu0 %v345
  %392 = vmatprep.subr.bf16.mxu0 0
  %393 = vmatpush2.bf16.msra.mxu0 %v344
  %394 = vmatprep.subr.bf16.mxu0 0
  %395 = vmatpush2.bf16.msra.mxu0 %v343
  %396 = vmatprep.subr.bf16.mxu0 0
  %397 = vmatpush2.bf16.msra.mxu0 %v342
  %398 = vmatprep.mubr.bf16.mxu0 %v267
  %399 = vmatmul.mubr.bf16.gmra.mxu0 %v266
  %v400 = vpop.f32.mrf.mxu0
  %v401 = vadd.f32 0.0, %v400
  %v402 = vpop.f32.mrf.mxu0
  %v403 = vpop.f32.mrf.mxu0
  %v404 = vadd.f32 0.0, %v403
  %v405 = vpop.f32.mrf.mxu0
  %406 = vdwg.mxu0
  %v407 = vadd.f32 %v224, %v401
  %v408 = vadd.f32 %v225, %v404
  %409 = vst [vmem:[#allocation2] sm:$0xff] %v407
  %410 = vst [vmem:[#allocation2 + $0x8] sm:$0xff] %v408
  // Predicated region
  $region42: #{discriminator_forward.15} parent=0 // pred_check
    %p411 = pneg %p33
  $region43: #{discriminator_forward.15} parent=0 // pred_check_branch
    %413 = sbr.rel (%p411) target = $region45
  $region44: #{discriminator_forward.15} parent=0 // pred_region
    %v414 = vld [vmem:[#allocation2] sm:$0xff]
    %v415 = vld [vmem:[#allocation2 + $0x8] sm:$0xff]
    %v416 = vld [vmem:[#allocation3] sm:$0xf]
    %v417 = vld [vmem:[#allocation3 + $0x4] sm:$0xf]
    %v418 = vld [vmem:[%s5] sm:$0xf]
    %v419 = vld [vmem:[%s5 + $0x4] sm:$0xf]
    %v420 = vld [vmem:[%s5 + $0x8] sm:$0xf]
    %v421 = vld [vmem:[%s5 + $0xc] sm:$0xf]
    %v422 = vld [vmem:[%s5 + $0x10] sm:$0xf]
    %v423 = vld [vmem:[%s5 + $0x14] sm:$0xf]
    %v424 = vld [vmem:[%s5 + $0x18] sm:$0xf]
    %v425 = vld [vmem:[%s5 + $0x1c] sm:$0xf]
    %v426 = vld [vmem:[%s5 + $0x20] sm:$0xf]
    %v427 = vld [vmem:[%s5 + $0x24] sm:$0xf]
    %v428 = vld [vmem:[%s5 + $0x28] sm:$0xf]
    %v429 = vld [vmem:[%s5 + $0x2c] sm:$0xf]
    %v430 = vld [vmem:[%s5 + $0x30] sm:$0xf]
    %v431 = vld [vmem:[%s5 + $0x34] sm:$0xf]
    %v432 = vld [vmem:[%s5 + $0x38] sm:$0xf]
    %v433 = vld [vmem:[%s5 + $0x3c] sm:$0xf]
    %v436 = vunpack.c.l.b16 %v416
    %v437 = vunpack.c.l.b16 %v417
    %v438 = vpack.c.b16 %v437, %v436
    %v456 = vunpack.c.l.b16 %v418
    %v457 = vunpack.c.l.b16 %v419
    %v458 = vunpack.c.l.b16 %v420
    %v459 = vunpack.c.l.b16 %v421
    %v460 = vunpack.c.l.b16 %v422
    %v461 = vunpack.c.l.b16 %v423
    %v462 = vunpack.c.l.b16 %v424
    %v463 = vunpack.c.l.b16 %v425
    %v464 = vunpack.c.l.b16 %v426
    %v465 = vunpack.c.l.b16 %v427
    %v466 = vunpack.c.l.b16 %v428
    %v467 = vunpack.c.l.b16 %v429
    %v468 = vunpack.c.l.b16 %v430
    %v469 = vunpack.c.l.b16 %v431
    %v470 = vunpack.c.l.b16 %v432
    %v471 = vunpack.c.l.b16 %v433
    %v472 = vpack.c.b16 %v457, %v456
    %v473 = vpack.c.b16 %v459, %v458
    %v474 = vpack.c.b16 %v461, %v460
    %v475 = vpack.c.b16 %v463, %v462
    %v476 = vpack.c.b16 %v465, %v464
    %v477 = vpack.c.b16 %v467, %v466
    %v478 = vpack.c.b16 %v469, %v468
    %v479 = vpack.c.b16 %v471, %v470
    %488 = vmatprep.subr.bf16.mxu0 0
    %489 = vmatpush1.bf16.msra.mxu0 %v479
    %490 = vmatprep.subr.bf16.mxu0 0
    %491 = vmatpush1.bf16.msra.mxu0 %v478
    %492 = vmatprep.subr.bf16.mxu0 0
    %493 = vmatpush1.bf16.msra.mxu0 %v477
    %494 = vmatprep.subr.bf16.mxu0 0
    %495 = vmatpush1.bf16.msra.mxu0 %v476
    %496 = vmatprep.subr.bf16.mxu0 0
    %497 = vmatpush1.bf16.msra.mxu0 %v475
    %498 = vmatprep.subr.bf16.mxu0 0
    %499 = vmatpush1.bf16.msra.mxu0 %v474
    %500 = vmatprep.subr.bf16.mxu0 0
    %501 = vmatpush1.bf16.msra.mxu0 %v473
    %502 = vmatprep.subr.bf16.mxu0 0
    %503 = vmatpush1.bf16.msra.mxu0 %v472
    %504 = vmatprep.subr.bf16.mxu0 0
    %505 = vmatpush2.bf16.msra.mxu0 0
    %506 = vmatprep.subr.bf16.mxu0 0
    %507 = vmatpush2.bf16.msra.mxu0 0
    %508 = vmatprep.subr.bf16.mxu0 0
    %509 = vmatpush2.bf16.msra.mxu0 0
    %510 = vmatprep.subr.bf16.mxu0 0
    %511 = vmatpush2.bf16.msra.mxu0 0
    %512 = vmatprep.subr.bf16.mxu0 0
    %513 = vmatpush2.bf16.msra.mxu0 0
    %514 = vmatprep.subr.bf16.mxu0 0
    %515 = vmatpush2.bf16.msra.mxu0 0
    %516 = vmatprep.subr.bf16.mxu0 0
    %517 = vmatpush2.bf16.msra.mxu0 0
    %518 = vmatprep.subr.bf16.mxu0 0
    %519 = vmatpush2.bf16.msra.mxu0 0
    %520 = vmatprep.mubr.bf16.mxu0 0
    %521 = vmatmul.mubr.bf16.gmra.mxu0 %v438
    %v522 = vpop.f32.mrf.mxu0
    %v523 = vadd.f32 0.0, %v522
    %v524 = vpop.f32.mrf.mxu0
    %v525 = vpop.f32.mrf.mxu0
    %v526 = vadd.f32 0.0, %v525
    %v527 = vpop.f32.mrf.mxu0
    %528 = vdwg.mxu0
    %v529 = vadd.f32 %v414, %v523
    %v530 = vadd.f32 %v415, %v526
    %v531 = vld [vmem:[%s6] sm:$0x1]
    %v532 = vlaneseq
    %v533 = vshrl.u32 %v532, 7
    %v534 = vsub.s32 0, %v533
    %v535 = vrot.slane %v531, %v534
    %v536 = vadd.f32 %v529, %v535
    %v537 = vadd.f32 %v530, %v535
    %v538 = vld [vmem:[%s6 + $0x1] sm:$0x1]
    %v539 = vld [vmem:[%s6 + $0x2] sm:$0x1]
    %v540 = vlaneseq
    %v541 = vshrl.u32 %v540, 7
    %v542 = vadd.s32 %v541, 8
    %vm543 = vcmp.lt.s32.totalorder %v541, 2
    %vm544 = vcmp.lt.s32.totalorder %v542, 2
    %v545 = vsel %vm543, 1, 0
    %v546 = vsel %vm544, 1, 0
    %v547 = vcvt.s32.f32 %v545
    %v548 = vcvt.s32.f32 %v546
    %v549 = vmul.f32 %v536, %v547
    %v550 = vmul.f32 %v537, %v548
    %v551 = vadd.f32 %v549, %v550
    %v552 = vrot.slane %v551, 4
    %v553 = vadd.f32 %v551, %v552
    %v554 = vrot.slane %v553, 2
    %v555 = vadd.f32 %v553, %v554
    %v556 = vrot.slane %v555, 1
    %v557 = vadd.f32 %v555, %v556
    %v558 = vmul.f32 %v557, 0.5
    %v559 = vsub.f32 %v536, %v558
    %v560 = vsub.f32 %v537, %v558
    %v561 = vmul.f32 %v559, %v547
    %v562 = vmul.f32 %v560, %v548
    %v563 = vmul.f32 %v561, %v561
    %v564 = vmul.f32 %v562, %v562
    %v565 = vadd.f32 %v563, %v564
    %v566 = vrot.slane %v565, 4
    %v567 = vadd.f32 %v565, %v566
    %v568 = vrot.slane %v567, 2
    %v569 = vadd.f32 %v567, %v568
    %v570 = vrot.slane %v569, 1
    %v571 = vadd.f32 %v569, %v570
    %v572 = vmul.f32 %v571, 0.5
    %v573 = vadd.f32 %v572, 1e-05
    %v574 = vrsqrt.pop %v573
    %v575 = vmul.f32 %v559, %v574
    %v576 = vmul.f32 %v560, %v574
    %v577 = vlaneseq
    %v578 = vshrl.u32 %v577, 7
    %v579 = vsub.s32 0, %v578
    %v580 = vrot.slane %v538, %v579
    %v581 = vmul.f32 %v575, %v580
    %v582 = vmul.f32 %v576, %v580
    %v583 = vlaneseq
    %v584 = vshrl.u32 %v583, 7
    %v585 = vsub.s32 0, %v584
    %v586 = vrot.slane %v539, %v585
    %v587 = vadd.f32 %v581, %v586
    %v588 = vadd.f32 %v582, %v586
    %vm589 = vcmp.gt.f32.partialorder %v587, 0.0
    %vm590 = vcmp.gt.f32.partialorder %v588, 0.0
    %v591 = vmul.f32 %v587, 0.2
    %v592 = vmul.f32 %v588, 0.2
    %v593 = vsel %vm589, %v587, %v591
    %v594 = vsel %vm590, %v588, %v592
    %v595 = vpack.c.bf16 %v594, %v593
    %v596 = vld [vmem:[%s7] sm:$0xf]
    %v597 = vld [vmem:[%s7 + $0x4] sm:$0xf]
    %v598 = vld [vmem:[%s7 + $0x8] sm:$0xf]
    %v599 = vld [vmem:[%s7 + $0xc] sm:$0xf]
    %v600 = vld [vmem:[%s7 + $0x10] sm:$0xf]
    %v601 = vld [vmem:[%s7 + $0x14] sm:$0xf]
    %v602 = vld [vmem:[%s7 + $0x18] sm:$0xf]
    %v603 = vld [vmem:[%s7 + $0x1c] sm:$0xf]
    %v604 = vld [vmem:[%s7 + $0x20] sm:$0xf]
    %v605 = vld [vmem:[%s7 + $0x24] sm:$0xf]
    %v606 = vld [vmem:[%s7 + $0x28] sm:$0xf]
    %v607 = vld [vmem:[%s7 + $0x2c] sm:$0xf]
    %v608 = vld [vmem:[%s7 + $0x30] sm:$0xf]
    %v609 = vld [vmem:[%s7 + $0x34] sm:$0xf]
    %v610 = vld [vmem:[%s7 + $0x38] sm:$0xf]
    %v611 = vld [vmem:[%s7 + $0x3c] sm:$0xf]
    %v612 = vld [vmem:[%s8] sm:$0x1]
    %v614 = vlaneseq
    %v615 = vshrl.u32 %v614, 7
    %v616 = vsub.s32 0, %v615
    %v617 = vrot.slane %v612, %v616
    %v635 = vunpack.c.l.b16 %v596
    %v636 = vunpack.c.l.b16 %v597
    %v637 = vunpack.c.l.b16 %v598
    %v638 = vunpack.c.l.b16 %v599
    %v639 = vunpack.c.l.b16 %v600
    %v640 = vunpack.c.l.b16 %v601
    %v641 = vunpack.c.l.b16 %v602
    %v642 = vunpack.c.l.b16 %v603
    %v643 = vunpack.c.l.b16 %v604
    %v644 = vunpack.c.l.b16 %v605
    %v645 = vunpack.c.l.b16 %v606
    %v646 = vunpack.c.l.b16 %v607
    %v647 = vunpack.c.l.b16 %v608
    %v648 = vunpack.c.l.b16 %v609
    %v649 = vunpack.c.l.b16 %v610
    %v650 = vunpack.c.l.b16 %v611
    %v651 = vpack.c.b16 %v636, %v635
    %v652 = vpack.c.b16 %v638, %v637
    %v653 = vpack.c.b16 %v640, %v639
    %v654 = vpack.c.b16 %v642, %v641
    %v655 = vpack.c.b16 %v644, %v643
    %v656 = vpack.c.b16 %v646, %v645
    %v657 = vpack.c.b16 %v648, %v647
    %v658 = vpack.c.b16 %v650, %v649
    %667 = vmatprep.subr.bf16.mxu0 0
    %668 = vmatpush1.bf16.msra.mxu0 %v658
    %669 = vmatprep.subr.bf16.mxu0 0
    %670 = vmatpush1.bf16.msra.mxu0 %v657
    %671 = vmatprep.subr.bf16.mxu0 0
    %672 = vmatpush1.bf16.msra.mxu0 %v656
    %673 = vmatprep.subr.bf16.mxu0 0
    %674 = vmatpush1.bf16.msra.mxu0 %v655
    %675 = vmatprep.subr.bf16.mxu0 0
    %676 = vmatpush1.bf16.msra.mxu0 %v654
    %677 = vmatprep.subr.bf16.mxu0 0
    %678 = vmatpush1.bf16.msra.mxu0 %v653
    %679 = vmatprep.subr.bf16.mxu0 0
    %680 = vmatpush1.bf16.msra.mxu0 %v652
    %681 = vmatprep.subr.bf16.mxu0 0
    %682 = vmatpush1.bf16.msra.mxu0 %v651
    %683 = vmatprep.subr.bf16.mxu0 0
    %684 = vmatpush2.bf16.msra.mxu0 0
    %685 = vmatprep.subr.bf16.mxu0 0
    %686 = vmatpush2.bf16.msra.mxu0 0
    %687 = vmatprep.subr.bf16.mxu0 0
    %688 = vmatpush2.bf16.msra.mxu0 0
    %689 = vmatprep.subr.bf16.mxu0 0
    %690 = vmatpush2.bf16.msra.mxu0 0
    %691 = vmatprep.subr.bf16.mxu0 0
    %692 = vmatpush2.bf16.msra.mxu0 0
    %693 = vmatprep.subr.bf16.mxu0 0
    %694 = vmatpush2.bf16.msra.mxu0 0
    %695 = vmatprep.subr.bf16.mxu0 0
    %696 = vmatpush2.bf16.msra.mxu0 0
    %697 = vmatprep.subr.bf16.mxu0 0
    %698 = vmatpush2.bf16.msra.mxu0 0
    %699 = vmatprep.mubr.bf16.mxu0 0
    %700 = vmatmul.mubr.bf16.gmra.mxu0 %v595
    %v701 = vpop.f32.mrf.mxu0
    %v702 = vadd.f32 %v617, %v701
    %v703 = vpop.f32.mrf.mxu0
    %v704 = vpop.f32.mrf.mxu0
    %v705 = vadd.f32 %v617, %v704
    %v706 = vpop.f32.mrf.mxu0
    %707 = vdwg.mxu0
    %v708 = vsub.f32 0.0, %v702
    %v709 = vsub.f32 0.0, %v705
    %v710 = vmul.f32 %v708, 1.442695
    %v711 = vpow.pop %v710
    %v712 = vmul.f32 %v709, 1.442695
    %v713 = vpow.pop %v712
    %v714 = vadd.f32 %v711, 1.0
    %v715 = vadd.f32 %v713, 1.0
    %v716 = vrcp.pop %v714
    %v717 = vmul.f32 1.0, %v716
    %v718 = vrcp.pop %v715
    %v719 = vmul.f32 1.0, %v718
    %720 = vst [vmem:[%s9] sm:$0xff] %v717
    %721 = vst [vmem:[%s9 + $0x8] sm:$0xff] %v719
  $region45: #{discriminator_forward.15} parent=0 // pred_fallthru
    _
  // Predicated region
  $region46: #{discriminator_forward.15} parent=0 // pred_check
    _
  $region47: #{discriminator_forward.15} parent=0 // pred_check_branch
    %723 = sbr.rel (0) target = $region49
  $region48: #{discriminator_forward.15} parent=0 // pred_region
    _
  $region49: #{discriminator_forward.15} parent=0 // pred_fallthru
    _
  // Predicated region
  $region50: #{discriminator_forward.15} parent=0 // pred_check
    _
  $region51: #{discriminator_forward.15} parent=0 // pred_check_branch
    %725 = sbr.rel (0) target = $region53
  $region52: #{discriminator_forward.15} parent=0 // pred_region
    _
  $region53: #{discriminator_forward.15} parent=0 // pred_fallthru
    _

</llo_original>
